<compile_context>
chip_gen: v6e
topology: v6e:2x2x1
jax: 0.10.0
libtpu: 0.0.40
codegen_flags: <defaults>
</compile_context>

<pallas_src>
import functools

import jax
import jax.numpy as jnp
import numpy as np
from jax.experimental import pallas as pl
from jax.experimental.pallas import tpu as pltpu


def _roundup(x, m):
    return -(-x // m) * m


def _bottleneck_kernel(x_ref, w1_ref, s1_ref, b1_ref,
                       w2_ref, s2_ref, b2_ref,
                       w3_ref, s3_ref, b3_ref,
                       o_ref, ypad_ref,
                       *, nb, H, W, Cin, Cmid, Cout, dilation, WL, PZ):
    """One grid step == nb batch elements, whole images fused in VMEM."""
    d = dilation
    p = d                        # conv2 padding == dilation (as in the module)
    Hout, Wout = H, W            # stride == 1 (identity skip)
    M = nb * Hout * Wout
    bf16 = jnp.bfloat16
    f32 = jnp.float32

    # ---- conv1 (1x1, no bias) + bn1 + relu : channel matmul, bf16 in / f32 acc
    x2d = x_ref[...].reshape(M, Cin)
    y1 = jnp.dot(x2d.astype(bf16), w1_ref[...], preferred_element_type=f32)
    y1 = jnp.maximum(y1 * s1_ref[...] + b1_ref[...], 0.0)          # (M, Cmid) f32

    # ---- padded activation buffer for the 3x3 conv (bf16 scratch).
    # Interior starts at column WL (multiple of 8) -> sublane-aligned store.
    # Halo strips are re-zeroed every step (no cross-step scratch state, so the
    # "parallel" batch axis is safe) and are whole 8-sublane groups so they
    # lower to unmasked stores.
    zer_lr = jnp.zeros((nb, H + 2 * p, PZ, Cmid), bf16)
    ypad_ref[:, :, WL - PZ:WL, :] = zer_lr                          # left halo
    ypad_ref[:, :, WL + W:WL + W + PZ, :] = zer_lr                  # right halo
    zer_tb = jnp.zeros((nb, p, W, Cmid), bf16)
    ypad_ref[:, 0:p, WL:WL + W, :] = zer_tb                         # top halo
    ypad_ref[:, p + H:2 * p + H, WL:WL + W, :] = zer_tb             # bottom halo
    ypad_ref[:, p:p + H, WL:WL + W, :] = (
        y1.reshape(nb, H, W, Cmid).astype(bf16))                    # interior

    # ---- conv2 (3x3, stride 1, dilation d) + bn2 + relu.
    # No im2col slab: accumulate 9 MXU matmuls (one per tap) straight from the
    # padded scratch into an f32 accumulator.
    y2 = jnp.zeros((M, Cmid), f32)
    for kh in range(3):
        for kw in range(3):
            t = kh * 3 + kw
            r0 = kh * d
            c0 = WL - p + kw * d
            tap = ypad_ref[:, r0:r0 + Hout, c0:c0 + Wout, :].reshape(M, Cmid)
            y2 = y2 + jnp.dot(tap, w2_ref[t], preferred_element_type=f32)
    y2 = jnp.maximum(y2 * s2_ref[...] + b2_ref[...], 0.0)           # (M, Cmid) f32

    # ---- conv3 (1x1, no bias) + bn3
    y3 = jnp.dot(y2.astype(bf16), w3_ref[...], preferred_element_type=f32)
    y3 = y3 * s3_ref[...] + b3_ref[...]                             # (M, Cout) f32

    # ---- residual add (downsample=None -> skip = x) + relu, f32 epilogue.
    # Re-read x here instead of keeping it live across the three convs.
    skip = x_ref[...].reshape(M, Cout).astype(f32)
    out = jnp.maximum(y3 + skip, 0.0)
    o_ref[...] = out.reshape(nb, Hout, Wout, Cout).astype(o_ref.dtype)


def _vmem_capacity_bytes():
    """Per-core VMEM capacity; conservative fallback if the query fails."""
    try:
        cap = int(pltpu.get_tpu_info().vmem_capacity_bytes)
        if cap > 0:
            return cap
    except Exception:
        pass
    return 64 << 20            # v7x per-core VMEM (smallest of v5e/v6e/v7x)


def _step_bytes(nb, H, W, Cin, Cmid, Cout, p, WL, PZ, x_bytes, out_bytes):
    """Per-grid-step VMEM footprint estimate.  Pipelined blocks (x, out,
    weights) are double-buffered; scratch and in-flight f32 values are not."""
    M = nb * H * W
    x_blk = M * Cin * x_bytes
    o_blk = M * Cout * out_bytes
    wts = ((Cin * Cmid + 9 * Cmid * Cmid + Cmid * Cout) * 2
           + 2 * (2 * Cmid + Cout) * 4)
    ypad = nb * (H + 2 * p) * (WL + W + PZ) * Cmid * 2
    tmp = M * (2 * Cmid + Cout) * 4 + M * Cmid * 2    # y1/y2/y3 + tap temporaries
    return 2 * (x_blk + o_blk + wts) + ypad + tmp


def _pick_nb(N, step_bytes_fn, budget):
    """Largest batch block within budget; keep grid >= 2 when N >= 2 so the
    input/output pipeline can overlap DMA with compute."""
    nb = 1
    for cand in range(1, N + 1):
        if N % cand:
            continue
        if step_bytes_fn(cand) > budget:
            break
        if N >= 2 and N // cand < 2:
            break
        nb = cand
    return nb


def bottleneck_pallas(x_nhwc, w1, s1, b1, w2, s2, b2, w3, s3, b3,
                      *, stride=1, dilation=1, nb=None, out_dtype=None):
    """Fused ResNet Bottleneck forward (inference-mode BN folded to scale/bias).

    x_nhwc may be float32 or bfloat16 (bf16 halves the input HBM stream; the
    MXU consumes bf16 either way).  out_dtype defaults to x's dtype; pass
    jnp.bfloat16 to halve the output HBM stream as well.
    """
    N, H, W, Cin = x_nhwc.shape
    Cmid = w1.shape[1]
    Cout = w3.shape[1]
    assert stride == 1 and Cout == Cin, (
        "identity skip requires stride=1 and in_channels == 4*out_channels")
    d = dilation
    p = d
    WL = max(8, _roundup(p, 8))      # left pad of ypad, 8-sublane aligned
    PZ = _roundup(p, 8)              # halo strip width / right pad (multiple of 8)
    if out_dtype is None:
        out_dtype = x_nhwc.dtype
    x_bytes = np.dtype(x_nhwc.dtype).itemsize
    out_bytes = np.dtype(out_dtype).itemsize

    # Generation-aware VMEM budgets (128 MiB v5e/v6e, 64 MiB/core v7x).
    cap = _vmem_capacity_bytes()
    step_fn = lambda b: _step_bytes(b, H, W, Cin, Cmid, Cout, p, WL, PZ,
                                    x_bytes, out_bytes)
    if nb is None:
        nb = _pick_nb(N, step_fn, budget=int(cap * 0.45))
    assert N % nb == 0
    vmem_limit = int(min(cap * 0.9, max(32 << 20, 2 * step_fn(nb))))

    # bf16 weights for the MXU; folded-BN scale/bias stay f32.
    w1b = w1.astype(jnp.bfloat16)                                  # (Cin, Cmid)
    w2b = w2.reshape(9, Cmid, Cmid).astype(jnp.bfloat16)           # (kh*kw, ci, co)
    w3b = w3.astype(jnp.bfloat16)                                  # (Cmid, Cout)

    kernel = functools.partial(
        _bottleneck_kernel, nb=nb, H=H, W=W, Cin=Cin, Cmid=Cmid, Cout=Cout,
        dilation=dilation, WL=WL, PZ=PZ)

    c2 = lambda b: (0, 0)
    c3 = lambda b: (0, 0, 0)
    out = pl.pallas_call(
        kernel,
        out_shape=jax.ShapeDtypeStruct((N, H, W, Cout), out_dtype),
        grid_spec=pltpu.PrefetchScalarGridSpec(
            num_scalar_prefetch=0,
            grid=(N // nb,),
            in_specs=[
                pl.BlockSpec((nb, H, W, Cin), lambda b: (b, 0, 0, 0)),  # x
                pl.BlockSpec((Cin, Cmid), c2),                          # w1 (bf16)
                pl.BlockSpec((1, Cmid), c2),                            # bn1 scale
                pl.BlockSpec((1, Cmid), c2),                            # bn1 bias
                pl.BlockSpec((9, Cmid, Cmid), c3),                      # w2 (bf16)
                pl.BlockSpec((1, Cmid), c2),                            # bn2 scale
                pl.BlockSpec((1, Cmid), c2),                            # bn2 bias
                pl.BlockSpec((Cmid, Cout), c2),                         # w3 (bf16)
                pl.BlockSpec((1, Cout), c2),                            # bn3 scale
                pl.BlockSpec((1, Cout), c2),                            # bn3 bias
            ],
            out_specs=pl.BlockSpec((nb, H, W, Cout), lambda b: (b, 0, 0, 0)),
            scratch_shapes=[
                pltpu.VMEM((nb, H + 2 * p, WL + W + PZ, Cmid), jnp.bfloat16),
            ],
        ),
        compiler_params=pltpu.CompilerParams(
            dimension_semantics=("parallel",),
            vmem_limit_bytes=vmem_limit),
    )(x_nhwc, w1b, s1, b1, w2b, s2, b2, w3b, s3, b3)
    return out


def _fold_bn(gamma, beta, mean, var, eps=1e-5):
    scale = gamma / jnp.sqrt(var + eps)
    bias = beta - mean * scale
    return scale[None, :], bias[None, :]


def _reference_nhwc(x, w1, s1, b1, w2, s2, b2, w3, s3, b3, *, dilation=1):
    """Pure-JAX reference matching the kernel's precision choices
    (bf16 matmul inputs, f32 accumulation, f32 BN/ReLU/residual)."""
    dn = ("NHWC", "HWIO", "NHWC")
    bf16, f32 = jnp.bfloat16, jnp.float32
    y = jax.lax.conv_general_dilated(
        x.astype(bf16), w1.astype(bf16)[None, None, :, :], (1, 1), "VALID",
        dimension_numbers=dn, preferred_element_type=f32)
    y = jnp.maximum(y * s1[0] + b1[0], 0.0)
    y = jax.lax.conv_general_dilated(
        y.astype(bf16), w2.astype(bf16), (1, 1), [(dilation, dilation)] * 2,
        rhs_dilation=(dilation, dilation), dimension_numbers=dn,
        preferred_element_type=f32)
    y = jnp.maximum(y * s2[0] + b2[0], 0.0)
    y = jax.lax.conv_general_dilated(
        y.astype(bf16), w3.astype(bf16)[None, None, :, :], (1, 1), "VALID",
        dimension_numbers=dn, preferred_element_type=f32)
    y = y * s3[0] + b3[0]
    return jnp.maximum(y + x, 0.0)


if __name__ == "__main__":
    # Shapes consistent with the module: downsample=None requires
    # in_channels == out_channels * 4 and stride == 1.
    # (Correctness smoke test only; tune/benchmark at real Bottleneck widths.)
    N, H, W = 2, 16, 16
    out_channels = 4
    in_channels = out_channels * 4          # 16
    Cout = out_channels * 4                 # 16
    stride, dilation = 1, 1

    key = jax.random.PRNGKey(0)
    ks = jax.random.split(key, 8)

    x_nchw = jax.random.normal(ks[0], (N, in_channels, H, W), jnp.float32)

    # conv weights (stored transposed for NHWC matmuls; w2 is HWIO)
    w1 = 0.2 * jax.random.normal(ks[1], (in_channels, out_channels), jnp.float32)
    w2 = 0.2 * jax.random.normal(ks[2], (3, 3, out_channels, out_channels), jnp.float32)
    w3 = 0.2 * jax.random.normal(ks[3], (out_channels, Cout), jnp.float32)

    # batchnorm params (inference / running stats), deterministic but nontrivial
    def bn_params(k, c):
        k1, k2, k3, k4 = jax.random.split(k, 4)
        gamma = 1.0 + 0.1 * jax.random.normal(k1, (c,), jnp.float32)
        beta = 0.1 * jax.random.normal(k2, (c,), jnp.float32)
        mean = 0.1 * jax.random.normal(k3, (c,), jnp.float32)
        var = 1.0 + 0.1 * jax.random.uniform(k4, (c,), jnp.float32)
        return gamma, beta, mean, var

    s1, b1 = _fold_bn(*bn_params(ks[4], out_channels))
    s2, b2 = _fold_bn(*bn_params(ks[5], out_channels))
    s3, b3 = _fold_bn(*bn_params(ks[6], Cout))

    # NCHW -> NHWC for the kernel
    x_nhwc = jnp.transpose(x_nchw, (0, 2, 3, 1))

    out_nhwc = bottleneck_pallas(
        x_nhwc, w1, s1, b1, w2, s2, b2, w3, s3, b3,
        stride=stride, dilation=dilation)
    out_nhwc = jax.block_until_ready(out_nhwc)
    out_nchw = jnp.transpose(out_nhwc, (0, 3, 1, 2))

    ref = _reference_nhwc(
        x_nhwc, w1, s1, b1, w2, s2, b2, w3, s3, b3, dilation=dilation)
    ref = jax.block_until_ready(ref)

    assert out_nchw.shape == (N, Cout, H, W)
    np.testing.assert_allclose(np.asarray(out_nhwc), np.asarray(ref),
                               rtol=1e-2, atol=1e-2)
    print("KERNEL_OK")
</pallas_src>

<mosaic_0001>
module attributes {stable_mosaic.version = 11 : i64} {
  func.func @_bottleneck_kernel(%arg0: i32, %arg1: memref<1x16x16x16xf32, #tpu.memory_space<vmem>>, %arg2: memref<16x4xbf16, #tpu.memory_space<vmem>>, %arg3: memref<1x4xf32, #tpu.memory_space<vmem>>, %arg4: memref<1x4xf32, #tpu.memory_space<vmem>>, %arg5: memref<9x4x4xbf16, #tpu.memory_space<vmem>>, %arg6: memref<1x4xf32, #tpu.memory_space<vmem>>, %arg7: memref<1x4xf32, #tpu.memory_space<vmem>>, %arg8: memref<4x16xbf16, #tpu.memory_space<vmem>>, %arg9: memref<1x16xf32, #tpu.memory_space<vmem>>, %arg10: memref<1x16xf32, #tpu.memory_space<vmem>>, %arg11: memref<1x16x16x16xf32, #tpu.memory_space<vmem>>, %arg12: memref<1x18x32x4xbf16, #tpu.memory_space<vmem>>) attributes {dimension_semantics = [#tpu.dimension_semantics<parallel>], iteration_bounds = array<i64: 2>, scalar_prefetch = 0 : i64, scratch_operands = 1 : i64, tpu.core_type = #tpu.core_type<tc>, window_params = [{transform_indices = @transform_0, window_bounds = array<i64: 1, 16, 16, 16>}, {pipeline_mode = #tpu.pipeline_mode<synchronous>, transform_indices = @transform_1, window_bounds = array<i64: 16, 4>}, {pipeline_mode = #tpu.pipeline_mode<synchronous>, transform_indices = @transform_2, window_bounds = array<i64: 1, 4>}, {pipeline_mode = #tpu.pipeline_mode<synchronous>, transform_indices = @transform_3, window_bounds = array<i64: 1, 4>}, {pipeline_mode = #tpu.pipeline_mode<synchronous>, transform_indices = @transform_4, window_bounds = array<i64: 9, 4, 4>}, {pipeline_mode = #tpu.pipeline_mode<synchronous>, transform_indices = @transform_5, window_bounds = array<i64: 1, 4>}, {pipeline_mode = #tpu.pipeline_mode<synchronous>, transform_indices = @transform_6, window_bounds = array<i64: 1, 4>}, {pipeline_mode = #tpu.pipeline_mode<synchronous>, transform_indices = @transform_7, window_bounds = array<i64: 4, 16>}, {pipeline_mode = #tpu.pipeline_mode<synchronous>, transform_indices = @transform_8, window_bounds = array<i64: 1, 16>}, {pipeline_mode = #tpu.pipeline_mode<synchronous>, transform_indices = @transform_9, window_bounds = array<i64: 1, 16>}, {transform_indices = @transform_10, window_bounds = array<i64: 1, 16, 16, 16>}]} {
    %c0 = arith.constant 0 : index
    %c0_0 = arith.constant 0 : index
    %c0_1 = arith.constant 0 : index
    %c0_2 = arith.constant 0 : index
    %0 = vector.load %arg1[%c0, %c0_0, %c0_1, %c0_2] : memref<1x16x16x16xf32, #tpu.memory_space<vmem>>, vector<1x16x16x16xf32>
    %1 = vector.shape_cast %0 : vector<1x16x16x16xf32> to vector<256x16xf32>
    %2 = arith.truncf %1 : vector<256x16xf32> to vector<256x16xbf16>
    %c0_3 = arith.constant 0 : index
    %c0_4 = arith.constant 0 : index
    %3 = vector.load %arg2[%c0_3, %c0_4] : memref<16x4xbf16, #tpu.memory_space<vmem>>, vector<16x4xbf16>
    %cst = arith.constant dense<0.000000e+00> : vector<256x4xf32>
    %4 = tpu.matmul %2, %3, %cst {dimension_numbers = #tpu.dot_dimension_numbers<[1], [0], [0], [1], [0, 0, 1, 1], [], []>} : vector<256x16xbf16>, vector<16x4xbf16>, vector<256x4xf32> -> vector<256x4xf32>
    %c0_5 = arith.constant 0 : index
    %c0_6 = arith.constant 0 : index
    %5 = vector.load %arg3[%c0_5, %c0_6] : memref<1x4xf32, #tpu.memory_space<vmem>>, vector<1x4xf32>
    %6 = vector.broadcast %5 : vector<1x4xf32> to vector<256x4xf32>
    %7 = arith.mulf %4, %6 : vector<256x4xf32>
    %c0_7 = arith.constant 0 : index
    %c0_8 = arith.constant 0 : index
    %8 = vector.load %arg4[%c0_7, %c0_8] : memref<1x4xf32, #tpu.memory_space<vmem>>, vector<1x4xf32>
    %9 = vector.broadcast %8 : vector<1x4xf32> to vector<256x4xf32>
    %10 = arith.addf %7, %9 : vector<256x4xf32>
    %cst_9 = arith.constant 0.000000e+00 : f32
    %11 = vector.broadcast %cst_9 : f32 to vector<256x4xf32>
    %12 = arith.maximumf %10, %11 : vector<256x4xf32>
    %cst_10 = arith.constant 0.000000e+00 : bf16
    %13 = vector.broadcast %cst_10 : bf16 to vector<1x18x8x4xbf16>
    %c0_11 = arith.constant 0 : index
    %c0_12 = arith.constant 0 : index
    %c0_13 = arith.constant 0 : index
    %c0_14 = arith.constant 0 : index
    %14 = vector.load %arg12[%c0_11, %c0_12, %c0_13, %c0_14] : memref<1x18x32x4xbf16, #tpu.memory_space<vmem>>, vector<1x18x8x4xbf16>
    tpu.vector_store %arg12[%c0_11, %c0_12, %c0_13, %c0_14], %13 {strides = array<i32>} : memref<1x18x32x4xbf16, #tpu.memory_space<vmem>>, vector<1x18x8x4xbf16>,
    %c0_15 = arith.constant 0 : index
    %c0_16 = arith.constant 0 : index
    %c24 = arith.constant 24 : index
    %c0_17 = arith.constant 0 : index
    %15 = vector.load %arg12[%c0_15, %c0_16, %c24, %c0_17] : memref<1x18x32x4xbf16, #tpu.memory_space<vmem>>, vector<1x18x8x4xbf16>
    tpu.vector_store %arg12[%c0_15, %c0_16, %c24, %c0_17], %13 {strides = array<i32>} : memref<1x18x32x4xbf16, #tpu.memory_space<vmem>>, vector<1x18x8x4xbf16>,
    %cst_18 = arith.constant 0.000000e+00 : bf16
    %16 = vector.broadcast %cst_18 : bf16 to vector<1x1x16x4xbf16>
    %c0_19 = arith.constant 0 : index
    %c0_20 = arith.constant 0 : index
    %c8 = arith.constant 8 : index
    %c0_21 = arith.constant 0 : index
    %17 = vector.load %arg12[%c0_19, %c0_20, %c8, %c0_21] : memref<1x18x32x4xbf16, #tpu.memory_space<vmem>>, vector<1x1x16x4xbf16>
    tpu.vector_store %arg12[%c0_19, %c0_20, %c8, %c0_21], %16 {strides = array<i32>} : memref<1x18x32x4xbf16, #tpu.memory_space<vmem>>, vector<1x1x16x4xbf16>,
    %c0_22 = arith.constant 0 : index
    %c17 = arith.constant 17 : index
    %c8_23 = arith.constant 8 : index
    %c0_24 = arith.constant 0 : index
    %18 = vector.load %arg12[%c0_22, %c17, %c8_23, %c0_24] : memref<1x18x32x4xbf16, #tpu.memory_space<vmem>>, vector<1x1x16x4xbf16>
    tpu.vector_store %arg12[%c0_22, %c17, %c8_23, %c0_24], %16 {strides = array<i32>} : memref<1x18x32x4xbf16, #tpu.memory_space<vmem>>, vector<1x1x16x4xbf16>,
    %19 = vector.shape_cast %12 : vector<256x4xf32> to vector<1x16x16x4xf32>
    %20 = arith.truncf %19 : vector<1x16x16x4xf32> to vector<1x16x16x4xbf16>
    %c0_25 = arith.constant 0 : index
    %c1 = arith.constant 1 : index
    %c8_26 = arith.constant 8 : index
    %c0_27 = arith.constant 0 : index
    %21 = vector.load %arg12[%c0_25, %c1, %c8_26, %c0_27] : memref<1x18x32x4xbf16, #tpu.memory_space<vmem>>, vector<1x16x16x4xbf16>
    tpu.vector_store %arg12[%c0_25, %c1, %c8_26, %c0_27], %20 {strides = array<i32>} : memref<1x18x32x4xbf16, #tpu.memory_space<vmem>>, vector<1x16x16x4xbf16>,
    %cst_28 = arith.constant 0.000000e+00 : f32
    %22 = vector.broadcast %cst_28 : f32 to vector<256x4xf32>
    %c0_29 = arith.constant 0 : index
    %c0_30 = arith.constant 0 : index
    %c7 = arith.constant 7 : index
    %c0_31 = arith.constant 0 : index
    %23 = vector.load %arg12[%c0_29, %c0_30, %c7, %c0_31] : memref<1x18x32x4xbf16, #tpu.memory_space<vmem>>, vector<1x16x16x4xbf16>
    %24 = vector.shape_cast %23 : vector<1x16x16x4xbf16> to vector<256x4xbf16>
    %c0_32 = arith.constant 0 : index
    %c0_33 = arith.constant 0 : index
    %c0_34 = arith.constant 0 : index
    %25 = vector.load %arg5[%c0_32, %c0_33, %c0_34] : memref<9x4x4xbf16, #tpu.memory_space<vmem>>, vector<1x4x4xbf16>
    %26 = vector.shape_cast %25 : vector<1x4x4xbf16> to vector<4x4xbf16>
    %cst_35 = arith.constant dense<0.000000e+00> : vector<256x4xf32>
    %27 = tpu.matmul %24, %26, %cst_35 {dimension_numbers = #tpu.dot_dimension_numbers<[1], [0], [0], [1], [0, 0, 1, 1], [], []>} : vector<256x4xbf16>, vector<4x4xbf16>, vector<256x4xf32> -> vector<256x4xf32>
    %28 = arith.addf %22, %27 : vector<256x4xf32>
    %c0_36 = arith.constant 0 : index
    %c0_37 = arith.constant 0 : index
    %c8_38 = arith.constant 8 : index
    %c0_39 = arith.constant 0 : index
    %29 = vector.load %arg12[%c0_36, %c0_37, %c8_38, %c0_39] : memref<1x18x32x4xbf16, #tpu.memory_space<vmem>>, vector<1x16x16x4xbf16>
    %30 = vector.shape_cast %29 : vector<1x16x16x4xbf16> to vector<256x4xbf16>
    %c1_40 = arith.constant 1 : index
    %c0_41 = arith.constant 0 : index
    %c0_42 = arith.constant 0 : index
    %31 = vector.load %arg5[%c1_40, %c0_41, %c0_42] : memref<9x4x4xbf16, #tpu.memory_space<vmem>>, vector<1x4x4xbf16>
    %32 = vector.shape_cast %31 : vector<1x4x4xbf16> to vector<4x4xbf16>
    %cst_43 = arith.constant dense<0.000000e+00> : vector<256x4xf32>
    %33 = tpu.matmul %30, %32, %cst_43 {dimension_numbers = #tpu.dot_dimension_numbers<[1], [0], [0], [1], [0, 0, 1, 1], [], []>} : vector<256x4xbf16>, vector<4x4xbf16>, vector<256x4xf32> -> vector<256x4xf32>
    %34 = arith.addf %28, %33 : vector<256x4xf32>
    %c0_44 = arith.constant 0 : index
    %c0_45 = arith.constant 0 : index
    %c9 = arith.constant 9 : index
    %c0_46 = arith.constant 0 : index
    %35 = vector.load %arg12[%c0_44, %c0_45, %c9, %c0_46] : memref<1x18x32x4xbf16, #tpu.memory_space<vmem>>, vector<1x16x16x4xbf16>
    %36 = vector.shape_cast %35 : vector<1x16x16x4xbf16> to vector<256x4xbf16>
    %c2 = arith.constant 2 : index
    %c0_47 = arith.constant 0 : index
    %c0_48 = arith.constant 0 : index
    %37 = vector.load %arg5[%c2, %c0_47, %c0_48] : memref<9x4x4xbf16, #tpu.memory_space<vmem>>, vector<1x4x4xbf16>
    %38 = vector.shape_cast %37 : vector<1x4x4xbf16> to vector<4x4xbf16>
    %cst_49 = arith.constant dense<0.000000e+00> : vector<256x4xf32>
    %39 = tpu.matmul %36, %38, %cst_49 {dimension_numbers = #tpu.dot_dimension_numbers<[1], [0], [0], [1], [0, 0, 1, 1], [], []>} : vector<256x4xbf16>, vector<4x4xbf16>, vector<256x4xf32> -> vector<256x4xf32>
    %40 = arith.addf %34, %39 : vector<256x4xf32>
    %c0_50 = arith.constant 0 : index
    %c1_51 = arith.constant 1 : index
    %c7_52 = arith.constant 7 : index
    %c0_53 = arith.constant 0 : index
    %41 = vector.load %arg12[%c0_50, %c1_51, %c7_52, %c0_53] : memref<1x18x32x4xbf16, #tpu.memory_space<vmem>>, vector<1x16x16x4xbf16>
    %42 = vector.shape_cast %41 : vector<1x16x16x4xbf16> to vector<256x4xbf16>
    %c3 = arith.constant 3 : index
    %c0_54 = arith.constant 0 : index
    %c0_55 = arith.constant 0 : index
    %43 = vector.load %arg5[%c3, %c0_54, %c0_55] : memref<9x4x4xbf16, #tpu.memory_space<vmem>>, vector<1x4x4xbf16>
    %44 = vector.shape_cast %43 : vector<1x4x4xbf16> to vector<4x4xbf16>
    %cst_56 = arith.constant dense<0.000000e+00> : vector<256x4xf32>
    %45 = tpu.matmul %42, %44, %cst_56 {dimension_numbers = #tpu.dot_dimension_numbers<[1], [0], [0], [1], [0, 0, 1, 1], [], []>} : vector<256x4xbf16>, vector<4x4xbf16>, vector<256x4xf32> -> vector<256x4xf32>
    %46 = arith.addf %40, %45 : vector<256x4xf32>
    %c0_57 = arith.constant 0 : index
    %c1_58 = arith.constant 1 : index
    %c8_59 = arith.constant 8 : index
    %c0_60 = arith.constant 0 : index
    %47 = vector.load %arg12[%c0_57, %c1_58, %c8_59, %c0_60] : memref<1x18x32x4xbf16, #tpu.memory_space<vmem>>, vector<1x16x16x4xbf16>
    %48 = vector.shape_cast %47 : vector<1x16x16x4xbf16> to vector<256x4xbf16>
    %c4 = arith.constant 4 : index
    %c0_61 = arith.constant 0 : index
    %c0_62 = arith.constant 0 : index
    %49 = vector.load %arg5[%c4, %c0_61, %c0_62] : memref<9x4x4xbf16, #tpu.memory_space<vmem>>, vector<1x4x4xbf16>
    %50 = vector.shape_cast %49 : vector<1x4x4xbf16> to vector<4x4xbf16>
    %cst_63 = arith.constant dense<0.000000e+00> : vector<256x4xf32>
    %51 = tpu.matmul %48, %50, %cst_63 {dimension_numbers = #tpu.dot_dimension_numbers<[1], [0], [0], [1], [0, 0, 1, 1], [], []>} : vector<256x4xbf16>, vector<4x4xbf16>, vector<256x4xf32> -> vector<256x4xf32>
    %52 = arith.addf %46, %51 : vector<256x4xf32>
    %c0_64 = arith.constant 0 : index
    %c1_65 = arith.constant 1 : index
    %c9_66 = arith.constant 9 : index
    %c0_67 = arith.constant 0 : index
    %53 = vector.load %arg12[%c0_64, %c1_65, %c9_66, %c0_67] : memref<1x18x32x4xbf16, #tpu.memory_space<vmem>>, vector<1x16x16x4xbf16>
    %54 = vector.shape_cast %53 : vector<1x16x16x4xbf16> to vector<256x4xbf16>
    %c5 = arith.constant 5 : index
    %c0_68 = arith.constant 0 : index
    %c0_69 = arith.constant 0 : index
    %55 = vector.load %arg5[%c5, %c0_68, %c0_69] : memref<9x4x4xbf16, #tpu.memory_space<vmem>>, vector<1x4x4xbf16>
    %56 = vector.shape_cast %55 : vector<1x4x4xbf16> to vector<4x4xbf16>
    %cst_70 = arith.constant dense<0.000000e+00> : vector<256x4xf32>
    %57 = tpu.matmul %54, %56, %cst_70 {dimension_numbers = #tpu.dot_dimension_numbers<[1], [0], [0], [1], [0, 0, 1, 1], [], []>} : vector<256x4xbf16>, vector<4x4xbf16>, vector<256x4xf32> -> vector<256x4xf32>
    %58 = arith.addf %52, %57 : vector<256x4xf32>
    %c0_71 = arith.constant 0 : index
    %c2_72 = arith.constant 2 : index
    %c7_73 = arith.constant 7 : index
    %c0_74 = arith.constant 0 : index
    %59 = vector.load %arg12[%c0_71, %c2_72, %c7_73, %c0_74] : memref<1x18x32x4xbf16, #tpu.memory_space<vmem>>, vector<1x16x16x4xbf16>
    %60 = vector.shape_cast %59 : vector<1x16x16x4xbf16> to vector<256x4xbf16>
    %c6 = arith.constant 6 : index
    %c0_75 = arith.constant 0 : index
    %c0_76 = arith.constant 0 : index
    %61 = vector.load %arg5[%c6, %c0_75, %c0_76] : memref<9x4x4xbf16, #tpu.memory_space<vmem>>, vector<1x4x4xbf16>
    %62 = vector.shape_cast %61 : vector<1x4x4xbf16> to vector<4x4xbf16>
    %cst_77 = arith.constant dense<0.000000e+00> : vector<256x4xf32>
    %63 = tpu.matmul %60, %62, %cst_77 {dimension_numbers = #tpu.dot_dimension_numbers<[1], [0], [0], [1], [0, 0, 1, 1], [], []>} : vector<256x4xbf16>, vector<4x4xbf16>, vector<256x4xf32> -> vector<256x4xf32>
    %64 = arith.addf %58, %63 : vector<256x4xf32>
    %c0_78 = arith.constant 0 : index
    %c2_79 = arith.constant 2 : index
    %c8_80 = arith.constant 8 : index
    %c0_81 = arith.constant 0 : index
    %65 = vector.load %arg12[%c0_78, %c2_79, %c8_80, %c0_81] : memref<1x18x32x4xbf16, #tpu.memory_space<vmem>>, vector<1x16x16x4xbf16>
    %66 = vector.shape_cast %65 : vector<1x16x16x4xbf16> to vector<256x4xbf16>
    %c7_82 = arith.constant 7 : index
    %c0_83 = arith.constant 0 : index
    %c0_84 = arith.constant 0 : index
    %67 = vector.load %arg5[%c7_82, %c0_83, %c0_84] : memref<9x4x4xbf16, #tpu.memory_space<vmem>>, vector<1x4x4xbf16>
    %68 = vector.shape_cast %67 : vector<1x4x4xbf16> to vector<4x4xbf16>
    %cst_85 = arith.constant dense<0.000000e+00> : vector<256x4xf32>
    %69 = tpu.matmul %66, %68, %cst_85 {dimension_numbers = #tpu.dot_dimension_numbers<[1], [0], [0], [1], [0, 0, 1, 1], [], []>} : vector<256x4xbf16>, vector<4x4xbf16>, vector<256x4xf32> -> vector<256x4xf32>
    %70 = arith.addf %64, %69 : vector<256x4xf32>
    %c0_86 = arith.constant 0 : index
    %c2_87 = arith.constant 2 : index
    %c9_88 = arith.constant 9 : index
    %c0_89 = arith.constant 0 : index
    %71 = vector.load %arg12[%c0_86, %c2_87, %c9_88, %c0_89] : memref<1x18x32x4xbf16, #tpu.memory_space<vmem>>, vector<1x16x16x4xbf16>
    %72 = vector.shape_cast %71 : vector<1x16x16x4xbf16> to vector<256x4xbf16>
    %c8_90 = arith.constant 8 : index
    %c0_91 = arith.constant 0 : index
    %c0_92 = arith.constant 0 : index
    %73 = vector.load %arg5[%c8_90, %c0_91, %c0_92] : memref<9x4x4xbf16, #tpu.memory_space<vmem>>, vector<1x4x4xbf16>
    %74 = vector.shape_cast %73 : vector<1x4x4xbf16> to vector<4x4xbf16>
    %cst_93 = arith.constant dense<0.000000e+00> : vector<256x4xf32>
    %75 = tpu.matmul %72, %74, %cst_93 {dimension_numbers = #tpu.dot_dimension_numbers<[1], [0], [0], [1], [0, 0, 1, 1], [], []>} : vector<256x4xbf16>, vector<4x4xbf16>, vector<256x4xf32> -> vector<256x4xf32>
    %76 = arith.addf %70, %75 : vector<256x4xf32>
    %c0_94 = arith.constant 0 : index
    %c0_95 = arith.constant 0 : index
    %77 = vector.load %arg6[%c0_94, %c0_95] : memref<1x4xf32, #tpu.memory_space<vmem>>, vector<1x4xf32>
    %78 = vector.broadcast %77 : vector<1x4xf32> to vector<256x4xf32>
    %79 = arith.mulf %76, %78 : vector<256x4xf32>
    %c0_96 = arith.constant 0 : index
    %c0_97 = arith.constant 0 : index
    %80 = vector.load %arg7[%c0_96, %c0_97] : memref<1x4xf32, #tpu.memory_space<vmem>>, vector<1x4xf32>
    %81 = vector.broadcast %80 : vector<1x4xf32> to vector<256x4xf32>
    %82 = arith.addf %79, %81 : vector<256x4xf32>
    %cst_98 = arith.constant 0.000000e+00 : f32
    %83 = vector.broadcast %cst_98 : f32 to vector<256x4xf32>
    %84 = arith.maximumf %82, %83 : vector<256x4xf32>
    %85 = arith.truncf %84 : vector<256x4xf32> to vector<256x4xbf16>
    %c0_99 = arith.constant 0 : index
    %c0_100 = arith.constant 0 : index
    %86 = vector.load %arg8[%c0_99, %c0_100] : memref<4x16xbf16, #tpu.memory_space<vmem>>, vector<4x16xbf16>
    %cst_101 = arith.constant dense<0.000000e+00> : vector<256x16xf32>
    %87 = tpu.matmul %85, %86, %cst_101 {dimension_numbers = #tpu.dot_dimension_numbers<[1], [0], [0], [1], [0, 0, 1, 1], [], []>} : vector<256x4xbf16>, vector<4x16xbf16>, vector<256x16xf32> -> vector<256x16xf32>
    %c0_102 = arith.constant 0 : index
    %c0_103 = arith.constant 0 : index
    %88 = vector.load %arg9[%c0_102, %c0_103] : memref<1x16xf32, #tpu.memory_space<vmem>>, vector<1x16xf32>
    %89 = vector.broadcast %88 : vector<1x16xf32> to vector<256x16xf32>
    %90 = arith.mulf %87, %89 : vector<256x16xf32>
    %c0_104 = arith.constant 0 : index
    %c0_105 = arith.constant 0 : index
    %91 = vector.load %arg10[%c0_104, %c0_105] : memref<1x16xf32, #tpu.memory_space<vmem>>, vector<1x16xf32>
    %92 = vector.broadcast %91 : vector<1x16xf32> to vector<256x16xf32>
    %93 = arith.addf %90, %92 : vector<256x16xf32>
    %c0_106 = arith.constant 0 : index
    %c0_107 = arith.constant 0 : index
    %c0_108 = arith.constant 0 : index
    %c0_109 = arith.constant 0 : index
    %94 = vector.load %arg1[%c0_106, %c0_107, %c0_108, %c0_109] : memref<1x16x16x16xf32, #tpu.memory_space<vmem>>, vector<1x16x16x16xf32>
    %95 = vector.shape_cast %94 : vector<1x16x16x16xf32> to vector<256x16xf32>
    %96 = arith.addf %93, %95 : vector<256x16xf32>
    %cst_110 = arith.constant 0.000000e+00 : f32
    %97 = vector.broadcast %cst_110 : f32 to vector<256x16xf32>
    %98 = arith.maximumf %96, %97 : vector<256x16xf32>
    %99 = vector.shape_cast %98 : vector<256x16xf32> to vector<1x16x16x16xf32>
    %c0_111 = arith.constant 0 : index
    %c0_112 = arith.constant 0 : index
    %c0_113 = arith.constant 0 : index
    %c0_114 = arith.constant 0 : index
    %100 = vector.load %arg11[%c0_111, %c0_112, %c0_113, %c0_114] : memref<1x16x16x16xf32, #tpu.memory_space<vmem>>, vector<1x16x16x16xf32>
    tpu.vector_store %arg11[%c0_111, %c0_112, %c0_113, %c0_114], %99 {strides = array<i32>} : memref<1x16x16x16xf32, #tpu.memory_space<vmem>>, vector<1x16x16x16xf32>,
    return
  }
  func.func @transform_0(%arg0: i32) -> (i32, i32, i32, i32) {
    %c0_i32 = arith.constant 0 : i32
    %c0_i32_0 = arith.constant 0 : i32
    %c0_i32_1 = arith.constant 0 : i32
    %c0_i32_2 = arith.constant 0 : i32
    return %arg0, %c0_i32, %c0_i32_0, %c0_i32_1 : i32, i32, i32, i32
  }
  func.func @transform_1(%arg0: i32) -> (i32, i32) {
    %c0_i32 = arith.constant 0 : i32
    %c0_i32_0 = arith.constant 0 : i32
    %c0_i32_1 = arith.constant 0 : i32
    return %c0_i32, %c0_i32_0 : i32, i32
  }
  func.func @transform_2(%arg0: i32) -> (i32, i32) {
    %c0_i32 = arith.constant 0 : i32
    %c0_i32_0 = arith.constant 0 : i32
    %c0_i32_1 = arith.constant 0 : i32
    return %c0_i32, %c0_i32_0 : i32, i32
  }
  func.func @transform_3(%arg0: i32) -> (i32, i32) {
    %c0_i32 = arith.constant 0 : i32
    %c0_i32_0 = arith.constant 0 : i32
    %c0_i32_1 = arith.constant 0 : i32
    return %c0_i32, %c0_i32_0 : i32, i32
  }
  func.func @transform_4(%arg0: i32) -> (i32, i32, i32) {
    %c0_i32 = arith.constant 0 : i32
    %c0_i32_0 = arith.constant 0 : i32
    %c0_i32_1 = arith.constant 0 : i32
    %c0_i32_2 = arith.constant 0 : i32
    return %c0_i32, %c0_i32_0, %c0_i32_1 : i32, i32, i32
  }
  func.func @transform_5(%arg0: i32) -> (i32, i32) {
    %c0_i32 = arith.constant 0 : i32
    %c0_i32_0 = arith.constant 0 : i32
    %c0_i32_1 = arith.constant 0 : i32
    return %c0_i32, %c0_i32_0 : i32, i32
  }
  func.func @transform_6(%arg0: i32) -> (i32, i32) {
    %c0_i32 = arith.constant 0 : i32
    %c0_i32_0 = arith.constant 0 : i32
    %c0_i32_1 = arith.constant 0 : i32
    return %c0_i32, %c0_i32_0 : i32, i32
  }
  func.func @transform_7(%arg0: i32) -> (i32, i32) {
    %c0_i32 = arith.constant 0 : i32
    %c0_i32_0 = arith.constant 0 : i32
    %c0_i32_1 = arith.constant 0 : i32
    return %c0_i32, %c0_i32_0 : i32, i32
  }
  func.func @transform_8(%arg0: i32) -> (i32, i32) {
    %c0_i32 = arith.constant 0 : i32
    %c0_i32_0 = arith.constant 0 : i32
    %c0_i32_1 = arith.constant 0 : i32
    return %c0_i32, %c0_i32_0 : i32, i32
  }
  func.func @transform_9(%arg0: i32) -> (i32, i32) {
    %c0_i32 = arith.constant 0 : i32
    %c0_i32_0 = arith.constant 0 : i32
    %c0_i32_1 = arith.constant 0 : i32
    return %c0_i32, %c0_i32_0 : i32, i32
  }
  func.func @transform_10(%arg0: i32) -> (i32, i32, i32, i32) {
    %c0_i32 = arith.constant 0 : i32
    %c0_i32_0 = arith.constant 0 : i32
    %c0_i32_1 = arith.constant 0 : i32
    %c0_i32_2 = arith.constant 0 : i32
    return %arg0, %c0_i32, %c0_i32_0, %c0_i32_1 : i32, i32, i32, i32
  }
}

</mosaic_0001>

<llo_original>
// kernel: tpu_custom_call.1
$region0: #{tpu_custom_call.1}
  #allocation0 [shape = 'u32[]', space=smem, size = 0x4, offset = 0x4, fixed_abs, tag = 'smem constant byte address 0x4 - core index']
  #allocation1 [shape = 'u32[144,128]{1,0:T(1,128)}', space=vmem, size = 0x12000, scoped, tag = 'internal scratch']
  #allocation2 [shape = 'bf16[1,18,32,4]{3,2,1,0:T(8,128)(2,1)}', space=vmem, size = 0x24000, scoped, tag = 'scratch operand']
  %s0 = inlined_call_operand.hbm [shape: f32[2,16,16,16], index: 0, kind: input, shape index: {}]
  %s1 = inlined_call_operand.vmem [shape: bf16[16,4], index: 1, kind: input, shape index: {}]
  %s2 = inlined_call_operand.vmem [shape: f32[1,4], index: 2, kind: input, shape index: {}]
  %s3 = inlined_call_operand.vmem [shape: f32[1,4], index: 3, kind: input, shape index: {}]
  %s4 = inlined_call_operand.vmem [shape: bf16[9,4,4], index: 4, kind: input, shape index: {}]
  %s5 = inlined_call_operand.vmem [shape: f32[1,4], index: 5, kind: input, shape index: {}]
  %s6 = inlined_call_operand.vmem [shape: f32[1,4], index: 6, kind: input, shape index: {}]
  %s7 = inlined_call_operand.vmem [shape: bf16[4,16], index: 7, kind: input, shape index: {}]
  %s8 = inlined_call_operand.vmem [shape: f32[1,16], index: 8, kind: input, shape index: {}]
  %s9 = inlined_call_operand.vmem [shape: f32[1,16], index: 9, kind: input, shape index: {}]
  %s10 = inlined_call_operand.hbm [shape: f32[2,16,16,16], index: 10, kind: output, shape index: {}]
  %s11 = sld [smem:[#allocation0]]
  $region77: #{tpu_custom_call.1} parent=0
    _
  %s13 = ssub.s32 1, %s11
  %s14 = scalar_select 0, %s13, %s11
  $region1: #{tpu_custom_call.1} parent=0
    #allocation3 [shape = 'u8[262144]{0}', space=vmem, size = 0x40000, scoped, tag = 'input window, operand 0']
    #allocation4 [shape = 's32[2]{0}', space=sflag, size = 0x8, scoped, tag = 'scoped memory for tpu_custom_call.1']
    #allocation5 [shape = 's32[2]{0}', space=sflag, size = 0x8, scoped, tag = 'scoped memory for tpu_custom_call.1']
    #allocation6 [shape = 'u8[262144]{0}', space=vmem, size = 0x40000, scoped, tag = 'output window, operand 0']
    %15 = vsyncpa [#allocation4], 0
    %s16 = scalar_lea.sflag [#allocation4], 1
    %17 = vsyncpa %s16, 0
    %18 = vsyncpa [#allocation5], 0
    %s19 = scalar_lea.sflag [#allocation5], 1
    %20 = vsyncpa %s19, 0
    loop: start=0, step=1, limit=4
    $region2: #{tpu_custom_call.1} parent=1 // loop_pre_header
      _
    $region3: #{tpu_custom_call.1} parent=1 // loop_header
      %s22 = sphi 0, %s26
      %p23 = scmp.ge.s32.totalorder %s22, 4
      %s32 = sphi 0, %s34
      %s35 = sphi 0, %s32
      %s36 = sphi 0, %s35
      %s52 = sphi 0, %s36
      %s56 = sphi 0, %s56
      %s58 = sphi 0, %s56
      %s59 = sphi 0, %s58
      %s73 = sphi 0, %s59
      %s77 = sphi 0, %s77
      %s79 = sphi 0, %s77
      %s80 = sphi 0, %s79
      %s94 = sphi 0, %s80
      %s98 = sphi 0, %s98
      %s100 = sphi 0, %s98
      %s101 = sphi 0, %s100
      %s115 = sphi 0, %s101
      %s119 = sphi 0, %s119
      %s121 = sphi 0, %s119
      %s122 = sphi 0, %s121
      %s136 = sphi 0, %s122
      %s140 = sphi 0, %s140
      %s142 = sphi 0, %s140
      %s143 = sphi 0, %s142
      %s157 = sphi 0, %s143
      %s161 = sphi 0, %s161
      %s163 = sphi 0, %s161
      %s164 = sphi 0, %s163
      %s178 = sphi 0, %s164
      %s182 = sphi 0, %s182
      %s184 = sphi 0, %s182
      %s185 = sphi 0, %s184
      %s199 = sphi 0, %s185
      %s203 = sphi 0, %s203
      %s205 = sphi 0, %s203
      %s206 = sphi 0, %s205
      %s220 = sphi 0, %s206
      %s224 = sphi 0, %s224
      %s226 = sphi 0, %s224
      %s227 = sphi 0, %s226
      %s241 = sphi 0, %s227
      %s247 = sphi 0, %s249
      %s250 = sphi 0, %s247
      %s251 = sphi 0, %s250
      %s267 = sphi 0, %s251
    $region4: #{tpu_custom_call.1} parent=1 // loop_header_branch
      %25 = sbr.rel (%p23) target = $region8
    $region5: #{tpu_custom_call.1} parent=1 // loop_body
      %s27 = ssub.s32 %s22, 1
      %s28 = ssub.s32 %s22, 2
      %s29 = sadd.s32 %s22, 1
      %s30 = ssub.s32 %s22, %s29
      %p31 = scmp.eq.s32.totalorder %s30, 0
      %s33 = sadd.s32 %s32, 1
      %s34 = scalar_select %p31, %s32, %s33
      %p37 = pneg %p31
      %p38 = scmp.eq.s32.totalorder %s22, 1
      %p39 = por %p37, %p38
      %p40 = scmp.ne.s32.totalorder %s32, %s35
      %p41 = scmp.eq.s32.totalorder %s22, 0
      %p42 = por %p40, %p41
      %p43 = scmp.ne.s32.totalorder %s32, %s35
      %p44 = scmp.eq.s32.totalorder %s27, 1
      %p45 = por %p43, %p44
      %p46 = scmp.ne.s32.totalorder %s35, %s36
      %p47 = scmp.eq.s32.totalorder %s27, 0
      %p48 = por %p46, %p47
      %p49 = scmp.ne.s32.totalorder %s35, %s36
      %p50 = scmp.eq.s32.totalorder %s28, 1
      %p51 = por %p49, %p50
      %p53 = scmp.ne.s32.totalorder %s36, %s52
      %p54 = scmp.eq.s32.totalorder %s28, 0
      %p55 = por %p53, %p54
      %s57 = sadd.s32 %s56, 1
      %p60 = scmp.eq.s32.totalorder %s22, 1
      %p61 = scmp.ne.s32.totalorder %s56, %s58
      %p62 = scmp.eq.s32.totalorder %s22, 0
      %p63 = por %p61, %p62
      %p64 = scmp.ne.s32.totalorder %s56, %s58
      %p65 = scmp.eq.s32.totalorder %s27, 1
      %p66 = por %p64, %p65
      %p67 = scmp.ne.s32.totalorder %s58, %s59
      %p68 = scmp.eq.s32.totalorder %s27, 0
      %p69 = por %p67, %p68
      %p70 = scmp.ne.s32.totalorder %s58, %s59
      %p71 = scmp.eq.s32.totalorder %s28, 1
      %p72 = por %p70, %p71
      %p74 = scmp.ne.s32.totalorder %s59, %s73
      %p75 = scmp.eq.s32.totalorder %s28, 0
      %p76 = por %p74, %p75
      %s78 = sadd.s32 %s77, 1
      %p81 = scmp.eq.s32.totalorder %s22, 1
      %p82 = scmp.ne.s32.totalorder %s77, %s79
      %p83 = scmp.eq.s32.totalorder %s22, 0
      %p84 = por %p82, %p83
      %p85 = scmp.ne.s32.totalorder %s77, %s79
      %p86 = scmp.eq.s32.totalorder %s27, 1
      %p87 = por %p85, %p86
      %p88 = scmp.ne.s32.totalorder %s79, %s80
      %p89 = scmp.eq.s32.totalorder %s27, 0
      %p90 = por %p88, %p89
      %p91 = scmp.ne.s32.totalorder %s79, %s80
      %p92 = scmp.eq.s32.totalorder %s28, 1
      %p93 = por %p91, %p92
      %p95 = scmp.ne.s32.totalorder %s80, %s94
      %p96 = scmp.eq.s32.totalorder %s28, 0
      %p97 = por %p95, %p96
      %s99 = sadd.s32 %s98, 1
      %p102 = scmp.eq.s32.totalorder %s22, 1
      %p103 = scmp.ne.s32.totalorder %s98, %s100
      %p104 = scmp.eq.s32.totalorder %s22, 0
      %p105 = por %p103, %p104
      %p106 = scmp.ne.s32.totalorder %s98, %s100
      %p107 = scmp.eq.s32.totalorder %s27, 1
      %p108 = por %p106, %p107
      %p109 = scmp.ne.s32.totalorder %s100, %s101
      %p110 = scmp.eq.s32.totalorder %s27, 0
      %p111 = por %p109, %p110
      %p112 = scmp.ne.s32.totalorder %s100, %s101
      %p113 = scmp.eq.s32.totalorder %s28, 1
      %p114 = por %p112, %p113
      %p116 = scmp.ne.s32.totalorder %s101, %s115
      %p117 = scmp.eq.s32.totalorder %s28, 0
      %p118 = por %p116, %p117
      %s120 = sadd.s32 %s119, 1
      %p123 = scmp.eq.s32.totalorder %s22, 1
      %p124 = scmp.ne.s32.totalorder %s119, %s121
      %p125 = scmp.eq.s32.totalorder %s22, 0
      %p126 = por %p124, %p125
      %p127 = scmp.ne.s32.totalorder %s119, %s121
      %p128 = scmp.eq.s32.totalorder %s27, 1
      %p129 = por %p127, %p128
      %p130 = scmp.ne.s32.totalorder %s121, %s122
      %p131 = scmp.eq.s32.totalorder %s27, 0
      %p132 = por %p130, %p131
      %p133 = scmp.ne.s32.totalorder %s121, %s122
      %p134 = scmp.eq.s32.totalorder %s28, 1
      %p135 = por %p133, %p134
      %p137 = scmp.ne.s32.totalorder %s122, %s136
      %p138 = scmp.eq.s32.totalorder %s28, 0
      %p139 = por %p137, %p138
      %s141 = sadd.s32 %s140, 1
      %p144 = scmp.eq.s32.totalorder %s22, 1
      %p145 = scmp.ne.s32.totalorder %s140, %s142
      %p146 = scmp.eq.s32.totalorder %s22, 0
      %p147 = por %p145, %p146
      %p148 = scmp.ne.s32.totalorder %s140, %s142
      %p149 = scmp.eq.s32.totalorder %s27, 1
      %p150 = por %p148, %p149
      %p151 = scmp.ne.s32.totalorder %s142, %s143
      %p152 = scmp.eq.s32.totalorder %s27, 0
      %p153 = por %p151, %p152
      %p154 = scmp.ne.s32.totalorder %s142, %s143
      %p155 = scmp.eq.s32.totalorder %s28, 1
      %p156 = por %p154, %p155
      %p158 = scmp.ne.s32.totalorder %s143, %s157
      %p159 = scmp.eq.s32.totalorder %s28, 0
      %p160 = por %p158, %p159
      %s162 = sadd.s32 %s161, 1
      %p165 = scmp.eq.s32.totalorder %s22, 1
      %p166 = scmp.ne.s32.totalorder %s161, %s163
      %p167 = scmp.eq.s32.totalorder %s22, 0
      %p168 = por %p166, %p167
      %p169 = scmp.ne.s32.totalorder %s161, %s163
      %p170 = scmp.eq.s32.totalorder %s27, 1
      %p171 = por %p169, %p170
      %p172 = scmp.ne.s32.totalorder %s163, %s164
      %p173 = scmp.eq.s32.totalorder %s27, 0
      %p174 = por %p172, %p173
      %p175 = scmp.ne.s32.totalorder %s163, %s164
      %p176 = scmp.eq.s32.totalorder %s28, 1
      %p177 = por %p175, %p176
      %p179 = scmp.ne.s32.totalorder %s164, %s178
      %p180 = scmp.eq.s32.totalorder %s28, 0
      %p181 = por %p179, %p180
      %s183 = sadd.s32 %s182, 1
      %p186 = scmp.eq.s32.totalorder %s22, 1
      %p187 = scmp.ne.s32.totalorder %s182, %s184
      %p188 = scmp.eq.s32.totalorder %s22, 0
      %p189 = por %p187, %p188
      %p190 = scmp.ne.s32.totalorder %s182, %s184
      %p191 = scmp.eq.s32.totalorder %s27, 1
      %p192 = por %p190, %p191
      %p193 = scmp.ne.s32.totalorder %s184, %s185
      %p194 = scmp.eq.s32.totalorder %s27, 0
      %p195 = por %p193, %p194
      %p196 = scmp.ne.s32.totalorder %s184, %s185
      %p197 = scmp.eq.s32.totalorder %s28, 1
      %p198 = por %p196, %p197
      %p200 = scmp.ne.s32.totalorder %s185, %s199
      %p201 = scmp.eq.s32.totalorder %s28, 0
      %p202 = por %p200, %p201
      %s204 = sadd.s32 %s203, 1
      %p207 = scmp.eq.s32.totalorder %s22, 1
      %p208 = scmp.ne.s32.totalorder %s203, %s205
      %p209 = scmp.eq.s32.totalorder %s22, 0
      %p210 = por %p208, %p209
      %p211 = scmp.ne.s32.totalorder %s203, %s205
      %p212 = scmp.eq.s32.totalorder %s27, 1
      %p213 = por %p211, %p212
      %p214 = scmp.ne.s32.totalorder %s205, %s206
      %p215 = scmp.eq.s32.totalorder %s27, 0
      %p216 = por %p214, %p215
      %p217 = scmp.ne.s32.totalorder %s205, %s206
      %p218 = scmp.eq.s32.totalorder %s28, 1
      %p219 = por %p217, %p218
      %p221 = scmp.ne.s32.totalorder %s206, %s220
      %p222 = scmp.eq.s32.totalorder %s28, 0
      %p223 = por %p221, %p222
      %s225 = sadd.s32 %s224, 1
      %p228 = scmp.eq.s32.totalorder %s22, 1
      %p229 = scmp.ne.s32.totalorder %s224, %s226
      %p230 = scmp.eq.s32.totalorder %s22, 0
      %p231 = por %p229, %p230
      %p232 = scmp.ne.s32.totalorder %s224, %s226
      %p233 = scmp.eq.s32.totalorder %s27, 1
      %p234 = por %p232, %p233
      %p235 = scmp.ne.s32.totalorder %s226, %s227
      %p236 = scmp.eq.s32.totalorder %s27, 0
      %p237 = por %p235, %p236
      %p238 = scmp.ne.s32.totalorder %s226, %s227
      %p239 = scmp.eq.s32.totalorder %s28, 1
      %p240 = por %p238, %p239
      %p242 = scmp.ne.s32.totalorder %s227, %s241
      %p243 = scmp.eq.s32.totalorder %s28, 0
      %p244 = por %p242, %p243
      %s245 = ssub.s32 %s22, %s29
      %p246 = scmp.eq.s32.totalorder %s245, 0
      %s248 = sadd.s32 %s247, 1
      %s249 = scalar_select %p246, %s247, %s248
      %p252 = pneg %p246
      %p253 = scmp.eq.s32.totalorder %s22, 1
      %p254 = por %p252, %p253
      %p255 = scmp.ne.s32.totalorder %s247, %s250
      %p256 = scmp.eq.s32.totalorder %s22, 0
      %p257 = por %p255, %p256
      %p258 = scmp.ne.s32.totalorder %s247, %s250
      %p259 = scmp.eq.s32.totalorder %s27, 1
      %p260 = por %p258, %p259
      %p261 = scmp.ne.s32.totalorder %s250, %s251
      %p262 = scmp.eq.s32.totalorder %s27, 0
      %p263 = por %p261, %p262
      %p264 = scmp.ne.s32.totalorder %s250, %s251
      %p265 = scmp.eq.s32.totalorder %s28, 1
      %p266 = por %p264, %p265
      %p268 = scmp.ne.s32.totalorder %s251, %s267
      %p269 = scmp.eq.s32.totalorder %s28, 0
      %p270 = por %p268, %p269
      %p271 = scmp.le.s32.totalorder 1, %s22
      %p272 = scmp.lt.s32.totalorder %s22, 3
      %p273 = pnand %p271, %p272
      %p274 = pneg %p273
      // Predicated region
      $region9: #{tpu_custom_call.1} parent=5 // pred_check
        _
      $region10: #{tpu_custom_call.1} parent=5 // pred_check_branch
        %276 = sbr.rel (%p273) target = $region12
      $region11: #{tpu_custom_call.1} parent=5 // pred_region
        %s277 = ssub.s32 %s22, 1
        // Predicated region
        $region13: #{tpu_custom_call.1} parent=11 // pred_check
          %p278 = pneg %p69
        $region14: #{tpu_custom_call.1} parent=11 // pred_check_branch
          %280 = sbr.rel (%p278) target = $region16
        $region15: #{tpu_custom_call.1} parent=11 // pred_region
          _
        $region16: #{tpu_custom_call.1} parent=11 // pred_fallthru
          _
        // Predicated region
        $region17: #{tpu_custom_call.1} parent=11 // pred_check
          %p281 = pneg %p90
        $region18: #{tpu_custom_call.1} parent=11 // pred_check_branch
          %283 = sbr.rel (%p281) target = $region20
        $region19: #{tpu_custom_call.1} parent=11 // pred_region
          _
        $region20: #{tpu_custom_call.1} parent=11 // pred_fallthru
          _
        // Predicated region
        $region21: #{tpu_custom_call.1} parent=11 // pred_check
          %p284 = pneg %p111
        $region22: #{tpu_custom_call.1} parent=11 // pred_check_branch
          %286 = sbr.rel (%p284) target = $region24
        $region23: #{tpu_custom_call.1} parent=11 // pred_region
          _
        $region24: #{tpu_custom_call.1} parent=11 // pred_fallthru
          _
        // Predicated region
        $region25: #{tpu_custom_call.1} parent=11 // pred_check
          %p287 = pneg %p132
        $region26: #{tpu_custom_call.1} parent=11 // pred_check_branch
          %289 = sbr.rel (%p287) target = $region28
        $region27: #{tpu_custom_call.1} parent=11 // pred_region
          _
        $region28: #{tpu_custom_call.1} parent=11 // pred_fallthru
          _
        // Predicated region
        $region29: #{tpu_custom_call.1} parent=11 // pred_check
          %p290 = pneg %p153
        $region30: #{tpu_custom_call.1} parent=11 // pred_check_branch
          %292 = sbr.rel (%p290) target = $region32
        $region31: #{tpu_custom_call.1} parent=11 // pred_region
          _
        $region32: #{tpu_custom_call.1} parent=11 // pred_fallthru
          _
        // Predicated region
        $region33: #{tpu_custom_call.1} parent=11 // pred_check
          %p293 = pneg %p174
        $region34: #{tpu_custom_call.1} parent=11 // pred_check_branch
          %295 = sbr.rel (%p293) target = $region36
        $region35: #{tpu_custom_call.1} parent=11 // pred_region
          _
        $region36: #{tpu_custom_call.1} parent=11 // pred_fallthru
          _
        // Predicated region
        $region37: #{tpu_custom_call.1} parent=11 // pred_check
          %p296 = pneg %p195
        $region38: #{tpu_custom_call.1} parent=11 // pred_check_branch
          %298 = sbr.rel (%p296) target = $region40
        $region39: #{tpu_custom_call.1} parent=11 // pred_region
          _
        $region40: #{tpu_custom_call.1} parent=11 // pred_fallthru
          _
        // Predicated region
        $region41: #{tpu_custom_call.1} parent=11 // pred_check
          %p299 = pneg %p216
        $region42: #{tpu_custom_call.1} parent=11 // pred_check_branch
          %301 = sbr.rel (%p299) target = $region44
        $region43: #{tpu_custom_call.1} parent=11 // pred_region
          _
        $region44: #{tpu_custom_call.1} parent=11 // pred_fallthru
          _
        // Predicated region
        $region45: #{tpu_custom_call.1} parent=11 // pred_check
          %p302 = pneg %p237
        $region46: #{tpu_custom_call.1} parent=11 // pred_check_branch
          %304 = sbr.rel (%p302) target = $region48
        $region47: #{tpu_custom_call.1} parent=11 // pred_region
          _
        $region48: #{tpu_custom_call.1} parent=11 // pred_fallthru
          _
      $region12: #{tpu_custom_call.1} parent=5 // pred_fallthru
        _
      %p305 = scmp.lt.s32.totalorder %s22, 2
      // Predicated region
      $region49: #{tpu_custom_call.1} parent=5 // pred_check
        %p306 = pneg %p305
      $region50: #{tpu_custom_call.1} parent=5 // pred_check_branch
        %308 = sbr.rel (%p306) target = $region52
      $region51: #{tpu_custom_call.1} parent=5 // pred_region
        // Predicated region
        $region53: #{tpu_custom_call.1} parent=51 // pred_check
          %p309 = pneg %p42
        $region54: #{tpu_custom_call.1} parent=51 // pred_check_branch
          %311 = sbr.rel (%p309) target = $region56
        $region55: #{tpu_custom_call.1} parent=51 // pred_region
          %s312 = sand.u32 %s32, 1
          %s313 = scalar_lea.sflag [#allocation4], %s312
          %s314 = sand.u32 %s32, 1
          %s315 = smul.addr %s314, 256
          %s316 = scalar_lea.vmem [#allocation3], %s315
          %s318 = ssub.s32 4096, 4096
          %319 = vsyncadd %s313, %s318
          %s320 = smul.addr %s22, 32
          %s321 = smul.addr %s320, 128
          %s322 = scalar_lea.hbm %s0, %s321
          %s323 = sshll.u32 %s316, 4
          %s324 = int_to_ptr.vmem [resolvable:$true] %s323
          %329 = dma.hbm_to_vmem [thread:$0]  %s322, 4096, %s324, %s313, 128, 128, 8
        $region56: #{tpu_custom_call.1} parent=51 // pred_fallthru
          _
      $region52: #{tpu_custom_call.1} parent=5 // pred_fallthru
        _
      %p330 = scmp.le.s32.totalorder 1, %s22
      %p331 = scmp.lt.s32.totalorder %s22, 3
      %p332 = pnand %p330, %p331
      %p333 = pneg %p332
      // Predicated region
      $region57: #{tpu_custom_call.1} parent=5 // pred_check
        _
      $region58: #{tpu_custom_call.1} parent=5 // pred_check_branch
        %335 = sbr.rel (%p332) target = $region60
      $region59: #{tpu_custom_call.1} parent=5 // pred_region
        %s336 = ssub.s32 %s22, 1
        %s337 = sand.u32 %s35, 1
        %s338 = scalar_lea.sflag [#allocation4], %s337
        %s339 = sand.u32 %s35, 1
        %s340 = smul.addr %s339, 256
        %s341 = scalar_lea.vmem [#allocation3], %s340
        // Predicated region
        $region61: #{tpu_custom_call.1} parent=59 // pred_check
          %p342 = pneg %p48
        $region62: #{tpu_custom_call.1} parent=59 // pred_check_branch
          %344 = sbr.rel (%p342) target = $region64
        $region63: #{tpu_custom_call.1} parent=59 // pred_region
          %345 = dma.done %s338, 4096
        $region64: #{tpu_custom_call.1} parent=59 // pred_fallthru
          _
        %s346 = sand.u32 %s35, 1
        %s347 = scalar_lea.sflag [#allocation4], %s346
        %s348 = sand.u32 %s35, 1
        %s349 = smul.addr %s348, 256
        %s350 = scalar_lea.vmem [#allocation3], %s349
        %p351 = pneg %p48
        %p352 = pneg %p45
        %p353 = pneg %p69
        %p354 = pneg %p66
        %p355 = pneg %p90
        %p356 = pneg %p87
        %p357 = pneg %p111
        %p358 = pneg %p108
        %p359 = pneg %p132
        %p360 = pneg %p129
        %p361 = pneg %p153
        %p362 = pneg %p150
        %p363 = pneg %p174
        %p364 = pneg %p171
        %p365 = pneg %p195
        %p366 = pneg %p192
        %p367 = pneg %p216
        %p368 = pneg %p213
        %p369 = pneg %p237
        %p370 = pneg %p234
        %p371 = pneg %p263
        %p372 = pneg %p260
        %s373 = sand.u32 %s250, 1
        %s374 = scalar_lea.sflag [#allocation5], %s373
        %s375 = sand.u32 %s250, 1
        %s376 = smul.addr %s375, 256
        %s377 = scalar_lea.vmem [#allocation6], %s376
        %v379 = vld [vmem:[%s341] sm:$0xff]
        %v380 = vld [vmem:[%s341 + $0x8] sm:$0xff]
        %v381 = vld [vmem:[%s341 + $0x10] sm:$0xff]
        %v382 = vld [vmem:[%s341 + $0x18] sm:$0xff]
        %v383 = vld [vmem:[%s341 + $0x20] sm:$0xff]
        %v384 = vld [vmem:[%s341 + $0x28] sm:$0xff]
        %v385 = vld [vmem:[%s341 + $0x30] sm:$0xff]
        %v386 = vld [vmem:[%s341 + $0x38] sm:$0xff]
        %v387 = vld [vmem:[%s341 + $0x40] sm:$0xff]
        %v388 = vld [vmem:[%s341 + $0x48] sm:$0xff]
        %v389 = vld [vmem:[%s341 + $0x50] sm:$0xff]
        %v390 = vld [vmem:[%s341 + $0x58] sm:$0xff]
        %v391 = vld [vmem:[%s341 + $0x60] sm:$0xff]
        %v392 = vld [vmem:[%s341 + $0x68] sm:$0xff]
        %v393 = vld [vmem:[%s341 + $0x70] sm:$0xff]
        %v394 = vld [vmem:[%s341 + $0x78] sm:$0xff]
        %v395 = vld [vmem:[%s341 + $0x80] sm:$0xff]
        %v396 = vld [vmem:[%s341 + $0x88] sm:$0xff]
        %v397 = vld [vmem:[%s341 + $0x90] sm:$0xff]
        %v398 = vld [vmem:[%s341 + $0x98] sm:$0xff]
        %v399 = vld [vmem:[%s341 + $0xa0] sm:$0xff]
        %v400 = vld [vmem:[%s341 + $0xa8] sm:$0xff]
        %v401 = vld [vmem:[%s341 + $0xb0] sm:$0xff]
        %v402 = vld [vmem:[%s341 + $0xb8] sm:$0xff]
        %v403 = vld [vmem:[%s341 + $0xc0] sm:$0xff]
        %v404 = vld [vmem:[%s341 + $0xc8] sm:$0xff]
        %v405 = vld [vmem:[%s341 + $0xd0] sm:$0xff]
        %v406 = vld [vmem:[%s341 + $0xd8] sm:$0xff]
        %v407 = vld [vmem:[%s341 + $0xe0] sm:$0xff]
        %v408 = vld [vmem:[%s341 + $0xe8] sm:$0xff]
        %v409 = vld [vmem:[%s341 + $0xf0] sm:$0xff]
        %v410 = vld [vmem:[%s341 + $0xf8] sm:$0xff]
        %v411 = vpack.c.bf16 %v380, %v379
        %v412 = vpack.c.bf16 %v382, %v381
        %v413 = vpack.c.bf16 %v384, %v383
        %v414 = vpack.c.bf16 %v386, %v385
        %v415 = vpack.c.bf16 %v388, %v387
        %v416 = vpack.c.bf16 %v390, %v389
        %v417 = vpack.c.bf16 %v392, %v391
        %v418 = vpack.c.bf16 %v394, %v393
        %v419 = vpack.c.bf16 %v396, %v395
        %v420 = vpack.c.bf16 %v398, %v397
        %v421 = vpack.c.bf16 %v400, %v399
        %v422 = vpack.c.bf16 %v402, %v401
        %v423 = vpack.c.bf16 %v404, %v403
        %v424 = vpack.c.bf16 %v406, %v405
        %v425 = vpack.c.bf16 %v408, %v407
        %v426 = vpack.c.bf16 %v410, %v409
        %v427 = vld [vmem:[%s1] sm:$0xf]
        %v428 = vld [vmem:[%s1 + $0x4] sm:$0xf]
        %v431 = vunpack.c.l.b16 %v427
        %v432 = vunpack.c.l.b16 %v428
        %v433 = vpack.c.b16 %v432, %v431
        %vm435 = vcmask 130048
        %v437 = vsel %vm435, %v411, 0
        %v440 = vsel %vm435, %v412, 0
        %v443 = vsel %vm435, %v413, 0
        %v446 = vsel %vm435, %v414, 0
        %v449 = vsel %vm435, %v415, 0
        %v452 = vsel %vm435, %v416, 0
        %v455 = vsel %vm435, %v417, 0
        %v458 = vsel %vm435, %v418, 0
        %v461 = vsel %vm435, %v419, 0
        %v464 = vsel %vm435, %v420, 0
        %v467 = vsel %vm435, %v421, 0
        %v470 = vsel %vm435, %v422, 0
        %v473 = vsel %vm435, %v423, 0
        %v476 = vsel %vm435, %v424, 0
        %v479 = vsel %vm435, %v425, 0
        %v482 = vsel %vm435, %v426, 0
        %484 = vmatprep.subr.bf16.mxu0 0
        %485 = vmatpush1.bf16.msra.mxu0 0
        %486 = vmatprep.subr.bf16.mxu0 0
        %487 = vmatpush1.bf16.msra.mxu0 0
        %488 = vmatprep.subr.bf16.mxu0 0
        %489 = vmatpush1.bf16.msra.mxu0 0
        %490 = vmatprep.subr.bf16.mxu0 0
        %491 = vmatpush1.bf16.msra.mxu0 0
        %492 = vmatprep.subr.bf16.mxu0 0
        %493 = vmatpush1.bf16.msra.mxu0 0
        %494 = vmatprep.subr.bf16.mxu0 0
        %495 = vmatpush1.bf16.msra.mxu0 0
        %496 = vmatprep.subr.bf16.mxu0 0
        %497 = vmatpush1.bf16.msra.mxu0 0
        %498 = vmatprep.subr.bf16.mxu0 0
        %499 = vmatpush1.bf16.msra.mxu0 %v433
        %500 = vmatprep.subr.bf16.mxu0 0
        %501 = vmatpush2.bf16.msra.mxu0 0
        %502 = vmatprep.subr.bf16.mxu0 0
        %503 = vmatpush2.bf16.msra.mxu0 0
        %504 = vmatprep.subr.bf16.mxu0 0
        %505 = vmatpush2.bf16.msra.mxu0 0
        %506 = vmatprep.subr.bf16.mxu0 0
        %507 = vmatpush2.bf16.msra.mxu0 0
        %508 = vmatprep.subr.bf16.mxu0 0
        %509 = vmatpush2.bf16.msra.mxu0 0
        %510 = vmatprep.subr.bf16.mxu0 0
        %511 = vmatpush2.bf16.msra.mxu0 0
        %512 = vmatprep.subr.bf16.mxu0 0
        %513 = vmatpush2.bf16.msra.mxu0 0
        %514 = vmatprep.subr.bf16.mxu0 0
        %515 = vmatpush2.bf16.msra.mxu0 0
        %516 = vmatprep.mubr.bf16.mxu0 0
        %517 = vmatmul.mubr.bf16.gmra.mxu0 %v437
        %v518 = vpop.f32.mrf.mxu0
        %v519 = vadd.f32 0.0, %v518
        %v520 = vpop.f32.mrf.mxu0
        %v521 = vpop.f32.mrf.mxu0
        %v522 = vadd.f32 0.0, %v521
        %v523 = vpop.f32.mrf.mxu0
        %524 = vmatprep.mubr.bf16.mxu0 0
        %525 = vmatmul.mubr.bf16.gmra.mxu0 %v440
        %v526 = vpop.f32.mrf.mxu0
        %v527 = vadd.f32 0.0, %v526
        %v528 = vpop.f32.mrf.mxu0
        %v529 = vpop.f32.mrf.mxu0
        %v530 = vadd.f32 0.0, %v529
        %v531 = vpop.f32.mrf.mxu0
        %532 = vmatprep.mubr.bf16.mxu0 0
        %533 = vmatmul.mubr.bf16.gmra.mxu0 %v443
        %v534 = vpop.f32.mrf.mxu0
        %v535 = vadd.f32 0.0, %v534
        %v536 = vpop.f32.mrf.mxu0
        %v537 = vpop.f32.mrf.mxu0
        %v538 = vadd.f32 0.0, %v537
        %v539 = vpop.f32.mrf.mxu0
        %540 = vmatprep.mubr.bf16.mxu0 0
        %541 = vmatmul.mubr.bf16.gmra.mxu0 %v446
        %v542 = vpop.f32.mrf.mxu0
        %v543 = vadd.f32 0.0, %v542
        %v544 = vpop.f32.mrf.mxu0
        %v545 = vpop.f32.mrf.mxu0
        %v546 = vadd.f32 0.0, %v545
        %v547 = vpop.f32.mrf.mxu0
        %548 = vmatprep.mubr.bf16.mxu0 0
        %549 = vmatmul.mubr.bf16.gmra.mxu0 %v449
        %v550 = vpop.f32.mrf.mxu0
        %v551 = vadd.f32 0.0, %v550
        %v552 = vpop.f32.mrf.mxu0
        %v553 = vpop.f32.mrf.mxu0
        %v554 = vadd.f32 0.0, %v553
        %v555 = vpop.f32.mrf.mxu0
        %556 = vmatprep.mubr.bf16.mxu0 0
        %557 = vmatmul.mubr.bf16.gmra.mxu0 %v452
        %v558 = vpop.f32.mrf.mxu0
        %v559 = vadd.f32 0.0, %v558
        %v560 = vpop.f32.mrf.mxu0
        %v561 = vpop.f32.mrf.mxu0
        %v562 = vadd.f32 0.0, %v561
        %v563 = vpop.f32.mrf.mxu0
        %564 = vmatprep.mubr.bf16.mxu0 0
        %565 = vmatmul.mubr.bf16.gmra.mxu0 %v455
        %v566 = vpop.f32.mrf.mxu0
        %v567 = vadd.f32 0.0, %v566
        %v568 = vpop.f32.mrf.mxu0
        %v569 = vpop.f32.mrf.mxu0
        %v570 = vadd.f32 0.0, %v569
        %v571 = vpop.f32.mrf.mxu0
        %572 = vmatprep.mubr.bf16.mxu0 0
        %573 = vmatmul.mubr.bf16.gmra.mxu0 %v458
        %v574 = vpop.f32.mrf.mxu0
        %v575 = vadd.f32 0.0, %v574
        %v576 = vpop.f32.mrf.mxu0
        %v577 = vpop.f32.mrf.mxu0
        %v578 = vadd.f32 0.0, %v577
        %v579 = vpop.f32.mrf.mxu0
        %580 = vmatprep.mubr.bf16.mxu0 0
        %581 = vmatmul.mubr.bf16.gmra.mxu0 %v461
        %v582 = vpop.f32.mrf.mxu0
        %v583 = vadd.f32 0.0, %v582
        %v584 = vpop.f32.mrf.mxu0
        %v585 = vpop.f32.mrf.mxu0
        %v586 = vadd.f32 0.0, %v585
        %v587 = vpop.f32.mrf.mxu0
        %588 = vmatprep.mubr.bf16.mxu0 0
        %589 = vmatmul.mubr.bf16.gmra.mxu0 %v464
        %v590 = vpop.f32.mrf.mxu0
        %v591 = vadd.f32 0.0, %v590
        %v592 = vpop.f32.mrf.mxu0
        %v593 = vpop.f32.mrf.mxu0
        %v594 = vadd.f32 0.0, %v593
        %v595 = vpop.f32.mrf.mxu0
        %596 = vmatprep.mubr.bf16.mxu0 0
        %597 = vmatmul.mubr.bf16.gmra.mxu0 %v467
        %v598 = vpop.f32.mrf.mxu0
        %v599 = vadd.f32 0.0, %v598
        %v600 = vpop.f32.mrf.mxu0
        %v601 = vpop.f32.mrf.mxu0
        %v602 = vadd.f32 0.0, %v601
        %v603 = vpop.f32.mrf.mxu0
        %604 = vmatprep.mubr.bf16.mxu0 0
        %605 = vmatmul.mubr.bf16.gmra.mxu0 %v470
        %v606 = vpop.f32.mrf.mxu0
        %v607 = vadd.f32 0.0, %v606
        %v608 = vpop.f32.mrf.mxu0
        %v609 = vpop.f32.mrf.mxu0
        %v610 = vadd.f32 0.0, %v609
        %v611 = vpop.f32.mrf.mxu0
        %612 = vmatprep.mubr.bf16.mxu0 0
        %613 = vmatmul.mubr.bf16.gmra.mxu0 %v473
        %v614 = vpop.f32.mrf.mxu0
        %v615 = vadd.f32 0.0, %v614
        %v616 = vpop.f32.mrf.mxu0
        %v617 = vpop.f32.mrf.mxu0
        %v618 = vadd.f32 0.0, %v617
        %v619 = vpop.f32.mrf.mxu0
        %620 = vmatprep.mubr.bf16.mxu0 0
        %621 = vmatmul.mubr.bf16.gmra.mxu0 %v476
        %v622 = vpop.f32.mrf.mxu0
        %v623 = vadd.f32 0.0, %v622
        %v624 = vpop.f32.mrf.mxu0
        %v625 = vpop.f32.mrf.mxu0
        %v626 = vadd.f32 0.0, %v625
        %v627 = vpop.f32.mrf.mxu0
        %628 = vmatprep.mubr.bf16.mxu0 0
        %629 = vmatmul.mubr.bf16.gmra.mxu0 %v479
        %v630 = vpop.f32.mrf.mxu0
        %v631 = vadd.f32 0.0, %v630
        %v632 = vpop.f32.mrf.mxu0
        %v633 = vpop.f32.mrf.mxu0
        %v634 = vadd.f32 0.0, %v633
        %v635 = vpop.f32.mrf.mxu0
        %636 = vmatprep.mubr.bf16.mxu0 0
        %637 = vmatmul.mubr.bf16.gmra.mxu0 %v482
        %v638 = vpop.f32.mrf.mxu0
        %v639 = vadd.f32 0.0, %v638
        %v640 = vpop.f32.mrf.mxu0
        %v641 = vpop.f32.mrf.mxu0
        %v642 = vadd.f32 0.0, %v641
        %v643 = vpop.f32.mrf.mxu0
        %644 = vdwg.mxu0
        %v645 = vld [vmem:[%s2] sm:$0x1]
        %v647 = vlaneseq
        %v648 = vshrl.u32 %v647, 7
        %v649 = vsub.s32 0, %v648
        %v650 = vrot.slane %v645, %v649
        %v652 = vmul.f32 %v519, %v650
        %v653 = vmul.f32 %v522, %v650
        %v654 = vmul.f32 %v527, %v650
        %v655 = vmul.f32 %v530, %v650
        %v656 = vmul.f32 %v535, %v650
        %v657 = vmul.f32 %v538, %v650
        %v658 = vmul.f32 %v543, %v650
        %v659 = vmul.f32 %v546, %v650
        %v660 = vmul.f32 %v551, %v650
        %v661 = vmul.f32 %v554, %v650
        %v662 = vmul.f32 %v559, %v650
        %v663 = vmul.f32 %v562, %v650
        %v664 = vmul.f32 %v567, %v650
        %v665 = vmul.f32 %v570, %v650
        %v666 = vmul.f32 %v575, %v650
        %v667 = vmul.f32 %v578, %v650
        %v668 = vmul.f32 %v583, %v650
        %v669 = vmul.f32 %v586, %v650
        %v670 = vmul.f32 %v591, %v650
        %v671 = vmul.f32 %v594, %v650
        %v672 = vmul.f32 %v599, %v650
        %v673 = vmul.f32 %v602, %v650
        %v674 = vmul.f32 %v607, %v650
        %v675 = vmul.f32 %v610, %v650
        %v676 = vmul.f32 %v615, %v650
        %v677 = vmul.f32 %v618, %v650
        %v678 = vmul.f32 %v623, %v650
        %v679 = vmul.f32 %v626, %v650
        %v680 = vmul.f32 %v631, %v650
        %v681 = vmul.f32 %v634, %v650
        %v682 = vmul.f32 %v639, %v650
        %v683 = vmul.f32 %v642, %v650
        %v684 = vld [vmem:[%s3] sm:$0x1]
        %v686 = vlaneseq
        %v687 = vshrl.u32 %v686, 7
        %v688 = vsub.s32 0, %v687
        %v689 = vrot.slane %v684, %v688
        %v691 = vadd.f32 %v652, %v689
        %v692 = vadd.f32 %v653, %v689
        %v693 = vadd.f32 %v654, %v689
        %v694 = vadd.f32 %v655, %v689
        %v695 = vadd.f32 %v656, %v689
        %v696 = vadd.f32 %v657, %v689
        %v697 = vadd.f32 %v658, %v689
        %v698 = vadd.f32 %v659, %v689
        %v699 = vadd.f32 %v660, %v689
        %v700 = vadd.f32 %v661, %v689
        %v701 = vadd.f32 %v662, %v689
        %v702 = vadd.f32 %v663, %v689
        %v703 = vadd.f32 %v664, %v689
        %v704 = vadd.f32 %v665, %v689
        %v705 = vadd.f32 %v666, %v689
        %v706 = vadd.f32 %v667, %v689
        %v707 = vadd.f32 %v668, %v689
        %v708 = vadd.f32 %v669, %v689
        %v709 = vadd.f32 %v670, %v689
        %v710 = vadd.f32 %v671, %v689
        %v711 = vadd.f32 %v672, %v689
        %v712 = vadd.f32 %v673, %v689
        %v713 = vadd.f32 %v674, %v689
        %v714 = vadd.f32 %v675, %v689
        %v715 = vadd.f32 %v676, %v689
        %v716 = vadd.f32 %v677, %v689
        %v717 = vadd.f32 %v678, %v689
        %v718 = vadd.f32 %v679, %v689
        %v719 = vadd.f32 %v680, %v689
        %v720 = vadd.f32 %v681, %v689
        %v721 = vadd.f32 %v682, %v689
        %v722 = vadd.f32 %v683, %v689
        %v723 = vmax.f32 %v691, 0.0
        %v724 = vmax.f32 %v692, 0.0
        %v725 = vmax.f32 %v693, 0.0
        %v726 = vmax.f32 %v694, 0.0
        %v727 = vmax.f32 %v695, 0.0
        %v728 = vmax.f32 %v696, 0.0
        %v729 = vmax.f32 %v697, 0.0
        %v730 = vmax.f32 %v698, 0.0
        %v731 = vmax.f32 %v699, 0.0
        %v732 = vmax.f32 %v700, 0.0
        %v733 = vmax.f32 %v701, 0.0
        %v734 = vmax.f32 %v702, 0.0
        %v735 = vmax.f32 %v703, 0.0
        %v736 = vmax.f32 %v704, 0.0
        %v737 = vmax.f32 %v705, 0.0
        %v738 = vmax.f32 %v706, 0.0
        %v739 = vmax.f32 %v707, 0.0
        %v740 = vmax.f32 %v708, 0.0
        %v741 = vmax.f32 %v709, 0.0
        %v742 = vmax.f32 %v710, 0.0
        %v743 = vmax.f32 %v711, 0.0
        %v744 = vmax.f32 %v712, 0.0
        %v745 = vmax.f32 %v713, 0.0
        %v746 = vmax.f32 %v714, 0.0
        %v747 = vmax.f32 %v715, 0.0
        %v748 = vmax.f32 %v716, 0.0
        %v749 = vmax.f32 %v717, 0.0
        %v750 = vmax.f32 %v718, 0.0
        %v751 = vmax.f32 %v719, 0.0
        %v752 = vmax.f32 %v720, 0.0
        %v753 = vmax.f32 %v721, 0.0
        %v754 = vmax.f32 %v722, 0.0
        %vm755 = vcmask 27648
        %756 = vst.msk [vmem:[#allocation2] sm:$0xf] %vm755, 0
        %757 = vst.msk [vmem:[#allocation2 + $0x10] sm:$0xf] %vm755, 0
        %758 = vst.msk [vmem:[#allocation2 + $0x20] sm:$0xf] %vm755, 0
        %759 = vst.msk [vmem:[#allocation2 + $0x30] sm:$0xf] %vm755, 0
        %760 = vst.msk [vmem:[#allocation2 + $0x40] sm:$0xf] %vm755, 0
        %761 = vst.msk [vmem:[#allocation2 + $0x50] sm:$0xf] %vm755, 0
        %762 = vst.msk [vmem:[#allocation2 + $0x60] sm:$0xf] %vm755, 0
        %763 = vst.msk [vmem:[#allocation2 + $0x70] sm:$0xf] %vm755, 0
        %764 = vst.msk [vmem:[#allocation2 + $0x80] sm:$0xf] %vm755, 0
        %765 = vst.msk [vmem:[#allocation2 + $0x90] sm:$0xf] %vm755, 0
        %766 = vst.msk [vmem:[#allocation2 + $0xa0] sm:$0xf] %vm755, 0
        %767 = vst.msk [vmem:[#allocation2 + $0xb0] sm:$0xf] %vm755, 0
        %768 = vst.msk [vmem:[#allocation2 + $0xc0] sm:$0xf] %vm755, 0
        %769 = vst.msk [vmem:[#allocation2 + $0xd0] sm:$0xf] %vm755, 0
        %770 = vst.msk [vmem:[#allocation2 + $0xe0] sm:$0xf] %vm755, 0
        %771 = vst.msk [vmem:[#allocation2 + $0xf0] sm:$0xf] %vm755, 0
        %772 = vst.msk [vmem:[#allocation2 + $0x100] sm:$0xf] %vm755, 0
        %773 = vst.msk [vmem:[#allocation2 + $0x110] sm:$0xf] %vm755, 0
        %774 = vst.msk [vmem:[#allocation2 + $0xc] sm:$0xf] %vm755, 0
        %775 = vst.msk [vmem:[#allocation2 + $0x1c] sm:$0xf] %vm755, 0
        %776 = vst.msk [vmem:[#allocation2 + $0x2c] sm:$0xf] %vm755, 0
        %777 = vst.msk [vmem:[#allocation2 + $0x3c] sm:$0xf] %vm755, 0
        %778 = vst.msk [vmem:[#allocation2 + $0x4c] sm:$0xf] %vm755, 0
        %779 = vst.msk [vmem:[#allocation2 + $0x5c] sm:$0xf] %vm755, 0
        %780 = vst.msk [vmem:[#allocation2 + $0x6c] sm:$0xf] %vm755, 0
        %781 = vst.msk [vmem:[#allocation2 + $0x7c] sm:$0xf] %vm755, 0
        %782 = vst.msk [vmem:[#allocation2 + $0x8c] sm:$0xf] %vm755, 0
        %783 = vst.msk [vmem:[#allocation2 + $0x9c] sm:$0xf] %vm755, 0
        %784 = vst.msk [vmem:[#allocation2 + $0xac] sm:$0xf] %vm755, 0
        %785 = vst.msk [vmem:[#allocation2 + $0xbc] sm:$0xf] %vm755, 0
        %786 = vst.msk [vmem:[#allocation2 + $0xcc] sm:$0xf] %vm755, 0
        %787 = vst.msk [vmem:[#allocation2 + $0xdc] sm:$0xf] %vm755, 0
        %788 = vst.msk [vmem:[#allocation2 + $0xec] sm:$0xf] %vm755, 0
        %789 = vst.msk [vmem:[#allocation2 + $0xfc] sm:$0xf] %vm755, 0
        %790 = vst.msk [vmem:[#allocation2 + $0x10c] sm:$0xf] %vm755, 0
        %791 = vst.msk [vmem:[#allocation2 + $0x11c] sm:$0xf] %vm755, 0
        %792 = vst.msk [vmem:[#allocation2 + $0x4] sm:$0xf] %vm755, 0
        %793 = vst.msk [vmem:[#allocation2 + $0x8] sm:$0xf] %vm755, 0
        %s794 = scalar_lea.vmem [#allocation2], 272
        %795 = vst.msk [vmem:[%s794 + $0x4] sm:$0xf] %vm755, 0
        %796 = vst.msk [vmem:[%s794 + $0x8] sm:$0xf] %vm755, 0
        %v797 = vpack.c.bf16 %v724, %v723
        %v798 = vpack.c.bf16 %v726, %v725
        %v799 = vpack.c.bf16 %v728, %v727
        %v800 = vpack.c.bf16 %v730, %v729
        %v801 = vpack.c.bf16 %v732, %v731
        %v802 = vpack.c.bf16 %v734, %v733
        %v803 = vpack.c.bf16 %v736, %v735
        %v804 = vpack.c.bf16 %v738, %v737
        %v805 = vpack.c.bf16 %v740, %v739
        %v806 = vpack.c.bf16 %v742, %v741
        %v807 = vpack.c.bf16 %v744, %v743
        %v808 = vpack.c.bf16 %v746, %v745
        %v809 = vpack.c.bf16 %v748, %v747
        %v810 = vpack.c.bf16 %v750, %v749
        %v811 = vpack.c.bf16 %v752, %v751
        %v812 = vpack.c.bf16 %v754, %v753
        %v829 = vunpack.c.l.b16 %v797
        %v830 = vunpack.c.h.b16 %v797
        %v831 = vunpack.c.l.b16 %v798
        %v832 = vunpack.c.h.b16 %v798
        %v833 = vunpack.c.l.b16 %v799
        %v834 = vunpack.c.h.b16 %v799
        %v835 = vunpack.c.l.b16 %v800
        %v836 = vunpack.c.h.b16 %v800
        %v837 = vunpack.c.l.b16 %v801
        %v838 = vunpack.c.h.b16 %v801
        %v839 = vunpack.c.l.b16 %v802
        %v840 = vunpack.c.h.b16 %v802
        %v841 = vunpack.c.l.b16 %v803
        %v842 = vunpack.c.h.b16 %v803
        %v843 = vunpack.c.l.b16 %v804
        %v844 = vunpack.c.h.b16 %v804
        %v845 = vunpack.c.l.b16 %v805
        %v846 = vunpack.c.h.b16 %v805
        %v847 = vunpack.c.l.b16 %v806
        %v848 = vunpack.c.h.b16 %v806
        %v849 = vunpack.c.l.b16 %v807
        %v850 = vunpack.c.h.b16 %v807
        %v851 = vunpack.c.l.b16 %v808
        %v852 = vunpack.c.h.b16 %v808
        %v853 = vunpack.c.l.b16 %v809
        %v854 = vunpack.c.h.b16 %v809
        %v855 = vunpack.c.l.b16 %v810
        %v856 = vunpack.c.h.b16 %v810
        %v857 = vunpack.c.l.b16 %v811
        %v858 = vunpack.c.h.b16 %v811
        %v859 = vunpack.c.l.b16 %v812
        %v860 = vunpack.c.h.b16 %v812
        %v861 = vpack.c.b16 %v829, %v829
        %v862 = vpack.c.b16 %v830, %v830
        %v863 = vpack.c.b16 %v831, %v831
        %v864 = vpack.c.b16 %v832, %v832
        %v865 = vpack.c.b16 %v833, %v833
        %v866 = vpack.c.b16 %v834, %v834
        %v867 = vpack.c.b16 %v835, %v835
        %v868 = vpack.c.b16 %v836, %v836
        %v869 = vpack.c.b16 %v837, %v837
        %v870 = vpack.c.b16 %v838, %v838
        %v871 = vpack.c.b16 %v839, %v839
        %v872 = vpack.c.b16 %v840, %v840
        %v873 = vpack.c.b16 %v841, %v841
        %v874 = vpack.c.b16 %v842, %v842
        %v875 = vpack.c.b16 %v843, %v843
        %v876 = vpack.c.b16 %v844, %v844
        %v877 = vpack.c.b16 %v845, %v845
        %v878 = vpack.c.b16 %v846, %v846
        %v879 = vpack.c.b16 %v847, %v847
        %v880 = vpack.c.b16 %v848, %v848
        %v881 = vpack.c.b16 %v849, %v849
        %v882 = vpack.c.b16 %v850, %v850
        %v883 = vpack.c.b16 %v851, %v851
        %v884 = vpack.c.b16 %v852, %v852
        %v885 = vpack.c.b16 %v853, %v853
        %v886 = vpack.c.b16 %v854, %v854
        %v887 = vpack.c.b16 %v855, %v855
        %v888 = vpack.c.b16 %v856, %v856
        %v889 = vpack.c.b16 %v857, %v857
        %v890 = vpack.c.b16 %v858, %v858
        %v891 = vpack.c.b16 %v859, %v859
        %v892 = vpack.c.b16 %v860, %v860
        %s925 = scalar_lea.vmem [#allocation2], 16
        %926 = vst.msk [vmem:[%s925 + $0x4] sm:$0xf] %vm755, %v861
        %927 = vst.msk [vmem:[%s925 + $0x8] sm:$0xf] %vm755, %v862
        %928 = vst.msk [vmem:[%s925 + $0x14] sm:$0xf] %vm755, %v863
        %929 = vst.msk [vmem:[%s925 + $0x18] sm:$0xf] %vm755, %v864
        %930 = vst.msk [vmem:[%s925 + $0x24] sm:$0xf] %vm755, %v865
        %931 = vst.msk [vmem:[%s925 + $0x28] sm:$0xf] %vm755, %v866
        %932 = vst.msk [vmem:[%s925 + $0x34] sm:$0xf] %vm755, %v867
        %933 = vst.msk [vmem:[%s925 + $0x38] sm:$0xf] %vm755, %v868
        %934 = vst.msk [vmem:[%s925 + $0x44] sm:$0xf] %vm755, %v869
        %935 = vst.msk [vmem:[%s925 + $0x48] sm:$0xf] %vm755, %v870
        %936 = vst.msk [vmem:[%s925 + $0x54] sm:$0xf] %vm755, %v871
        %937 = vst.msk [vmem:[%s925 + $0x58] sm:$0xf] %vm755, %v872
        %938 = vst.msk [vmem:[%s925 + $0x64] sm:$0xf] %vm755, %v873
        %939 = vst.msk [vmem:[%s925 + $0x68] sm:$0xf] %vm755, %v874
        %940 = vst.msk [vmem:[%s925 + $0x74] sm:$0xf] %vm755, %v875
        %941 = vst.msk [vmem:[%s925 + $0x78] sm:$0xf] %vm755, %v876
        %942 = vst.msk [vmem:[%s925 + $0x84] sm:$0xf] %vm755, %v877
        %943 = vst.msk [vmem:[%s925 + $0x88] sm:$0xf] %vm755, %v878
        %944 = vst.msk [vmem:[%s925 + $0x94] sm:$0xf] %vm755, %v879
        %945 = vst.msk [vmem:[%s925 + $0x98] sm:$0xf] %vm755, %v880
        %946 = vst.msk [vmem:[%s925 + $0xa4] sm:$0xf] %vm755, %v881
        %947 = vst.msk [vmem:[%s925 + $0xa8] sm:$0xf] %vm755, %v882
        %948 = vst.msk [vmem:[%s925 + $0xb4] sm:$0xf] %vm755, %v883
        %949 = vst.msk [vmem:[%s925 + $0xb8] sm:$0xf] %vm755, %v884
        %950 = vst.msk [vmem:[%s925 + $0xc4] sm:$0xf] %vm755, %v885
        %951 = vst.msk [vmem:[%s925 + $0xc8] sm:$0xf] %vm755, %v886
        %952 = vst.msk [vmem:[%s925 + $0xd4] sm:$0xf] %vm755, %v887
        %953 = vst.msk [vmem:[%s925 + $0xd8] sm:$0xf] %vm755, %v888
        %954 = vst.msk [vmem:[%s925 + $0xe4] sm:$0xf] %vm755, %v889
        %955 = vst.msk [vmem:[%s925 + $0xe8] sm:$0xf] %vm755, %v890
        %956 = vst.msk [vmem:[%s925 + $0xf4] sm:$0xf] %vm755, %v891
        %957 = vst.msk [vmem:[%s925 + $0xf8] sm:$0xf] %vm755, %v892
        %v958 = vld [vmem:[#allocation2] sm:$0x8]
        %v959 = vld [vmem:[#allocation2 + $0x4] sm:$0xf]
        %v960 = vld [vmem:[#allocation2 + $0x8] sm:$0xf]
        %v961 = vld [vmem:[#allocation2 + $0x10] sm:$0x8]
        %v962 = vld [vmem:[#allocation2 + $0x14] sm:$0xf]
        %v963 = vld [vmem:[#allocation2 + $0x18] sm:$0xf]
        %v964 = vld [vmem:[#allocation2 + $0x20] sm:$0x8]
        %v965 = vld [vmem:[#allocation2 + $0x24] sm:$0xf]
        %v966 = vld [vmem:[#allocation2 + $0x28] sm:$0xf]
        %v967 = vld [vmem:[#allocation2 + $0x30] sm:$0x8]
        %v968 = vld [vmem:[#allocation2 + $0x34] sm:$0xf]
        %v969 = vld [vmem:[#allocation2 + $0x38] sm:$0xf]
        %v970 = vld [vmem:[#allocation2 + $0x40] sm:$0x8]
        %v971 = vld [vmem:[#allocation2 + $0x44] sm:$0xf]
        %v972 = vld [vmem:[#allocation2 + $0x48] sm:$0xf]
        %v973 = vld [vmem:[#allocation2 + $0x50] sm:$0x8]
        %v974 = vld [vmem:[#allocation2 + $0x54] sm:$0xf]
        %v975 = vld [vmem:[#allocation2 + $0x58] sm:$0xf]
        %v976 = vld [vmem:[#allocation2 + $0x60] sm:$0x8]
        %v977 = vld [vmem:[#allocation2 + $0x64] sm:$0xf]
        %v978 = vld [vmem:[#allocation2 + $0x68] sm:$0xf]
        %v979 = vld [vmem:[#allocation2 + $0x70] sm:$0x8]
        %v980 = vld [vmem:[#allocation2 + $0x74] sm:$0xf]
        %v981 = vld [vmem:[#allocation2 + $0x78] sm:$0xf]
        %v982 = vld [vmem:[#allocation2 + $0x80] sm:$0x8]
        %v983 = vld [vmem:[#allocation2 + $0x84] sm:$0xf]
        %v984 = vld [vmem:[#allocation2 + $0x88] sm:$0xf]
        %v985 = vld [vmem:[#allocation2 + $0x90] sm:$0x8]
        %v986 = vld [vmem:[#allocation2 + $0x94] sm:$0xf]
        %v987 = vld [vmem:[#allocation2 + $0x98] sm:$0xf]
        %v988 = vld [vmem:[#allocation2 + $0xa0] sm:$0x8]
        %v989 = vld [vmem:[#allocation2 + $0xa4] sm:$0xf]
        %v990 = vld [vmem:[#allocation2 + $0xa8] sm:$0xf]
        %v991 = vld [vmem:[#allocation2 + $0xb0] sm:$0x8]
        %v992 = vld [vmem:[#allocation2 + $0xb4] sm:$0xf]
        %v993 = vld [vmem:[#allocation2 + $0xb8] sm:$0xf]
        %v994 = vld [vmem:[#allocation2 + $0xc0] sm:$0x8]
        %v995 = vld [vmem:[#allocation2 + $0xc4] sm:$0xf]
        %v996 = vld [vmem:[#allocation2 + $0xc8] sm:$0xf]
        %v997 = vld [vmem:[#allocation2 + $0xd0] sm:$0x8]
        %v998 = vld [vmem:[#allocation2 + $0xd4] sm:$0xf]
        %v999 = vld [vmem:[#allocation2 + $0xd8] sm:$0xf]
        %v1000 = vld [vmem:[#allocation2 + $0xe0] sm:$0x8]
        %v1001 = vld [vmem:[#allocation2 + $0xe4] sm:$0xf]
        %v1002 = vld [vmem:[#allocation2 + $0xe8] sm:$0xf]
        %v1003 = vld [vmem:[#allocation2 + $0xf0] sm:$0x8]
        %v1004 = vld [vmem:[#allocation2 + $0xf4] sm:$0xf]
        %v1005 = vld [vmem:[#allocation2 + $0xf8] sm:$0xf]
        %vm1006 = vsmask.f32 256
        %vm1007 = vsmask.f32 4368
        %vm1008 = vmor %vm1006, %vm1007
        %v1010 = vshrl.u32 %v958, 16
        %v1012 = vrot.slane %v1010, 7
        %v1013 = vrot.slane %v1012, 4
        %v1015 = vshrl.u32 %v959, 16
        %v1017 = vrot.slane %v1015, 7
        %v1018 = vshll.u32 %v959, 16
        %v1020 = vor.u32 %v1017, %v1018
        %v1021 = vsel %vm1008, %v1013, %v1020
        %v1022 = vrot.slane %v1017, 4
        %v1024 = vshrl.u32 %v960, 16
        %v1026 = vrot.slane %v1024, 7
        %v1027 = vshll.u32 %v960, 16
        %v1029 = vor.u32 %v1026, %v1027
        %v1030 = vsel %vm1008, %v1022, %v1029
        %v1032 = vshrl.u32 %v961, 16
        %v1034 = vrot.slane %v1032, 7
        %v1035 = vrot.slane %v1034, 4
        %v1037 = vshrl.u32 %v962, 16
        %v1039 = vrot.slane %v1037, 7
        %v1040 = vshll.u32 %v962, 16
        %v1042 = vor.u32 %v1039, %v1040
        %v1043 = vsel %vm1008, %v1035, %v1042
        %v1044 = vrot.slane %v1039, 4
        %v1046 = vshrl.u32 %v963, 16
        %v1048 = vrot.slane %v1046, 7
        %v1049 = vshll.u32 %v963, 16
        %v1051 = vor.u32 %v1048, %v1049
        %v1052 = vsel %vm1008, %v1044, %v1051
        %v1054 = vshrl.u32 %v964, 16
        %v1056 = vrot.slane %v1054, 7
        %v1057 = vrot.slane %v1056, 4
        %v1059 = vshrl.u32 %v965, 16
        %v1061 = vrot.slane %v1059, 7
        %v1062 = vshll.u32 %v965, 16
        %v1064 = vor.u32 %v1061, %v1062
        %v1065 = vsel %vm1008, %v1057, %v1064
        %v1066 = vrot.slane %v1061, 4
        %v1068 = vshrl.u32 %v966, 16
        %v1070 = vrot.slane %v1068, 7
        %v1071 = vshll.u32 %v966, 16
        %v1073 = vor.u32 %v1070, %v1071
        %v1074 = vsel %vm1008, %v1066, %v1073
        %v1076 = vshrl.u32 %v967, 16
        %v1078 = vrot.slane %v1076, 7
        %v1079 = vrot.slane %v1078, 4
        %v1081 = vshrl.u32 %v968, 16
        %v1083 = vrot.slane %v1081, 7
        %v1084 = vshll.u32 %v968, 16
        %v1086 = vor.u32 %v1083, %v1084
        %v1087 = vsel %vm1008, %v1079, %v1086
        %v1088 = vrot.slane %v1083, 4
        %v1090 = vshrl.u32 %v969, 16
        %v1092 = vrot.slane %v1090, 7
        %v1093 = vshll.u32 %v969, 16
        %v1095 = vor.u32 %v1092, %v1093
        %v1096 = vsel %vm1008, %v1088, %v1095
        %v1098 = vshrl.u32 %v970, 16
        %v1100 = vrot.slane %v1098, 7
        %v1101 = vrot.slane %v1100, 4
        %v1103 = vshrl.u32 %v971, 16
        %v1105 = vrot.slane %v1103, 7
        %v1106 = vshll.u32 %v971, 16
        %v1108 = vor.u32 %v1105, %v1106
        %v1109 = vsel %vm1008, %v1101, %v1108
        %v1110 = vrot.slane %v1105, 4
        %v1112 = vshrl.u32 %v972, 16
        %v1114 = vrot.slane %v1112, 7
        %v1115 = vshll.u32 %v972, 16
        %v1117 = vor.u32 %v1114, %v1115
        %v1118 = vsel %vm1008, %v1110, %v1117
        %v1120 = vshrl.u32 %v973, 16
        %v1122 = vrot.slane %v1120, 7
        %v1123 = vrot.slane %v1122, 4
        %v1125 = vshrl.u32 %v974, 16
        %v1127 = vrot.slane %v1125, 7
        %v1128 = vshll.u32 %v974, 16
        %v1130 = vor.u32 %v1127, %v1128
        %v1131 = vsel %vm1008, %v1123, %v1130
        %v1132 = vrot.slane %v1127, 4
        %v1134 = vshrl.u32 %v975, 16
        %v1136 = vrot.slane %v1134, 7
        %v1137 = vshll.u32 %v975, 16
        %v1139 = vor.u32 %v1136, %v1137
        %v1140 = vsel %vm1008, %v1132, %v1139
        %v1142 = vshrl.u32 %v976, 16
        %v1144 = vrot.slane %v1142, 7
        %v1145 = vrot.slane %v1144, 4
        %v1147 = vshrl.u32 %v977, 16
        %v1149 = vrot.slane %v1147, 7
        %v1150 = vshll.u32 %v977, 16
        %v1152 = vor.u32 %v1149, %v1150
        %v1153 = vsel %vm1008, %v1145, %v1152
        %v1154 = vrot.slane %v1149, 4
        %v1156 = vshrl.u32 %v978, 16
        %v1158 = vrot.slane %v1156, 7
        %v1159 = vshll.u32 %v978, 16
        %v1161 = vor.u32 %v1158, %v1159
        %v1162 = vsel %vm1008, %v1154, %v1161
        %v1164 = vshrl.u32 %v979, 16
        %v1166 = vrot.slane %v1164, 7
        %v1167 = vrot.slane %v1166, 4
        %v1169 = vshrl.u32 %v980, 16
        %v1171 = vrot.slane %v1169, 7
        %v1172 = vshll.u32 %v980, 16
        %v1174 = vor.u32 %v1171, %v1172
        %v1175 = vsel %vm1008, %v1167, %v1174
        %v1176 = vrot.slane %v1171, 4
        %v1178 = vshrl.u32 %v981, 16
        %v1180 = vrot.slane %v1178, 7
        %v1181 = vshll.u32 %v981, 16
        %v1183 = vor.u32 %v1180, %v1181
        %v1184 = vsel %vm1008, %v1176, %v1183
        %v1186 = vshrl.u32 %v982, 16
        %v1188 = vrot.slane %v1186, 7
        %v1189 = vrot.slane %v1188, 4
        %v1191 = vshrl.u32 %v983, 16
        %v1193 = vrot.slane %v1191, 7
        %v1194 = vshll.u32 %v983, 16
        %v1196 = vor.u32 %v1193, %v1194
        %v1197 = vsel %vm1008, %v1189, %v1196
        %v1198 = vrot.slane %v1193, 4
        %v1200 = vshrl.u32 %v984, 16
        %v1202 = vrot.slane %v1200, 7
        %v1203 = vshll.u32 %v984, 16
        %v1205 = vor.u32 %v1202, %v1203
        %v1206 = vsel %vm1008, %v1198, %v1205
        %v1208 = vshrl.u32 %v985, 16
        %v1210 = vrot.slane %v1208, 7
        %v1211 = vrot.slane %v1210, 4
        %v1213 = vshrl.u32 %v986, 16
        %v1215 = vrot.slane %v1213, 7
        %v1216 = vshll.u32 %v986, 16
        %v1218 = vor.u32 %v1215, %v1216
        %v1219 = vsel %vm1008, %v1211, %v1218
        %v1220 = vrot.slane %v1215, 4
        %v1222 = vshrl.u32 %v987, 16
        %v1224 = vrot.slane %v1222, 7
        %v1225 = vshll.u32 %v987, 16
        %v1227 = vor.u32 %v1224, %v1225
        %v1228 = vsel %vm1008, %v1220, %v1227
        %v1230 = vshrl.u32 %v988, 16
        %v1232 = vrot.slane %v1230, 7
        %v1233 = vrot.slane %v1232, 4
        %v1235 = vshrl.u32 %v989, 16
        %v1237 = vrot.slane %v1235, 7
        %v1238 = vshll.u32 %v989, 16
        %v1240 = vor.u32 %v1237, %v1238
        %v1241 = vsel %vm1008, %v1233, %v1240
        %v1242 = vrot.slane %v1237, 4
        %v1244 = vshrl.u32 %v990, 16
        %v1246 = vrot.slane %v1244, 7
        %v1247 = vshll.u32 %v990, 16
        %v1249 = vor.u32 %v1246, %v1247
        %v1250 = vsel %vm1008, %v1242, %v1249
        %v1252 = vshrl.u32 %v991, 16
        %v1254 = vrot.slane %v1252, 7
        %v1255 = vrot.slane %v1254, 4
        %v1257 = vshrl.u32 %v992, 16
        %v1259 = vrot.slane %v1257, 7
        %v1260 = vshll.u32 %v992, 16
        %v1262 = vor.u32 %v1259, %v1260
        %v1263 = vsel %vm1008, %v1255, %v1262
        %v1264 = vrot.slane %v1259, 4
        %v1266 = vshrl.u32 %v993, 16
        %v1268 = vrot.slane %v1266, 7
        %v1269 = vshll.u32 %v993, 16
        %v1271 = vor.u32 %v1268, %v1269
        %v1272 = vsel %vm1008, %v1264, %v1271
        %v1274 = vshrl.u32 %v994, 16
        %v1276 = vrot.slane %v1274, 7
        %v1277 = vrot.slane %v1276, 4
        %v1279 = vshrl.u32 %v995, 16
        %v1281 = vrot.slane %v1279, 7
        %v1282 = vshll.u32 %v995, 16
        %v1284 = vor.u32 %v1281, %v1282
        %v1285 = vsel %vm1008, %v1277, %v1284
        %v1286 = vrot.slane %v1281, 4
        %v1288 = vshrl.u32 %v996, 16
        %v1290 = vrot.slane %v1288, 7
        %v1291 = vshll.u32 %v996, 16
        %v1293 = vor.u32 %v1290, %v1291
        %v1294 = vsel %vm1008, %v1286, %v1293
        %v1296 = vshrl.u32 %v997, 16
        %v1298 = vrot.slane %v1296, 7
        %v1299 = vrot.slane %v1298, 4
        %v1301 = vshrl.u32 %v998, 16
        %v1303 = vrot.slane %v1301, 7
        %v1304 = vshll.u32 %v998, 16
        %v1306 = vor.u32 %v1303, %v1304
        %v1307 = vsel %vm1008, %v1299, %v1306
        %v1308 = vrot.slane %v1303, 4
        %v1310 = vshrl.u32 %v999, 16
        %v1312 = vrot.slane %v1310, 7
        %v1313 = vshll.u32 %v999, 16
        %v1315 = vor.u32 %v1312, %v1313
        %v1316 = vsel %vm1008, %v1308, %v1315
        %v1318 = vshrl.u32 %v1000, 16
        %v1320 = vrot.slane %v1318, 7
        %v1321 = vrot.slane %v1320, 4
        %v1323 = vshrl.u32 %v1001, 16
        %v1325 = vrot.slane %v1323, 7
        %v1326 = vshll.u32 %v1001, 16
        %v1328 = vor.u32 %v1325, %v1326
        %v1329 = vsel %vm1008, %v1321, %v1328
        %v1330 = vrot.slane %v1325, 4
        %v1332 = vshrl.u32 %v1002, 16
        %v1334 = vrot.slane %v1332, 7
        %v1335 = vshll.u32 %v1002, 16
        %v1337 = vor.u32 %v1334, %v1335
        %v1338 = vsel %vm1008, %v1330, %v1337
        %v1340 = vshrl.u32 %v1003, 16
        %v1342 = vrot.slane %v1340, 7
        %v1343 = vrot.slane %v1342, 4
        %v1345 = vshrl.u32 %v1004, 16
        %v1347 = vrot.slane %v1345, 7
        %v1348 = vshll.u32 %v1004, 16
        %v1350 = vor.u32 %v1347, %v1348
        %v1351 = vsel %vm1008, %v1343, %v1350
        %v1352 = vrot.slane %v1347, 4
        %v1354 = vshrl.u32 %v1005, 16
        %v1356 = vrot.slane %v1354, 7
        %v1357 = vshll.u32 %v1005, 16
        %v1359 = vor.u32 %v1356, %v1357
        %v1360 = vsel %vm1008, %v1352, %v1359
        %v1361 = vld [vmem:[%s4] sm:$0x3]
        %s1362 = scalar_lea.vmem %s4, 2
        %v1363 = vld [vmem:[%s1362] sm:$0x3]
        %v1396 = vunpack.c.l.b16 %v959
        %v1397 = vunpack.c.l.b16 %v960
        %v1398 = vunpack.c.l.b16 %v962
        %v1399 = vunpack.c.l.b16 %v963
        %v1400 = vunpack.c.l.b16 %v965
        %v1401 = vunpack.c.l.b16 %v966
        %v1402 = vunpack.c.l.b16 %v968
        %v1403 = vunpack.c.l.b16 %v969
        %v1404 = vunpack.c.l.b16 %v971
        %v1405 = vunpack.c.l.b16 %v972
        %v1406 = vunpack.c.l.b16 %v974
        %v1407 = vunpack.c.l.b16 %v975
        %v1408 = vunpack.c.l.b16 %v977
        %v1409 = vunpack.c.l.b16 %v978
        %v1410 = vunpack.c.l.b16 %v980
        %v1411 = vunpack.c.l.b16 %v981
        %v1412 = vunpack.c.l.b16 %v983
        %v1413 = vunpack.c.l.b16 %v984
        %v1414 = vunpack.c.l.b16 %v986
        %v1415 = vunpack.c.l.b16 %v987
        %v1416 = vunpack.c.l.b16 %v989
        %v1417 = vunpack.c.l.b16 %v990
        %v1418 = vunpack.c.l.b16 %v992
        %v1419 = vunpack.c.l.b16 %v993
        %v1420 = vunpack.c.l.b16 %v995
        %v1421 = vunpack.c.l.b16 %v996
        %v1422 = vunpack.c.l.b16 %v998
        %v1423 = vunpack.c.l.b16 %v999
        %v1424 = vunpack.c.l.b16 %v1001
        %v1425 = vunpack.c.l.b16 %v1002
        %v1426 = vunpack.c.l.b16 %v1004
        %v1427 = vunpack.c.l.b16 %v1005
        %v1428 = vpack.c.b16 %v1397, %v1396
        %v1429 = vpack.c.b16 %v1399, %v1398
        %v1430 = vpack.c.b16 %v1401, %v1400
        %v1431 = vpack.c.b16 %v1403, %v1402
        %v1432 = vpack.c.b16 %v1405, %v1404
        %v1433 = vpack.c.b16 %v1407, %v1406
        %v1434 = vpack.c.b16 %v1409, %v1408
        %v1435 = vpack.c.b16 %v1411, %v1410
        %v1436 = vpack.c.b16 %v1413, %v1412
        %v1437 = vpack.c.b16 %v1415, %v1414
        %v1438 = vpack.c.b16 %v1417, %v1416
        %v1439 = vpack.c.b16 %v1419, %v1418
        %v1440 = vpack.c.b16 %v1421, %v1420
        %v1441 = vpack.c.b16 %v1423, %v1422
        %v1442 = vpack.c.b16 %v1425, %v1424
        %v1443 = vpack.c.b16 %v1427, %v1426
        %vm1444 = vcmask 31744
        %v1446 = vsel %vm1444, %v1428, 0
        %v1449 = vsel %vm1444, %v1429, 0
        %v1452 = vsel %vm1444, %v1430, 0
        %v1455 = vsel %vm1444, %v1431, 0
        %v1458 = vsel %vm1444, %v1432, 0
        %v1461 = vsel %vm1444, %v1433, 0
        %v1464 = vsel %vm1444, %v1434, 0
        %v1467 = vsel %vm1444, %v1435, 0
        %v1470 = vsel %vm1444, %v1436, 0
        %v1473 = vsel %vm1444, %v1437, 0
        %v1476 = vsel %vm1444, %v1438, 0
        %v1479 = vsel %vm1444, %v1439, 0
        %v1482 = vsel %vm1444, %v1440, 0
        %v1485 = vsel %vm1444, %v1441, 0
        %v1488 = vsel %vm1444, %v1442, 0
        %v1491 = vsel %vm1444, %v1443, 0
        %vm1493 = vcmask 1041408
        %v1495 = vsel %vm1493, %v1363, 0
        %1497 = vmatprep.subr.bf16.mxu0 0
        %1498 = vmatpush1.bf16.msra.mxu0 0
        %1499 = vmatprep.subr.bf16.mxu0 0
        %1500 = vmatpush1.bf16.msra.mxu0 0
        %1501 = vmatprep.subr.bf16.mxu0 0
        %1502 = vmatpush1.bf16.msra.mxu0 0
        %1503 = vmatprep.subr.bf16.mxu0 0
        %1504 = vmatpush1.bf16.msra.mxu0 0
        %1505 = vmatprep.subr.bf16.mxu0 0
        %1506 = vmatpush1.bf16.msra.mxu0 0
        %1507 = vmatprep.subr.bf16.mxu0 0
        %1508 = vmatpush1.bf16.msra.mxu0 0
        %1509 = vmatprep.subr.bf16.mxu0 0
        %1510 = vmatpush1.bf16.msra.mxu0 0
        %1511 = vmatprep.subr.bf16.mxu0 0
        %1512 = vmatpush1.bf16.msra.mxu0 %v1495
        %1513 = vmatprep.subr.bf16.mxu0 0
        %1514 = vmatpush2.bf16.msra.mxu0 0
        %1515 = vmatprep.subr.bf16.mxu0 0
        %1516 = vmatpush2.bf16.msra.mxu0 0
        %1517 = vmatprep.subr.bf16.mxu0 0
        %1518 = vmatpush2.bf16.msra.mxu0 0
        %1519 = vmatprep.subr.bf16.mxu0 0
        %1520 = vmatpush2.bf16.msra.mxu0 0
        %1521 = vmatprep.subr.bf16.mxu0 0
        %1522 = vmatpush2.bf16.msra.mxu0 0
        %1523 = vmatprep.subr.bf16.mxu0 0
        %1524 = vmatpush2.bf16.msra.mxu0 0
        %1525 = vmatprep.subr.bf16.mxu0 0
        %1526 = vmatpush2.bf16.msra.mxu0 0
        %1527 = vmatprep.subr.bf16.mxu0 0
        %1528 = vmatpush2.bf16.msra.mxu0 0
        %1529 = vmatprep.mubr.bf16.mxu0 0
        %1530 = vmatmul.mubr.bf16.gmra.mxu0 %v1446
        %v1531 = vpop.f32.mrf.mxu0
        %v1532 = vadd.f32 0.0, %v1531
        %v1533 = vpop.f32.mrf.mxu0
        %v1534 = vpop.f32.mrf.mxu0
        %v1535 = vadd.f32 0.0, %v1534
        %v1536 = vpop.f32.mrf.mxu0
        %1537 = vmatprep.mubr.bf16.mxu0 0
        %1538 = vmatmul.mubr.bf16.gmra.mxu0 %v1449
        %v1539 = vpop.f32.mrf.mxu0
        %v1540 = vadd.f32 0.0, %v1539
        %v1541 = vpop.f32.mrf.mxu0
        %v1542 = vpop.f32.mrf.mxu0
        %v1543 = vadd.f32 0.0, %v1542
        %v1544 = vpop.f32.mrf.mxu0
        %1545 = vmatprep.mubr.bf16.mxu0 0
        %1546 = vmatmul.mubr.bf16.gmra.mxu0 %v1452
        %v1547 = vpop.f32.mrf.mxu0
        %v1548 = vadd.f32 0.0, %v1547
        %v1549 = vpop.f32.mrf.mxu0
        %v1550 = vpop.f32.mrf.mxu0
        %v1551 = vadd.f32 0.0, %v1550
        %v1552 = vpop.f32.mrf.mxu0
        %1553 = vmatprep.mubr.bf16.mxu0 0
        %1554 = vmatmul.mubr.bf16.gmra.mxu0 %v1455
        %v1555 = vpop.f32.mrf.mxu0
        %v1556 = vadd.f32 0.0, %v1555
        %v1557 = vpop.f32.mrf.mxu0
        %v1558 = vpop.f32.mrf.mxu0
        %v1559 = vadd.f32 0.0, %v1558
        %v1560 = vpop.f32.mrf.mxu0
        %1561 = vmatprep.mubr.bf16.mxu0 0
        %1562 = vmatmul.mubr.bf16.gmra.mxu0 %v1458
        %v1563 = vpop.f32.mrf.mxu0
        %v1564 = vadd.f32 0.0, %v1563
        %v1565 = vpop.f32.mrf.mxu0
        %v1566 = vpop.f32.mrf.mxu0
        %v1567 = vadd.f32 0.0, %v1566
        %v1568 = vpop.f32.mrf.mxu0
        %1569 = vmatprep.mubr.bf16.mxu0 0
        %1570 = vmatmul.mubr.bf16.gmra.mxu0 %v1461
        %v1571 = vpop.f32.mrf.mxu0
        %v1572 = vadd.f32 0.0, %v1571
        %v1573 = vpop.f32.mrf.mxu0
        %v1574 = vpop.f32.mrf.mxu0
        %v1575 = vadd.f32 0.0, %v1574
        %v1576 = vpop.f32.mrf.mxu0
        %1577 = vmatprep.mubr.bf16.mxu0 0
        %1578 = vmatmul.mubr.bf16.gmra.mxu0 %v1464
        %v1579 = vpop.f32.mrf.mxu0
        %v1580 = vadd.f32 0.0, %v1579
        %v1581 = vpop.f32.mrf.mxu0
        %v1582 = vpop.f32.mrf.mxu0
        %v1583 = vadd.f32 0.0, %v1582
        %v1584 = vpop.f32.mrf.mxu0
        %1585 = vmatprep.mubr.bf16.mxu0 0
        %1586 = vmatmul.mubr.bf16.gmra.mxu0 %v1467
        %v1587 = vpop.f32.mrf.mxu0
        %v1588 = vadd.f32 0.0, %v1587
        %v1589 = vpop.f32.mrf.mxu0
        %v1590 = vpop.f32.mrf.mxu0
        %v1591 = vadd.f32 0.0, %v1590
        %v1592 = vpop.f32.mrf.mxu0
        %1593 = vmatprep.mubr.bf16.mxu0 0
        %1594 = vmatmul.mubr.bf16.gmra.mxu0 %v1470
        %v1595 = vpop.f32.mrf.mxu0
        %v1596 = vadd.f32 0.0, %v1595
        %v1597 = vpop.f32.mrf.mxu0
        %v1598 = vpop.f32.mrf.mxu0
        %v1599 = vadd.f32 0.0, %v1598
        %v1600 = vpop.f32.mrf.mxu0
        %1601 = vmatprep.mubr.bf16.mxu0 0
        %1602 = vmatmul.mubr.bf16.gmra.mxu0 %v1473
        %v1603 = vpop.f32.mrf.mxu0
        %v1604 = vadd.f32 0.0, %v1603
        %v1605 = vpop.f32.mrf.mxu0
        %v1606 = vpop.f32.mrf.mxu0
        %v1607 = vadd.f32 0.0, %v1606
        %v1608 = vpop.f32.mrf.mxu0
        %1609 = vmatprep.mubr.bf16.mxu0 0
        %1610 = vmatmul.mubr.bf16.gmra.mxu0 %v1476
        %v1611 = vpop.f32.mrf.mxu0
        %v1612 = vadd.f32 0.0, %v1611
        %v1613 = vpop.f32.mrf.mxu0
        %v1614 = vpop.f32.mrf.mxu0
        %v1615 = vadd.f32 0.0, %v1614
        %v1616 = vpop.f32.mrf.mxu0
        %1617 = vmatprep.mubr.bf16.mxu0 0
        %1618 = vmatmul.mubr.bf16.gmra.mxu0 %v1479
        %v1619 = vpop.f32.mrf.mxu0
        %v1620 = vadd.f32 0.0, %v1619
        %v1621 = vpop.f32.mrf.mxu0
        %v1622 = vpop.f32.mrf.mxu0
        %v1623 = vadd.f32 0.0, %v1622
        %v1624 = vpop.f32.mrf.mxu0
        %1625 = vmatprep.mubr.bf16.mxu0 0
        %1626 = vmatmul.mubr.bf16.gmra.mxu0 %v1482
        %v1627 = vpop.f32.mrf.mxu0
        %v1628 = vadd.f32 0.0, %v1627
        %v1629 = vpop.f32.mrf.mxu0
        %v1630 = vpop.f32.mrf.mxu0
        %v1631 = vadd.f32 0.0, %v1630
        %v1632 = vpop.f32.mrf.mxu0
        %1633 = vmatprep.mubr.bf16.mxu0 0
        %1634 = vmatmul.mubr.bf16.gmra.mxu0 %v1485
        %v1635 = vpop.f32.mrf.mxu0
        %v1636 = vadd.f32 0.0, %v1635
        %v1637 = vpop.f32.mrf.mxu0
        %v1638 = vpop.f32.mrf.mxu0
        %v1639 = vadd.f32 0.0, %v1638
        %v1640 = vpop.f32.mrf.mxu0
        %1641 = vmatprep.mubr.bf16.mxu0 0
        %1642 = vmatmul.mubr.bf16.gmra.mxu0 %v1488
        %v1643 = vpop.f32.mrf.mxu0
        %v1644 = vadd.f32 0.0, %v1643
        %v1645 = vpop.f32.mrf.mxu0
        %v1646 = vpop.f32.mrf.mxu0
        %v1647 = vadd.f32 0.0, %v1646
        %v1648 = vpop.f32.mrf.mxu0
        %1649 = vmatprep.mubr.bf16.mxu0 0
        %1650 = vmatmul.mubr.bf16.gmra.mxu0 %v1491
        %v1651 = vpop.f32.mrf.mxu0
        %v1652 = vadd.f32 0.0, %v1651
        %v1653 = vpop.f32.mrf.mxu0
        %v1654 = vpop.f32.mrf.mxu0
        %v1655 = vadd.f32 0.0, %v1654
        %v1656 = vpop.f32.mrf.mxu0
        %1657 = vdwg.mxu0
        %v1658 = vunpack.c.l.b16 %v1021
        %v1659 = vunpack.c.l.b16 %v1030
        %v1660 = vunpack.c.l.b16 %v1043
        %v1661 = vunpack.c.l.b16 %v1052
        %v1662 = vunpack.c.l.b16 %v1065
        %v1663 = vunpack.c.l.b16 %v1074
        %v1664 = vunpack.c.l.b16 %v1087
        %v1665 = vunpack.c.l.b16 %v1096
        %v1666 = vunpack.c.l.b16 %v1109
        %v1667 = vunpack.c.l.b16 %v1118
        %v1668 = vunpack.c.l.b16 %v1131
        %v1669 = vunpack.c.l.b16 %v1140
        %v1670 = vunpack.c.l.b16 %v1153
        %v1671 = vunpack.c.l.b16 %v1162
        %v1672 = vunpack.c.l.b16 %v1175
        %v1673 = vunpack.c.l.b16 %v1184
        %v1674 = vunpack.c.l.b16 %v1197
        %v1675 = vunpack.c.l.b16 %v1206
        %v1676 = vunpack.c.l.b16 %v1219
        %v1677 = vunpack.c.l.b16 %v1228
        %v1678 = vunpack.c.l.b16 %v1241
        %v1679 = vunpack.c.l.b16 %v1250
        %v1680 = vunpack.c.l.b16 %v1263
        %v1681 = vunpack.c.l.b16 %v1272
        %v1682 = vunpack.c.l.b16 %v1285
        %v1683 = vunpack.c.l.b16 %v1294
        %v1684 = vunpack.c.l.b16 %v1307
        %v1685 = vunpack.c.l.b16 %v1316
        %v1686 = vunpack.c.l.b16 %v1329
        %v1687 = vunpack.c.l.b16 %v1338
        %v1688 = vunpack.c.l.b16 %v1351
        %v1689 = vunpack.c.l.b16 %v1360
        %v1690 = vpack.c.b16 %v1659, %v1658
        %v1691 = vpack.c.b16 %v1661, %v1660
        %v1692 = vpack.c.b16 %v1663, %v1662
        %v1693 = vpack.c.b16 %v1665, %v1664
        %v1694 = vpack.c.b16 %v1667, %v1666
        %v1695 = vpack.c.b16 %v1669, %v1668
        %v1696 = vpack.c.b16 %v1671, %v1670
        %v1697 = vpack.c.b16 %v1673, %v1672
        %v1698 = vpack.c.b16 %v1675, %v1674
        %v1699 = vpack.c.b16 %v1677, %v1676
        %v1700 = vpack.c.b16 %v1679, %v1678
        %v1701 = vpack.c.b16 %v1681, %v1680
        %v1702 = vpack.c.b16 %v1683, %v1682
        %v1703 = vpack.c.b16 %v1685, %v1684
        %v1704 = vpack.c.b16 %v1687, %v1686
        %v1705 = vpack.c.b16 %v1689, %v1688
        %v1707 = vsel %vm1444, %v1690, 0
        %v1710 = vsel %vm1444, %v1691, 0
        %v1713 = vsel %vm1444, %v1692, 0
        %v1716 = vsel %vm1444, %v1693, 0
        %v1719 = vsel %vm1444, %v1694, 0
        %v1722 = vsel %vm1444, %v1695, 0
        %v1725 = vsel %vm1444, %v1696, 0
        %v1728 = vsel %vm1444, %v1697, 0
        %v1731 = vsel %vm1444, %v1698, 0
        %v1734 = vsel %vm1444, %v1699, 0
        %v1737 = vsel %vm1444, %v1700, 0
        %v1740 = vsel %vm1444, %v1701, 0
        %v1743 = vsel %vm1444, %v1702, 0
        %v1746 = vsel %vm1444, %v1703, 0
        %v1749 = vsel %vm1444, %v1704, 0
        %v1752 = vsel %vm1444, %v1705, 0
        %v1755 = vsel %vm1493, %v1361, 0
        %1757 = vmatprep.subr.bf16.mxu0 0
        %1758 = vmatpush1.bf16.msra.mxu0 0
        %1759 = vmatprep.subr.bf16.mxu0 0
        %1760 = vmatpush1.bf16.msra.mxu0 0
        %1761 = vmatprep.subr.bf16.mxu0 0
        %1762 = vmatpush1.bf16.msra.mxu0 0
        %1763 = vmatprep.subr.bf16.mxu0 0
        %1764 = vmatpush1.bf16.msra.mxu0 0
        %1765 = vmatprep.subr.bf16.mxu0 0
        %1766 = vmatpush1.bf16.msra.mxu0 0
        %1767 = vmatprep.subr.bf16.mxu0 0
        %1768 = vmatpush1.bf16.msra.mxu0 0
        %1769 = vmatprep.subr.bf16.mxu0 0
        %1770 = vmatpush1.bf16.msra.mxu0 0
        %1771 = vmatprep.subr.bf16.mxu0 0
        %1772 = vmatpush1.bf16.msra.mxu0 %v1755
        %1773 = vmatprep.subr.bf16.mxu0 0
        %1774 = vmatpush2.bf16.msra.mxu0 0
        %1775 = vmatprep.subr.bf16.mxu0 0
        %1776 = vmatpush2.bf16.msra.mxu0 0
        %1777 = vmatprep.subr.bf16.mxu0 0
        %1778 = vmatpush2.bf16.msra.mxu0 0
        %1779 = vmatprep.subr.bf16.mxu0 0
        %1780 = vmatpush2.bf16.msra.mxu0 0
        %1781 = vmatprep.subr.bf16.mxu0 0
        %1782 = vmatpush2.bf16.msra.mxu0 0
        %1783 = vmatprep.subr.bf16.mxu0 0
        %1784 = vmatpush2.bf16.msra.mxu0 0
        %1785 = vmatprep.subr.bf16.mxu0 0
        %1786 = vmatpush2.bf16.msra.mxu0 0
        %1787 = vmatprep.subr.bf16.mxu0 0
        %1788 = vmatpush2.bf16.msra.mxu0 0
        %1789 = vmatprep.mubr.bf16.mxu0 0
        %1790 = vmatmul.mubr.bf16.gmra.mxu0 %v1707
        %v1791 = vpop.f32.mrf.mxu0
        %v1792 = vadd.f32 %v1532, %v1791
        %v1793 = vpop.f32.mrf.mxu0
        %v1794 = vpop.f32.mrf.mxu0
        %v1795 = vadd.f32 %v1535, %v1794
        %v1796 = vpop.f32.mrf.mxu0
        %1797 = vmatprep.mubr.bf16.mxu0 0
        %1798 = vmatmul.mubr.bf16.gmra.mxu0 %v1710
        %v1799 = vpop.f32.mrf.mxu0
        %v1800 = vadd.f32 %v1540, %v1799
        %v1801 = vpop.f32.mrf.mxu0
        %v1802 = vpop.f32.mrf.mxu0
        %v1803 = vadd.f32 %v1543, %v1802
        %v1804 = vpop.f32.mrf.mxu0
        %1805 = vmatprep.mubr.bf16.mxu0 0
        %1806 = vmatmul.mubr.bf16.gmra.mxu0 %v1713
        %v1807 = vpop.f32.mrf.mxu0
        %v1808 = vadd.f32 %v1548, %v1807
        %v1809 = vpop.f32.mrf.mxu0
        %v1810 = vpop.f32.mrf.mxu0
        %v1811 = vadd.f32 %v1551, %v1810
        %v1812 = vpop.f32.mrf.mxu0
        %1813 = vmatprep.mubr.bf16.mxu0 0
        %1814 = vmatmul.mubr.bf16.gmra.mxu0 %v1716
        %v1815 = vpop.f32.mrf.mxu0
        %v1816 = vadd.f32 %v1556, %v1815
        %v1817 = vpop.f32.mrf.mxu0
        %v1818 = vpop.f32.mrf.mxu0
        %v1819 = vadd.f32 %v1559, %v1818
        %v1820 = vpop.f32.mrf.mxu0
        %1821 = vmatprep.mubr.bf16.mxu0 0
        %1822 = vmatmul.mubr.bf16.gmra.mxu0 %v1719
        %v1823 = vpop.f32.mrf.mxu0
        %v1824 = vadd.f32 %v1564, %v1823
        %v1825 = vpop.f32.mrf.mxu0
        %v1826 = vpop.f32.mrf.mxu0
        %v1827 = vadd.f32 %v1567, %v1826
        %v1828 = vpop.f32.mrf.mxu0
        %1829 = vmatprep.mubr.bf16.mxu0 0
        %1830 = vmatmul.mubr.bf16.gmra.mxu0 %v1722
        %v1831 = vpop.f32.mrf.mxu0
        %v1832 = vadd.f32 %v1572, %v1831
        %v1833 = vpop.f32.mrf.mxu0
        %v1834 = vpop.f32.mrf.mxu0
        %v1835 = vadd.f32 %v1575, %v1834
        %v1836 = vpop.f32.mrf.mxu0
        %1837 = vmatprep.mubr.bf16.mxu0 0
        %1838 = vmatmul.mubr.bf16.gmra.mxu0 %v1725
        %v1839 = vpop.f32.mrf.mxu0
        %v1840 = vadd.f32 %v1580, %v1839
        %v1841 = vpop.f32.mrf.mxu0
        %v1842 = vpop.f32.mrf.mxu0
        %v1843 = vadd.f32 %v1583, %v1842
        %v1844 = vpop.f32.mrf.mxu0
        %1845 = vmatprep.mubr.bf16.mxu0 0
        %1846 = vmatmul.mubr.bf16.gmra.mxu0 %v1728
        %v1847 = vpop.f32.mrf.mxu0
        %v1848 = vadd.f32 %v1588, %v1847
        %v1849 = vpop.f32.mrf.mxu0
        %v1850 = vpop.f32.mrf.mxu0
        %v1851 = vadd.f32 %v1591, %v1850
        %v1852 = vpop.f32.mrf.mxu0
        %1853 = vmatprep.mubr.bf16.mxu0 0
        %1854 = vmatmul.mubr.bf16.gmra.mxu0 %v1731
        %v1855 = vpop.f32.mrf.mxu0
        %v1856 = vadd.f32 %v1596, %v1855
        %v1857 = vpop.f32.mrf.mxu0
        %v1858 = vpop.f32.mrf.mxu0
        %v1859 = vadd.f32 %v1599, %v1858
        %v1860 = vpop.f32.mrf.mxu0
        %1861 = vmatprep.mubr.bf16.mxu0 0
        %1862 = vmatmul.mubr.bf16.gmra.mxu0 %v1734
        %v1863 = vpop.f32.mrf.mxu0
        %v1864 = vadd.f32 %v1604, %v1863
        %v1865 = vpop.f32.mrf.mxu0
        %v1866 = vpop.f32.mrf.mxu0
        %v1867 = vadd.f32 %v1607, %v1866
        %v1868 = vpop.f32.mrf.mxu0
        %1869 = vmatprep.mubr.bf16.mxu0 0
        %1870 = vmatmul.mubr.bf16.gmra.mxu0 %v1737
        %v1871 = vpop.f32.mrf.mxu0
        %v1872 = vadd.f32 %v1612, %v1871
        %v1873 = vpop.f32.mrf.mxu0
        %v1874 = vpop.f32.mrf.mxu0
        %v1875 = vadd.f32 %v1615, %v1874
        %v1876 = vpop.f32.mrf.mxu0
        %1877 = vmatprep.mubr.bf16.mxu0 0
        %1878 = vmatmul.mubr.bf16.gmra.mxu0 %v1740
        %v1879 = vpop.f32.mrf.mxu0
        %v1880 = vadd.f32 %v1620, %v1879
        %v1881 = vpop.f32.mrf.mxu0
        %v1882 = vpop.f32.mrf.mxu0
        %v1883 = vadd.f32 %v1623, %v1882
        %v1884 = vpop.f32.mrf.mxu0
        %1885 = vmatprep.mubr.bf16.mxu0 0
        %1886 = vmatmul.mubr.bf16.gmra.mxu0 %v1743
        %v1887 = vpop.f32.mrf.mxu0
        %v1888 = vadd.f32 %v1628, %v1887
        %v1889 = vpop.f32.mrf.mxu0
        %v1890 = vpop.f32.mrf.mxu0
        %v1891 = vadd.f32 %v1631, %v1890
        %v1892 = vpop.f32.mrf.mxu0
        %1893 = vmatprep.mubr.bf16.mxu0 0
        %1894 = vmatmul.mubr.bf16.gmra.mxu0 %v1746
        %v1895 = vpop.f32.mrf.mxu0
        %v1896 = vadd.f32 %v1636, %v1895
        %v1897 = vpop.f32.mrf.mxu0
        %v1898 = vpop.f32.mrf.mxu0
        %v1899 = vadd.f32 %v1639, %v1898
        %v1900 = vpop.f32.mrf.mxu0
        %1901 = vmatprep.mubr.bf16.mxu0 0
        %1902 = vmatmul.mubr.bf16.gmra.mxu0 %v1749
        %v1903 = vpop.f32.mrf.mxu0
        %v1904 = vadd.f32 %v1644, %v1903
        %v1905 = vpop.f32.mrf.mxu0
        %v1906 = vpop.f32.mrf.mxu0
        %v1907 = vadd.f32 %v1647, %v1906
        %v1908 = vpop.f32.mrf.mxu0
        %1909 = vmatprep.mubr.bf16.mxu0 0
        %1910 = vmatmul.mubr.bf16.gmra.mxu0 %v1752
        %v1911 = vpop.f32.mrf.mxu0
        %v1912 = vadd.f32 %v1652, %v1911
        %v1913 = vpop.f32.mrf.mxu0
        %v1914 = vpop.f32.mrf.mxu0
        %v1915 = vadd.f32 %v1655, %v1914
        %v1916 = vpop.f32.mrf.mxu0
        %1917 = vdwg.mxu0
        %v1918 = vld [vmem:[#allocation2 + $0x4] sm:$0xf]
        %v1919 = vld [vmem:[#allocation2 + $0x8] sm:$0xf]
        %v1920 = vld [vmem:[#allocation2 + $0xc] sm:$0x1]
        %v1921 = vld [vmem:[#allocation2 + $0x14] sm:$0xf]
        %v1922 = vld [vmem:[#allocation2 + $0x18] sm:$0xf]
        %v1923 = vld [vmem:[#allocation2 + $0x1c] sm:$0x1]
        %v1924 = vld [vmem:[#allocation2 + $0x24] sm:$0xf]
        %v1925 = vld [vmem:[#allocation2 + $0x28] sm:$0xf]
        %v1926 = vld [vmem:[#allocation2 + $0x2c] sm:$0x1]
        %v1927 = vld [vmem:[#allocation2 + $0x34] sm:$0xf]
        %v1928 = vld [vmem:[#allocation2 + $0x38] sm:$0xf]
        %v1929 = vld [vmem:[#allocation2 + $0x3c] sm:$0x1]
        %v1930 = vld [vmem:[#allocation2 + $0x44] sm:$0xf]
        %v1931 = vld [vmem:[#allocation2 + $0x48] sm:$0xf]
        %v1932 = vld [vmem:[#allocation2 + $0x4c] sm:$0x1]
        %v1933 = vld [vmem:[#allocation2 + $0x54] sm:$0xf]
        %v1934 = vld [vmem:[#allocation2 + $0x58] sm:$0xf]
        %v1935 = vld [vmem:[#allocation2 + $0x5c] sm:$0x1]
        %v1936 = vld [vmem:[#allocation2 + $0x64] sm:$0xf]
        %v1937 = vld [vmem:[#allocation2 + $0x68] sm:$0xf]
        %v1938 = vld [vmem:[#allocation2 + $0x6c] sm:$0x1]
        %v1939 = vld [vmem:[#allocation2 + $0x74] sm:$0xf]
        %v1940 = vld [vmem:[#allocation2 + $0x78] sm:$0xf]
        %v1941 = vld [vmem:[#allocation2 + $0x7c] sm:$0x1]
        %v1942 = vld [vmem:[#allocation2 + $0x84] sm:$0xf]
        %v1943 = vld [vmem:[#allocation2 + $0x88] sm:$0xf]
        %v1944 = vld [vmem:[#allocation2 + $0x8c] sm:$0x1]
        %v1945 = vld [vmem:[#allocation2 + $0x94] sm:$0xf]
        %v1946 = vld [vmem:[#allocation2 + $0x98] sm:$0xf]
        %v1947 = vld [vmem:[#allocation2 + $0x9c] sm:$0x1]
        %v1948 = vld [vmem:[#allocation2 + $0xa4] sm:$0xf]
        %v1949 = vld [vmem:[#allocation2 + $0xa8] sm:$0xf]
        %v1950 = vld [vmem:[#allocation2 + $0xac] sm:$0x1]
        %v1951 = vld [vmem:[#allocation2 + $0xb4] sm:$0xf]
        %v1952 = vld [vmem:[#allocation2 + $0xb8] sm:$0xf]
        %v1953 = vld [vmem:[#allocation2 + $0xbc] sm:$0x1]
        %v1954 = vld [vmem:[#allocation2 + $0xc4] sm:$0xf]
        %v1955 = vld [vmem:[#allocation2 + $0xc8] sm:$0xf]
        %v1956 = vld [vmem:[#allocation2 + $0xcc] sm:$0x1]
        %v1957 = vld [vmem:[#allocation2 + $0xd4] sm:$0xf]
        %v1958 = vld [vmem:[#allocation2 + $0xd8] sm:$0xf]
        %v1959 = vld [vmem:[#allocation2 + $0xdc] sm:$0x1]
        %v1960 = vld [vmem:[#allocation2 + $0xe4] sm:$0xf]
        %v1961 = vld [vmem:[#allocation2 + $0xe8] sm:$0xf]
        %v1962 = vld [vmem:[#allocation2 + $0xec] sm:$0x1]
        %v1963 = vld [vmem:[#allocation2 + $0xf4] sm:$0xf]
        %v1964 = vld [vmem:[#allocation2 + $0xf8] sm:$0xf]
        %v1965 = vld [vmem:[#allocation2 + $0xfc] sm:$0x1]
        %vm1966 = vsmask.f32 3328
        %vm1967 = vsmask.f32 7440
        %vm1968 = vmor %vm1966, %vm1967
        %v1970 = vshrl.u32 %v1918, 16
        %v1972 = vrot.slane %v1970, 4
        %v1973 = vshll.u32 %v1918, 16
        %v1975 = vrot.slane %v1973, 5
        %v1976 = vor.u32 %v1972, %v1975
        %v1977 = vrot.slane %v1976, 4
        %v1979 = vshll.u32 %v1919, 16
        %v1981 = vrot.slane %v1979, 5
        %v1982 = vsel %vm1968, %v1977, %v1981
        %v1983 = vshrl.u32 %v1919, 16
        %v1985 = vrot.slane %v1983, 4
        %v1986 = vor.u32 %v1985, %v1981
        %v1987 = vrot.slane %v1986, 4
        %v1989 = vshll.u32 %v1920, 16
        %v1991 = vrot.slane %v1989, 5
        %v1992 = vsel %vm1968, %v1987, %v1991
        %v1994 = vshrl.u32 %v1921, 16
        %v1996 = vrot.slane %v1994, 4
        %v1997 = vshll.u32 %v1921, 16
        %v1999 = vrot.slane %v1997, 5
        %v2000 = vor.u32 %v1996, %v1999
        %v2001 = vrot.slane %v2000, 4
        %v2003 = vshll.u32 %v1922, 16
        %v2005 = vrot.slane %v2003, 5
        %v2006 = vsel %vm1968, %v2001, %v2005
        %v2007 = vshrl.u32 %v1922, 16
        %v2009 = vrot.slane %v2007, 4
        %v2010 = vor.u32 %v2009, %v2005
        %v2011 = vrot.slane %v2010, 4
        %v2013 = vshll.u32 %v1923, 16
        %v2015 = vrot.slane %v2013, 5
        %v2016 = vsel %vm1968, %v2011, %v2015
        %v2018 = vshrl.u32 %v1924, 16
        %v2020 = vrot.slane %v2018, 4
        %v2021 = vshll.u32 %v1924, 16
        %v2023 = vrot.slane %v2021, 5
        %v2024 = vor.u32 %v2020, %v2023
        %v2025 = vrot.slane %v2024, 4
        %v2027 = vshll.u32 %v1925, 16
        %v2029 = vrot.slane %v2027, 5
        %v2030 = vsel %vm1968, %v2025, %v2029
        %v2031 = vshrl.u32 %v1925, 16
        %v2033 = vrot.slane %v2031, 4
        %v2034 = vor.u32 %v2033, %v2029
        %v2035 = vrot.slane %v2034, 4
        %v2037 = vshll.u32 %v1926, 16
        %v2039 = vrot.slane %v2037, 5
        %v2040 = vsel %vm1968, %v2035, %v2039
        %v2042 = vshrl.u32 %v1927, 16
        %v2044 = vrot.slane %v2042, 4
        %v2045 = vshll.u32 %v1927, 16
        %v2047 = vrot.slane %v2045, 5
        %v2048 = vor.u32 %v2044, %v2047
        %v2049 = vrot.slane %v2048, 4
        %v2051 = vshll.u32 %v1928, 16
        %v2053 = vrot.slane %v2051, 5
        %v2054 = vsel %vm1968, %v2049, %v2053
        %v2055 = vshrl.u32 %v1928, 16
        %v2057 = vrot.slane %v2055, 4
        %v2058 = vor.u32 %v2057, %v2053
        %v2059 = vrot.slane %v2058, 4
        %v2061 = vshll.u32 %v1929, 16
        %v2063 = vrot.slane %v2061, 5
        %v2064 = vsel %vm1968, %v2059, %v2063
        %v2066 = vshrl.u32 %v1930, 16
        %v2068 = vrot.slane %v2066, 4
        %v2069 = vshll.u32 %v1930, 16
        %v2071 = vrot.slane %v2069, 5
        %v2072 = vor.u32 %v2068, %v2071
        %v2073 = vrot.slane %v2072, 4
        %v2075 = vshll.u32 %v1931, 16
        %v2077 = vrot.slane %v2075, 5
        %v2078 = vsel %vm1968, %v2073, %v2077
        %v2079 = vshrl.u32 %v1931, 16
        %v2081 = vrot.slane %v2079, 4
        %v2082 = vor.u32 %v2081, %v2077
        %v2083 = vrot.slane %v2082, 4
        %v2085 = vshll.u32 %v1932, 16
        %v2087 = vrot.slane %v2085, 5
        %v2088 = vsel %vm1968, %v2083, %v2087
        %v2090 = vshrl.u32 %v1933, 16
        %v2092 = vrot.slane %v2090, 4
        %v2093 = vshll.u32 %v1933, 16
        %v2095 = vrot.slane %v2093, 5
        %v2096 = vor.u32 %v2092, %v2095
        %v2097 = vrot.slane %v2096, 4
        %v2099 = vshll.u32 %v1934, 16
        %v2101 = vrot.slane %v2099, 5
        %v2102 = vsel %vm1968, %v2097, %v2101
        %v2103 = vshrl.u32 %v1934, 16
        %v2105 = vrot.slane %v2103, 4
        %v2106 = vor.u32 %v2105, %v2101
        %v2107 = vrot.slane %v2106, 4
        %v2109 = vshll.u32 %v1935, 16
        %v2111 = vrot.slane %v2109, 5
        %v2112 = vsel %vm1968, %v2107, %v2111
        %v2114 = vshrl.u32 %v1936, 16
        %v2116 = vrot.slane %v2114, 4
        %v2117 = vshll.u32 %v1936, 16
        %v2119 = vrot.slane %v2117, 5
        %v2120 = vor.u32 %v2116, %v2119
        %v2121 = vrot.slane %v2120, 4
        %v2123 = vshll.u32 %v1937, 16
        %v2125 = vrot.slane %v2123, 5
        %v2126 = vsel %vm1968, %v2121, %v2125
        %v2127 = vshrl.u32 %v1937, 16
        %v2129 = vrot.slane %v2127, 4
        %v2130 = vor.u32 %v2129, %v2125
        %v2131 = vrot.slane %v2130, 4
        %v2133 = vshll.u32 %v1938, 16
        %v2135 = vrot.slane %v2133, 5
        %v2136 = vsel %vm1968, %v2131, %v2135
        %v2138 = vshrl.u32 %v1939, 16
        %v2140 = vrot.slane %v2138, 4
        %v2141 = vshll.u32 %v1939, 16
        %v2143 = vrot.slane %v2141, 5
        %v2144 = vor.u32 %v2140, %v2143
        %v2145 = vrot.slane %v2144, 4
        %v2147 = vshll.u32 %v1940, 16
        %v2149 = vrot.slane %v2147, 5
        %v2150 = vsel %vm1968, %v2145, %v2149
        %v2151 = vshrl.u32 %v1940, 16
        %v2153 = vrot.slane %v2151, 4
        %v2154 = vor.u32 %v2153, %v2149
        %v2155 = vrot.slane %v2154, 4
        %v2157 = vshll.u32 %v1941, 16
        %v2159 = vrot.slane %v2157, 5
        %v2160 = vsel %vm1968, %v2155, %v2159
        %v2162 = vshrl.u32 %v1942, 16
        %v2164 = vrot.slane %v2162, 4
        %v2165 = vshll.u32 %v1942, 16
        %v2167 = vrot.slane %v2165, 5
        %v2168 = vor.u32 %v2164, %v2167
        %v2169 = vrot.slane %v2168, 4
        %v2171 = vshll.u32 %v1943, 16
        %v2173 = vrot.slane %v2171, 5
        %v2174 = vsel %vm1968, %v2169, %v2173
        %v2175 = vshrl.u32 %v1943, 16
        %v2177 = vrot.slane %v2175, 4
        %v2178 = vor.u32 %v2177, %v2173
        %v2179 = vrot.slane %v2178, 4
        %v2181 = vshll.u32 %v1944, 16
        %v2183 = vrot.slane %v2181, 5
        %v2184 = vsel %vm1968, %v2179, %v2183
        %v2186 = vshrl.u32 %v1945, 16
        %v2188 = vrot.slane %v2186, 4
        %v2189 = vshll.u32 %v1945, 16
        %v2191 = vrot.slane %v2189, 5
        %v2192 = vor.u32 %v2188, %v2191
        %v2193 = vrot.slane %v2192, 4
        %v2195 = vshll.u32 %v1946, 16
        %v2197 = vrot.slane %v2195, 5
        %v2198 = vsel %vm1968, %v2193, %v2197
        %v2199 = vshrl.u32 %v1946, 16
        %v2201 = vrot.slane %v2199, 4
        %v2202 = vor.u32 %v2201, %v2197
        %v2203 = vrot.slane %v2202, 4
        %v2205 = vshll.u32 %v1947, 16
        %v2207 = vrot.slane %v2205, 5
        %v2208 = vsel %vm1968, %v2203, %v2207
        %v2210 = vshrl.u32 %v1948, 16
        %v2212 = vrot.slane %v2210, 4
        %v2213 = vshll.u32 %v1948, 16
        %v2215 = vrot.slane %v2213, 5
        %v2216 = vor.u32 %v2212, %v2215
        %v2217 = vrot.slane %v2216, 4
        %v2219 = vshll.u32 %v1949, 16
        %v2221 = vrot.slane %v2219, 5
        %v2222 = vsel %vm1968, %v2217, %v2221
        %v2223 = vshrl.u32 %v1949, 16
        %v2225 = vrot.slane %v2223, 4
        %v2226 = vor.u32 %v2225, %v2221
        %v2227 = vrot.slane %v2226, 4
        %v2229 = vshll.u32 %v1950, 16
        %v2231 = vrot.slane %v2229, 5
        %v2232 = vsel %vm1968, %v2227, %v2231
        %v2234 = vshrl.u32 %v1951, 16
        %v2236 = vrot.slane %v2234, 4
        %v2237 = vshll.u32 %v1951, 16
        %v2239 = vrot.slane %v2237, 5
        %v2240 = vor.u32 %v2236, %v2239
        %v2241 = vrot.slane %v2240, 4
        %v2243 = vshll.u32 %v1952, 16
        %v2245 = vrot.slane %v2243, 5
        %v2246 = vsel %vm1968, %v2241, %v2245
        %v2247 = vshrl.u32 %v1952, 16
        %v2249 = vrot.slane %v2247, 4
        %v2250 = vor.u32 %v2249, %v2245
        %v2251 = vrot.slane %v2250, 4
        %v2253 = vshll.u32 %v1953, 16
        %v2255 = vrot.slane %v2253, 5
        %v2256 = vsel %vm1968, %v2251, %v2255
        %v2258 = vshrl.u32 %v1954, 16
        %v2260 = vrot.slane %v2258, 4
        %v2261 = vshll.u32 %v1954, 16
        %v2263 = vrot.slane %v2261, 5
        %v2264 = vor.u32 %v2260, %v2263
        %v2265 = vrot.slane %v2264, 4
        %v2267 = vshll.u32 %v1955, 16
        %v2269 = vrot.slane %v2267, 5
        %v2270 = vsel %vm1968, %v2265, %v2269
        %v2271 = vshrl.u32 %v1955, 16
        %v2273 = vrot.slane %v2271, 4
        %v2274 = vor.u32 %v2273, %v2269
        %v2275 = vrot.slane %v2274, 4
        %v2277 = vshll.u32 %v1956, 16
        %v2279 = vrot.slane %v2277, 5
        %v2280 = vsel %vm1968, %v2275, %v2279
        %v2282 = vshrl.u32 %v1957, 16
        %v2284 = vrot.slane %v2282, 4
        %v2285 = vshll.u32 %v1957, 16
        %v2287 = vrot.slane %v2285, 5
        %v2288 = vor.u32 %v2284, %v2287
        %v2289 = vrot.slane %v2288, 4
        %v2291 = vshll.u32 %v1958, 16
        %v2293 = vrot.slane %v2291, 5
        %v2294 = vsel %vm1968, %v2289, %v2293
        %v2295 = vshrl.u32 %v1958, 16
        %v2297 = vrot.slane %v2295, 4
        %v2298 = vor.u32 %v2297, %v2293
        %v2299 = vrot.slane %v2298, 4
        %v2301 = vshll.u32 %v1959, 16
        %v2303 = vrot.slane %v2301, 5
        %v2304 = vsel %vm1968, %v2299, %v2303
        %v2306 = vshrl.u32 %v1960, 16
        %v2308 = vrot.slane %v2306, 4
        %v2309 = vshll.u32 %v1960, 16
        %v2311 = vrot.slane %v2309, 5
        %v2312 = vor.u32 %v2308, %v2311
        %v2313 = vrot.slane %v2312, 4
        %v2315 = vshll.u32 %v1961, 16
        %v2317 = vrot.slane %v2315, 5
        %v2318 = vsel %vm1968, %v2313, %v2317
        %v2319 = vshrl.u32 %v1961, 16
        %v2321 = vrot.slane %v2319, 4
        %v2322 = vor.u32 %v2321, %v2317
        %v2323 = vrot.slane %v2322, 4
        %v2325 = vshll.u32 %v1962, 16
        %v2327 = vrot.slane %v2325, 5
        %v2328 = vsel %vm1968, %v2323, %v2327
        %v2330 = vshrl.u32 %v1963, 16
        %v2332 = vrot.slane %v2330, 4
        %v2333 = vshll.u32 %v1963, 16
        %v2335 = vrot.slane %v2333, 5
        %v2336 = vor.u32 %v2332, %v2335
        %v2337 = vrot.slane %v2336, 4
        %v2339 = vshll.u32 %v1964, 16
        %v2341 = vrot.slane %v2339, 5
        %v2342 = vsel %vm1968, %v2337, %v2341
        %v2343 = vshrl.u32 %v1964, 16
        %v2345 = vrot.slane %v2343, 4
        %v2346 = vor.u32 %v2345, %v2341
        %v2347 = vrot.slane %v2346, 4
        %v2349 = vshll.u32 %v1965, 16
        %v2351 = vrot.slane %v2349, 5
        %v2352 = vsel %vm1968, %v2347, %v2351
        %s2353 = scalar_lea.vmem %s4, 4
        %v2354 = vld [vmem:[%s2353] sm:$0x3]
        %v2355 = vunpack.c.l.b16 %v1982
        %v2356 = vunpack.c.l.b16 %v1992
        %v2357 = vunpack.c.l.b16 %v2006
        %v2358 = vunpack.c.l.b16 %v2016
        %v2359 = vunpack.c.l.b16 %v2030
        %v2360 = vunpack.c.l.b16 %v2040
        %v2361 = vunpack.c.l.b16 %v2054
        %v2362 = vunpack.c.l.b16 %v2064
        %v2363 = vunpack.c.l.b16 %v2078
        %v2364 = vunpack.c.l.b16 %v2088
        %v2365 = vunpack.c.l.b16 %v2102
        %v2366 = vunpack.c.l.b16 %v2112
        %v2367 = vunpack.c.l.b16 %v2126
        %v2368 = vunpack.c.l.b16 %v2136
        %v2369 = vunpack.c.l.b16 %v2150
        %v2370 = vunpack.c.l.b16 %v2160
        %v2371 = vunpack.c.l.b16 %v2174
        %v2372 = vunpack.c.l.b16 %v2184
        %v2373 = vunpack.c.l.b16 %v2198
        %v2374 = vunpack.c.l.b16 %v2208
        %v2375 = vunpack.c.l.b16 %v2222
        %v2376 = vunpack.c.l.b16 %v2232
        %v2377 = vunpack.c.l.b16 %v2246
        %v2378 = vunpack.c.l.b16 %v2256
        %v2379 = vunpack.c.l.b16 %v2270
        %v2380 = vunpack.c.l.b16 %v2280
        %v2381 = vunpack.c.l.b16 %v2294
        %v2382 = vunpack.c.l.b16 %v2304
        %v2383 = vunpack.c.l.b16 %v2318
        %v2384 = vunpack.c.l.b16 %v2328
        %v2385 = vunpack.c.l.b16 %v2342
        %v2386 = vunpack.c.l.b16 %v2352
        %v2387 = vpack.c.b16 %v2356, %v2355
        %v2388 = vpack.c.b16 %v2358, %v2357
        %v2389 = vpack.c.b16 %v2360, %v2359
        %v2390 = vpack.c.b16 %v2362, %v2361
        %v2391 = vpack.c.b16 %v2364, %v2363
        %v2392 = vpack.c.b16 %v2366, %v2365
        %v2393 = vpack.c.b16 %v2368, %v2367
        %v2394 = vpack.c.b16 %v2370, %v2369
        %v2395 = vpack.c.b16 %v2372, %v2371
        %v2396 = vpack.c.b16 %v2374, %v2373
        %v2397 = vpack.c.b16 %v2376, %v2375
        %v2398 = vpack.c.b16 %v2378, %v2377
        %v2399 = vpack.c.b16 %v2380, %v2379
        %v2400 = vpack.c.b16 %v2382, %v2381
        %v2401 = vpack.c.b16 %v2384, %v2383
        %v2402 = vpack.c.b16 %v2386, %v2385
        %v2404 = vsel %vm1444, %v2387, 0
        %v2407 = vsel %vm1444, %v2388, 0
        %v2410 = vsel %vm1444, %v2389, 0
        %v2413 = vsel %vm1444, %v2390, 0
        %v2416 = vsel %vm1444, %v2391, 0
        %v2419 = vsel %vm1444, %v2392, 0
        %v2422 = vsel %vm1444, %v2393, 0
        %v2425 = vsel %vm1444, %v2394, 0
        %v2428 = vsel %vm1444, %v2395, 0
        %v2431 = vsel %vm1444, %v2396, 0
        %v2434 = vsel %vm1444, %v2397, 0
        %v2437 = vsel %vm1444, %v2398, 0
        %v2440 = vsel %vm1444, %v2399, 0
        %v2443 = vsel %vm1444, %v2400, 0
        %v2446 = vsel %vm1444, %v2401, 0
        %v2449 = vsel %vm1444, %v2402, 0
        %v2452 = vsel %vm1493, %v2354, 0
        %2454 = vmatprep.subr.bf16.mxu0 0
        %2455 = vmatpush1.bf16.msra.mxu0 0
        %2456 = vmatprep.subr.bf16.mxu0 0
        %2457 = vmatpush1.bf16.msra.mxu0 0
        %2458 = vmatprep.subr.bf16.mxu0 0
        %2459 = vmatpush1.bf16.msra.mxu0 0
        %2460 = vmatprep.subr.bf16.mxu0 0
        %2461 = vmatpush1.bf16.msra.mxu0 0
        %2462 = vmatprep.subr.bf16.mxu0 0
        %2463 = vmatpush1.bf16.msra.mxu0 0
        %2464 = vmatprep.subr.bf16.mxu0 0
        %2465 = vmatpush1.bf16.msra.mxu0 0
        %2466 = vmatprep.subr.bf16.mxu0 0
        %2467 = vmatpush1.bf16.msra.mxu0 0
        %2468 = vmatprep.subr.bf16.mxu0 0
        %2469 = vmatpush1.bf16.msra.mxu0 %v2452
        %2470 = vmatprep.subr.bf16.mxu0 0
        %2471 = vmatpush2.bf16.msra.mxu0 0
        %2472 = vmatprep.subr.bf16.mxu0 0
        %2473 = vmatpush2.bf16.msra.mxu0 0
        %2474 = vmatprep.subr.bf16.mxu0 0
        %2475 = vmatpush2.bf16.msra.mxu0 0
        %2476 = vmatprep.subr.bf16.mxu0 0
        %2477 = vmatpush2.bf16.msra.mxu0 0
        %2478 = vmatprep.subr.bf16.mxu0 0
        %2479 = vmatpush2.bf16.msra.mxu0 0
        %2480 = vmatprep.subr.bf16.mxu0 0
        %2481 = vmatpush2.bf16.msra.mxu0 0
        %2482 = vmatprep.subr.bf16.mxu0 0
        %2483 = vmatpush2.bf16.msra.mxu0 0
        %2484 = vmatprep.subr.bf16.mxu0 0
        %2485 = vmatpush2.bf16.msra.mxu0 0
        %2486 = vmatprep.mubr.bf16.mxu0 0
        %2487 = vmatmul.mubr.bf16.gmra.mxu0 %v2404
        %v2488 = vpop.f32.mrf.mxu0
        %v2489 = vadd.f32 0.0, %v2488
        %v2490 = vpop.f32.mrf.mxu0
        %v2491 = vpop.f32.mrf.mxu0
        %v2492 = vadd.f32 0.0, %v2491
        %v2493 = vpop.f32.mrf.mxu0
        %2494 = vmatprep.mubr.bf16.mxu0 0
        %2495 = vmatmul.mubr.bf16.gmra.mxu0 %v2407
        %v2496 = vpop.f32.mrf.mxu0
        %v2497 = vadd.f32 0.0, %v2496
        %v2498 = vpop.f32.mrf.mxu0
        %v2499 = vpop.f32.mrf.mxu0
        %v2500 = vadd.f32 0.0, %v2499
        %v2501 = vpop.f32.mrf.mxu0
        %2502 = vmatprep.mubr.bf16.mxu0 0
        %2503 = vmatmul.mubr.bf16.gmra.mxu0 %v2410
        %v2504 = vpop.f32.mrf.mxu0
        %v2505 = vadd.f32 0.0, %v2504
        %v2506 = vpop.f32.mrf.mxu0
        %v2507 = vpop.f32.mrf.mxu0
        %v2508 = vadd.f32 0.0, %v2507
        %v2509 = vpop.f32.mrf.mxu0
        %2510 = vmatprep.mubr.bf16.mxu0 0
        %2511 = vmatmul.mubr.bf16.gmra.mxu0 %v2413
        %v2512 = vpop.f32.mrf.mxu0
        %v2513 = vadd.f32 0.0, %v2512
        %v2514 = vpop.f32.mrf.mxu0
        %v2515 = vpop.f32.mrf.mxu0
        %v2516 = vadd.f32 0.0, %v2515
        %v2517 = vpop.f32.mrf.mxu0
        %2518 = vmatprep.mubr.bf16.mxu0 0
        %2519 = vmatmul.mubr.bf16.gmra.mxu0 %v2416
        %v2520 = vpop.f32.mrf.mxu0
        %v2521 = vadd.f32 0.0, %v2520
        %v2522 = vpop.f32.mrf.mxu0
        %v2523 = vpop.f32.mrf.mxu0
        %v2524 = vadd.f32 0.0, %v2523
        %v2525 = vpop.f32.mrf.mxu0
        %2526 = vmatprep.mubr.bf16.mxu0 0
        %2527 = vmatmul.mubr.bf16.gmra.mxu0 %v2419
        %v2528 = vpop.f32.mrf.mxu0
        %v2529 = vadd.f32 0.0, %v2528
        %v2530 = vpop.f32.mrf.mxu0
        %v2531 = vpop.f32.mrf.mxu0
        %v2532 = vadd.f32 0.0, %v2531
        %v2533 = vpop.f32.mrf.mxu0
        %2534 = vmatprep.mubr.bf16.mxu0 0
        %2535 = vmatmul.mubr.bf16.gmra.mxu0 %v2422
        %v2536 = vpop.f32.mrf.mxu0
        %v2537 = vadd.f32 0.0, %v2536
        %v2538 = vpop.f32.mrf.mxu0
        %v2539 = vpop.f32.mrf.mxu0
        %v2540 = vadd.f32 0.0, %v2539
        %v2541 = vpop.f32.mrf.mxu0
        %2542 = vmatprep.mubr.bf16.mxu0 0
        %2543 = vmatmul.mubr.bf16.gmra.mxu0 %v2425
        %v2544 = vpop.f32.mrf.mxu0
        %v2545 = vadd.f32 0.0, %v2544
        %v2546 = vpop.f32.mrf.mxu0
        %v2547 = vpop.f32.mrf.mxu0
        %v2548 = vadd.f32 0.0, %v2547
        %v2549 = vpop.f32.mrf.mxu0
        %2550 = vmatprep.mubr.bf16.mxu0 0
        %2551 = vmatmul.mubr.bf16.gmra.mxu0 %v2428
        %v2552 = vpop.f32.mrf.mxu0
        %v2553 = vadd.f32 0.0, %v2552
        %v2554 = vpop.f32.mrf.mxu0
        %v2555 = vpop.f32.mrf.mxu0
        %v2556 = vadd.f32 0.0, %v2555
        %v2557 = vpop.f32.mrf.mxu0
        %2558 = vmatprep.mubr.bf16.mxu0 0
        %2559 = vmatmul.mubr.bf16.gmra.mxu0 %v2431
        %v2560 = vpop.f32.mrf.mxu0
        %v2561 = vadd.f32 0.0, %v2560
        %v2562 = vpop.f32.mrf.mxu0
        %v2563 = vpop.f32.mrf.mxu0
        %v2564 = vadd.f32 0.0, %v2563
        %v2565 = vpop.f32.mrf.mxu0
        %2566 = vmatprep.mubr.bf16.mxu0 0
        %2567 = vmatmul.mubr.bf16.gmra.mxu0 %v2434
        %v2568 = vpop.f32.mrf.mxu0
        %v2569 = vadd.f32 0.0, %v2568
        %v2570 = vpop.f32.mrf.mxu0
        %v2571 = vpop.f32.mrf.mxu0
        %v2572 = vadd.f32 0.0, %v2571
        %v2573 = vpop.f32.mrf.mxu0
        %2574 = vmatprep.mubr.bf16.mxu0 0
        %2575 = vmatmul.mubr.bf16.gmra.mxu0 %v2437
        %v2576 = vpop.f32.mrf.mxu0
        %v2577 = vadd.f32 0.0, %v2576
        %v2578 = vpop.f32.mrf.mxu0
        %v2579 = vpop.f32.mrf.mxu0
        %v2580 = vadd.f32 0.0, %v2579
        %v2581 = vpop.f32.mrf.mxu0
        %2582 = vmatprep.mubr.bf16.mxu0 0
        %2583 = vmatmul.mubr.bf16.gmra.mxu0 %v2440
        %v2584 = vpop.f32.mrf.mxu0
        %v2585 = vadd.f32 0.0, %v2584
        %v2586 = vpop.f32.mrf.mxu0
        %v2587 = vpop.f32.mrf.mxu0
        %v2588 = vadd.f32 0.0, %v2587
        %v2589 = vpop.f32.mrf.mxu0
        %2590 = vmatprep.mubr.bf16.mxu0 0
        %2591 = vmatmul.mubr.bf16.gmra.mxu0 %v2443
        %v2592 = vpop.f32.mrf.mxu0
        %v2593 = vadd.f32 0.0, %v2592
        %v2594 = vpop.f32.mrf.mxu0
        %v2595 = vpop.f32.mrf.mxu0
        %v2596 = vadd.f32 0.0, %v2595
        %v2597 = vpop.f32.mrf.mxu0
        %2598 = vmatprep.mubr.bf16.mxu0 0
        %2599 = vmatmul.mubr.bf16.gmra.mxu0 %v2446
        %v2600 = vpop.f32.mrf.mxu0
        %v2601 = vadd.f32 0.0, %v2600
        %v2602 = vpop.f32.mrf.mxu0
        %v2603 = vpop.f32.mrf.mxu0
        %v2604 = vadd.f32 0.0, %v2603
        %v2605 = vpop.f32.mrf.mxu0
        %2606 = vmatprep.mubr.bf16.mxu0 0
        %2607 = vmatmul.mubr.bf16.gmra.mxu0 %v2449
        %v2608 = vpop.f32.mrf.mxu0
        %v2609 = vadd.f32 0.0, %v2608
        %v2610 = vpop.f32.mrf.mxu0
        %v2611 = vpop.f32.mrf.mxu0
        %v2612 = vadd.f32 0.0, %v2611
        %v2613 = vpop.f32.mrf.mxu0
        %2614 = vdwg.mxu0
        %v2615 = vadd.f32 %v1792, %v2489
        %v2616 = vadd.f32 %v1795, %v2492
        %v2617 = vadd.f32 %v1800, %v2497
        %v2618 = vadd.f32 %v1803, %v2500
        %v2619 = vadd.f32 %v1808, %v2505
        %v2620 = vadd.f32 %v1811, %v2508
        %v2621 = vadd.f32 %v1816, %v2513
        %v2622 = vadd.f32 %v1819, %v2516
        %v2623 = vadd.f32 %v1824, %v2521
        %v2624 = vadd.f32 %v1827, %v2524
        %v2625 = vadd.f32 %v1832, %v2529
        %v2626 = vadd.f32 %v1835, %v2532
        %v2627 = vadd.f32 %v1840, %v2537
        %v2628 = vadd.f32 %v1843, %v2540
        %v2629 = vadd.f32 %v1848, %v2545
        %v2630 = vadd.f32 %v1851, %v2548
        %v2631 = vadd.f32 %v1856, %v2553
        %v2632 = vadd.f32 %v1859, %v2556
        %v2633 = vadd.f32 %v1864, %v2561
        %v2634 = vadd.f32 %v1867, %v2564
        %v2635 = vadd.f32 %v1872, %v2569
        %v2636 = vadd.f32 %v1875, %v2572
        %v2637 = vadd.f32 %v1880, %v2577
        %v2638 = vadd.f32 %v1883, %v2580
        %v2639 = vadd.f32 %v1888, %v2585
        %v2640 = vadd.f32 %v1891, %v2588
        %v2641 = vadd.f32 %v1896, %v2593
        %v2642 = vadd.f32 %v1899, %v2596
        %v2643 = vadd.f32 %v1904, %v2601
        %v2644 = vadd.f32 %v1907, %v2604
        %v2645 = vadd.f32 %v1912, %v2609
        %v2646 = vadd.f32 %v1915, %v2612
        %v2647 = vld [vmem:[%s925] sm:$0x8]
        %v2648 = vld [vmem:[%s925 + $0x4] sm:$0xf]
        %v2649 = vld [vmem:[%s925 + $0x8] sm:$0xf]
        %v2650 = vld [vmem:[%s925 + $0x10] sm:$0x8]
        %v2651 = vld [vmem:[%s925 + $0x14] sm:$0xf]
        %v2652 = vld [vmem:[%s925 + $0x18] sm:$0xf]
        %v2653 = vld [vmem:[%s925 + $0x20] sm:$0x8]
        %v2654 = vld [vmem:[%s925 + $0x24] sm:$0xf]
        %v2655 = vld [vmem:[%s925 + $0x28] sm:$0xf]
        %v2656 = vld [vmem:[%s925 + $0x30] sm:$0x8]
        %v2657 = vld [vmem:[%s925 + $0x34] sm:$0xf]
        %v2658 = vld [vmem:[%s925 + $0x38] sm:$0xf]
        %v2659 = vld [vmem:[%s925 + $0x40] sm:$0x8]
        %v2660 = vld [vmem:[%s925 + $0x44] sm:$0xf]
        %v2661 = vld [vmem:[%s925 + $0x48] sm:$0xf]
        %v2662 = vld [vmem:[%s925 + $0x50] sm:$0x8]
        %v2663 = vld [vmem:[%s925 + $0x54] sm:$0xf]
        %v2664 = vld [vmem:[%s925 + $0x58] sm:$0xf]
        %v2665 = vld [vmem:[%s925 + $0x60] sm:$0x8]
        %v2666 = vld [vmem:[%s925 + $0x64] sm:$0xf]
        %v2667 = vld [vmem:[%s925 + $0x68] sm:$0xf]
        %v2668 = vld [vmem:[%s925 + $0x70] sm:$0x8]
        %v2669 = vld [vmem:[%s925 + $0x74] sm:$0xf]
        %v2670 = vld [vmem:[%s925 + $0x78] sm:$0xf]
        %v2671 = vld [vmem:[%s925 + $0x80] sm:$0x8]
        %v2672 = vld [vmem:[%s925 + $0x84] sm:$0xf]
        %v2673 = vld [vmem:[%s925 + $0x88] sm:$0xf]
        %v2674 = vld [vmem:[%s925 + $0x90] sm:$0x8]
        %v2675 = vld [vmem:[%s925 + $0x94] sm:$0xf]
        %v2676 = vld [vmem:[%s925 + $0x98] sm:$0xf]
        %v2677 = vld [vmem:[%s925 + $0xa0] sm:$0x8]
        %v2678 = vld [vmem:[%s925 + $0xa4] sm:$0xf]
        %v2679 = vld [vmem:[%s925 + $0xa8] sm:$0xf]
        %v2680 = vld [vmem:[%s925 + $0xb0] sm:$0x8]
        %v2681 = vld [vmem:[%s925 + $0xb4] sm:$0xf]
        %v2682 = vld [vmem:[%s925 + $0xb8] sm:$0xf]
        %v2683 = vld [vmem:[%s925 + $0xc0] sm:$0x8]
        %v2684 = vld [vmem:[%s925 + $0xc4] sm:$0xf]
        %v2685 = vld [vmem:[%s925 + $0xc8] sm:$0xf]
        %v2686 = vld [vmem:[%s925 + $0xd0] sm:$0x8]
        %v2687 = vld [vmem:[%s925 + $0xd4] sm:$0xf]
        %v2688 = vld [vmem:[%s925 + $0xd8] sm:$0xf]
        %v2689 = vld [vmem:[%s925 + $0xe0] sm:$0x8]
        %v2690 = vld [vmem:[%s925 + $0xe4] sm:$0xf]
        %v2691 = vld [vmem:[%s925 + $0xe8] sm:$0xf]
        %v2692 = vld [vmem:[%s925 + $0xf0] sm:$0x8]
        %v2693 = vld [vmem:[%s925 + $0xf4] sm:$0xf]
        %v2694 = vld [vmem:[%s925 + $0xf8] sm:$0xf]
        %v2696 = vshrl.u32 %v2647, 16
        %v2698 = vrot.slane %v2696, 7
        %v2699 = vrot.slane %v2698, 4
        %v2701 = vshrl.u32 %v2648, 16
        %v2703 = vrot.slane %v2701, 7
        %v2704 = vshll.u32 %v2648, 16
        %v2706 = vor.u32 %v2703, %v2704
        %v2707 = vsel %vm1008, %v2699, %v2706
        %v2708 = vrot.slane %v2703, 4
        %v2710 = vshrl.u32 %v2649, 16
        %v2712 = vrot.slane %v2710, 7
        %v2713 = vshll.u32 %v2649, 16
        %v2715 = vor.u32 %v2712, %v2713
        %v2716 = vsel %vm1008, %v2708, %v2715
        %v2718 = vshrl.u32 %v2650, 16
        %v2720 = vrot.slane %v2718, 7
        %v2721 = vrot.slane %v2720, 4
        %v2723 = vshrl.u32 %v2651, 16
        %v2725 = vrot.slane %v2723, 7
        %v2726 = vshll.u32 %v2651, 16
        %v2728 = vor.u32 %v2725, %v2726
        %v2729 = vsel %vm1008, %v2721, %v2728
        %v2730 = vrot.slane %v2725, 4
        %v2732 = vshrl.u32 %v2652, 16
        %v2734 = vrot.slane %v2732, 7
        %v2735 = vshll.u32 %v2652, 16
        %v2737 = vor.u32 %v2734, %v2735
        %v2738 = vsel %vm1008, %v2730, %v2737
        %v2740 = vshrl.u32 %v2653, 16
        %v2742 = vrot.slane %v2740, 7
        %v2743 = vrot.slane %v2742, 4
        %v2745 = vshrl.u32 %v2654, 16
        %v2747 = vrot.slane %v2745, 7
        %v2748 = vshll.u32 %v2654, 16
        %v2750 = vor.u32 %v2747, %v2748
        %v2751 = vsel %vm1008, %v2743, %v2750
        %v2752 = vrot.slane %v2747, 4
        %v2754 = vshrl.u32 %v2655, 16
        %v2756 = vrot.slane %v2754, 7
        %v2757 = vshll.u32 %v2655, 16
        %v2759 = vor.u32 %v2756, %v2757
        %v2760 = vsel %vm1008, %v2752, %v2759
        %v2762 = vshrl.u32 %v2656, 16
        %v2764 = vrot.slane %v2762, 7
        %v2765 = vrot.slane %v2764, 4
        %v2767 = vshrl.u32 %v2657, 16
        %v2769 = vrot.slane %v2767, 7
        %v2770 = vshll.u32 %v2657, 16
        %v2772 = vor.u32 %v2769, %v2770
        %v2773 = vsel %vm1008, %v2765, %v2772
        %v2774 = vrot.slane %v2769, 4
        %v2776 = vshrl.u32 %v2658, 16
        %v2778 = vrot.slane %v2776, 7
        %v2779 = vshll.u32 %v2658, 16
        %v2781 = vor.u32 %v2778, %v2779
        %v2782 = vsel %vm1008, %v2774, %v2781
        %v2784 = vshrl.u32 %v2659, 16
        %v2786 = vrot.slane %v2784, 7
        %v2787 = vrot.slane %v2786, 4
        %v2789 = vshrl.u32 %v2660, 16
        %v2791 = vrot.slane %v2789, 7
        %v2792 = vshll.u32 %v2660, 16
        %v2794 = vor.u32 %v2791, %v2792
        %v2795 = vsel %vm1008, %v2787, %v2794
        %v2796 = vrot.slane %v2791, 4
        %v2798 = vshrl.u32 %v2661, 16
        %v2800 = vrot.slane %v2798, 7
        %v2801 = vshll.u32 %v2661, 16
        %v2803 = vor.u32 %v2800, %v2801
        %v2804 = vsel %vm1008, %v2796, %v2803
        %v2806 = vshrl.u32 %v2662, 16
        %v2808 = vrot.slane %v2806, 7
        %v2809 = vrot.slane %v2808, 4
        %v2811 = vshrl.u32 %v2663, 16
        %v2813 = vrot.slane %v2811, 7
        %v2814 = vshll.u32 %v2663, 16
        %v2816 = vor.u32 %v2813, %v2814
        %v2817 = vsel %vm1008, %v2809, %v2816
        %v2818 = vrot.slane %v2813, 4
        %v2820 = vshrl.u32 %v2664, 16
        %v2822 = vrot.slane %v2820, 7
        %v2823 = vshll.u32 %v2664, 16
        %v2825 = vor.u32 %v2822, %v2823
        %v2826 = vsel %vm1008, %v2818, %v2825
        %v2828 = vshrl.u32 %v2665, 16
        %v2830 = vrot.slane %v2828, 7
        %v2831 = vrot.slane %v2830, 4
        %v2833 = vshrl.u32 %v2666, 16
        %v2835 = vrot.slane %v2833, 7
        %v2836 = vshll.u32 %v2666, 16
        %v2838 = vor.u32 %v2835, %v2836
        %v2839 = vsel %vm1008, %v2831, %v2838
        %v2840 = vrot.slane %v2835, 4
        %v2842 = vshrl.u32 %v2667, 16
        %v2844 = vrot.slane %v2842, 7
        %v2845 = vshll.u32 %v2667, 16
        %v2847 = vor.u32 %v2844, %v2845
        %v2848 = vsel %vm1008, %v2840, %v2847
        %v2850 = vshrl.u32 %v2668, 16
        %v2852 = vrot.slane %v2850, 7
        %v2853 = vrot.slane %v2852, 4
        %v2855 = vshrl.u32 %v2669, 16
        %v2857 = vrot.slane %v2855, 7
        %v2858 = vshll.u32 %v2669, 16
        %v2860 = vor.u32 %v2857, %v2858
        %v2861 = vsel %vm1008, %v2853, %v2860
        %v2862 = vrot.slane %v2857, 4
        %v2864 = vshrl.u32 %v2670, 16
        %v2866 = vrot.slane %v2864, 7
        %v2867 = vshll.u32 %v2670, 16
        %v2869 = vor.u32 %v2866, %v2867
        %v2870 = vsel %vm1008, %v2862, %v2869
        %v2872 = vshrl.u32 %v2671, 16
        %v2874 = vrot.slane %v2872, 7
        %v2875 = vrot.slane %v2874, 4
        %v2877 = vshrl.u32 %v2672, 16
        %v2879 = vrot.slane %v2877, 7
        %v2880 = vshll.u32 %v2672, 16
        %v2882 = vor.u32 %v2879, %v2880
        %v2883 = vsel %vm1008, %v2875, %v2882
        %v2884 = vrot.slane %v2879, 4
        %v2886 = vshrl.u32 %v2673, 16
        %v2888 = vrot.slane %v2886, 7
        %v2889 = vshll.u32 %v2673, 16
        %v2891 = vor.u32 %v2888, %v2889
        %v2892 = vsel %vm1008, %v2884, %v2891
        %v2894 = vshrl.u32 %v2674, 16
        %v2896 = vrot.slane %v2894, 7
        %v2897 = vrot.slane %v2896, 4
        %v2899 = vshrl.u32 %v2675, 16
        %v2901 = vrot.slane %v2899, 7
        %v2902 = vshll.u32 %v2675, 16
        %v2904 = vor.u32 %v2901, %v2902
        %v2905 = vsel %vm1008, %v2897, %v2904
        %v2906 = vrot.slane %v2901, 4
        %v2908 = vshrl.u32 %v2676, 16
        %v2910 = vrot.slane %v2908, 7
        %v2911 = vshll.u32 %v2676, 16
        %v2913 = vor.u32 %v2910, %v2911
        %v2914 = vsel %vm1008, %v2906, %v2913
        %v2916 = vshrl.u32 %v2677, 16
        %v2918 = vrot.slane %v2916, 7
        %v2919 = vrot.slane %v2918, 4
        %v2921 = vshrl.u32 %v2678, 16
        %v2923 = vrot.slane %v2921, 7
        %v2924 = vshll.u32 %v2678, 16
        %v2926 = vor.u32 %v2923, %v2924
        %v2927 = vsel %vm1008, %v2919, %v2926
        %v2928 = vrot.slane %v2923, 4
        %v2930 = vshrl.u32 %v2679, 16
        %v2932 = vrot.slane %v2930, 7
        %v2933 = vshll.u32 %v2679, 16
        %v2935 = vor.u32 %v2932, %v2933
        %v2936 = vsel %vm1008, %v2928, %v2935
        %v2938 = vshrl.u32 %v2680, 16
        %v2940 = vrot.slane %v2938, 7
        %v2941 = vrot.slane %v2940, 4
        %v2943 = vshrl.u32 %v2681, 16
        %v2945 = vrot.slane %v2943, 7
        %v2946 = vshll.u32 %v2681, 16
        %v2948 = vor.u32 %v2945, %v2946
        %v2949 = vsel %vm1008, %v2941, %v2948
        %v2950 = vrot.slane %v2945, 4
        %v2952 = vshrl.u32 %v2682, 16
        %v2954 = vrot.slane %v2952, 7
        %v2955 = vshll.u32 %v2682, 16
        %v2957 = vor.u32 %v2954, %v2955
        %v2958 = vsel %vm1008, %v2950, %v2957
        %v2960 = vshrl.u32 %v2683, 16
        %v2962 = vrot.slane %v2960, 7
        %v2963 = vrot.slane %v2962, 4
        %v2965 = vshrl.u32 %v2684, 16
        %v2967 = vrot.slane %v2965, 7
        %v2968 = vshll.u32 %v2684, 16
        %v2970 = vor.u32 %v2967, %v2968
        %v2971 = vsel %vm1008, %v2963, %v2970
        %v2972 = vrot.slane %v2967, 4
        %v2974 = vshrl.u32 %v2685, 16
        %v2976 = vrot.slane %v2974, 7
        %v2977 = vshll.u32 %v2685, 16
        %v2979 = vor.u32 %v2976, %v2977
        %v2980 = vsel %vm1008, %v2972, %v2979
        %v2982 = vshrl.u32 %v2686, 16
        %v2984 = vrot.slane %v2982, 7
        %v2985 = vrot.slane %v2984, 4
        %v2987 = vshrl.u32 %v2687, 16
        %v2989 = vrot.slane %v2987, 7
        %v2990 = vshll.u32 %v2687, 16
        %v2992 = vor.u32 %v2989, %v2990
        %v2993 = vsel %vm1008, %v2985, %v2992
        %v2994 = vrot.slane %v2989, 4
        %v2996 = vshrl.u32 %v2688, 16
        %v2998 = vrot.slane %v2996, 7
        %v2999 = vshll.u32 %v2688, 16
        %v3001 = vor.u32 %v2998, %v2999
        %v3002 = vsel %vm1008, %v2994, %v3001
        %v3004 = vshrl.u32 %v2689, 16
        %v3006 = vrot.slane %v3004, 7
        %v3007 = vrot.slane %v3006, 4
        %v3009 = vshrl.u32 %v2690, 16
        %v3011 = vrot.slane %v3009, 7
        %v3012 = vshll.u32 %v2690, 16
        %v3014 = vor.u32 %v3011, %v3012
        %v3015 = vsel %vm1008, %v3007, %v3014
        %v3016 = vrot.slane %v3011, 4
        %v3018 = vshrl.u32 %v2691, 16
        %v3020 = vrot.slane %v3018, 7
        %v3021 = vshll.u32 %v2691, 16
        %v3023 = vor.u32 %v3020, %v3021
        %v3024 = vsel %vm1008, %v3016, %v3023
        %v3026 = vshrl.u32 %v2692, 16
        %v3028 = vrot.slane %v3026, 7
        %v3029 = vrot.slane %v3028, 4
        %v3031 = vshrl.u32 %v2693, 16
        %v3033 = vrot.slane %v3031, 7
        %v3034 = vshll.u32 %v2693, 16
        %v3036 = vor.u32 %v3033, %v3034
        %v3037 = vsel %vm1008, %v3029, %v3036
        %v3038 = vrot.slane %v3033, 4
        %v3040 = vshrl.u32 %v2694, 16
        %v3042 = vrot.slane %v3040, 7
        %v3043 = vshll.u32 %v2694, 16
        %v3045 = vor.u32 %v3042, %v3043
        %v3046 = vsel %vm1008, %v3038, %v3045
        %s3047 = scalar_lea.vmem %s4, 6
        %v3048 = vld [vmem:[%s3047] sm:$0x3]
        %v3049 = vunpack.c.l.b16 %v2707
        %v3050 = vunpack.c.l.b16 %v2716
        %v3051 = vunpack.c.l.b16 %v2729
        %v3052 = vunpack.c.l.b16 %v2738
        %v3053 = vunpack.c.l.b16 %v2751
        %v3054 = vunpack.c.l.b16 %v2760
        %v3055 = vunpack.c.l.b16 %v2773
        %v3056 = vunpack.c.l.b16 %v2782
        %v3057 = vunpack.c.l.b16 %v2795
        %v3058 = vunpack.c.l.b16 %v2804
        %v3059 = vunpack.c.l.b16 %v2817
        %v3060 = vunpack.c.l.b16 %v2826
        %v3061 = vunpack.c.l.b16 %v2839
        %v3062 = vunpack.c.l.b16 %v2848
        %v3063 = vunpack.c.l.b16 %v2861
        %v3064 = vunpack.c.l.b16 %v2870
        %v3065 = vunpack.c.l.b16 %v2883
        %v3066 = vunpack.c.l.b16 %v2892
        %v3067 = vunpack.c.l.b16 %v2905
        %v3068 = vunpack.c.l.b16 %v2914
        %v3069 = vunpack.c.l.b16 %v2927
        %v3070 = vunpack.c.l.b16 %v2936
        %v3071 = vunpack.c.l.b16 %v2949
        %v3072 = vunpack.c.l.b16 %v2958
        %v3073 = vunpack.c.l.b16 %v2971
        %v3074 = vunpack.c.l.b16 %v2980
        %v3075 = vunpack.c.l.b16 %v2993
        %v3076 = vunpack.c.l.b16 %v3002
        %v3077 = vunpack.c.l.b16 %v3015
        %v3078 = vunpack.c.l.b16 %v3024
        %v3079 = vunpack.c.l.b16 %v3037
        %v3080 = vunpack.c.l.b16 %v3046
        %v3081 = vpack.c.b16 %v3050, %v3049
        %v3082 = vpack.c.b16 %v3052, %v3051
        %v3083 = vpack.c.b16 %v3054, %v3053
        %v3084 = vpack.c.b16 %v3056, %v3055
        %v3085 = vpack.c.b16 %v3058, %v3057
        %v3086 = vpack.c.b16 %v3060, %v3059
        %v3087 = vpack.c.b16 %v3062, %v3061
        %v3088 = vpack.c.b16 %v3064, %v3063
        %v3089 = vpack.c.b16 %v3066, %v3065
        %v3090 = vpack.c.b16 %v3068, %v3067
        %v3091 = vpack.c.b16 %v3070, %v3069
        %v3092 = vpack.c.b16 %v3072, %v3071
        %v3093 = vpack.c.b16 %v3074, %v3073
        %v3094 = vpack.c.b16 %v3076, %v3075
        %v3095 = vpack.c.b16 %v3078, %v3077
        %v3096 = vpack.c.b16 %v3080, %v3079
        %v3098 = vsel %vm1444, %v3081, 0
        %v3101 = vsel %vm1444, %v3082, 0
        %v3104 = vsel %vm1444, %v3083, 0
        %v3107 = vsel %vm1444, %v3084, 0
        %v3110 = vsel %vm1444, %v3085, 0
        %v3113 = vsel %vm1444, %v3086, 0
        %v3116 = vsel %vm1444, %v3087, 0
        %v3119 = vsel %vm1444, %v3088, 0
        %v3122 = vsel %vm1444, %v3089, 0
        %v3125 = vsel %vm1444, %v3090, 0
        %v3128 = vsel %vm1444, %v3091, 0
        %v3131 = vsel %vm1444, %v3092, 0
        %v3134 = vsel %vm1444, %v3093, 0
        %v3137 = vsel %vm1444, %v3094, 0
        %v3140 = vsel %vm1444, %v3095, 0
        %v3143 = vsel %vm1444, %v3096, 0
        %v3146 = vsel %vm1493, %v3048, 0
        %3148 = vmatprep.subr.bf16.mxu0 0
        %3149 = vmatpush1.bf16.msra.mxu0 0
        %3150 = vmatprep.subr.bf16.mxu0 0
        %3151 = vmatpush1.bf16.msra.mxu0 0
        %3152 = vmatprep.subr.bf16.mxu0 0
        %3153 = vmatpush1.bf16.msra.mxu0 0
        %3154 = vmatprep.subr.bf16.mxu0 0
        %3155 = vmatpush1.bf16.msra.mxu0 0
        %3156 = vmatprep.subr.bf16.mxu0 0
        %3157 = vmatpush1.bf16.msra.mxu0 0
        %3158 = vmatprep.subr.bf16.mxu0 0
        %3159 = vmatpush1.bf16.msra.mxu0 0
        %3160 = vmatprep.subr.bf16.mxu0 0
        %3161 = vmatpush1.bf16.msra.mxu0 0
        %3162 = vmatprep.subr.bf16.mxu0 0
        %3163 = vmatpush1.bf16.msra.mxu0 %v3146
        %3164 = vmatprep.subr.bf16.mxu0 0
        %3165 = vmatpush2.bf16.msra.mxu0 0
        %3166 = vmatprep.subr.bf16.mxu0 0
        %3167 = vmatpush2.bf16.msra.mxu0 0
        %3168 = vmatprep.subr.bf16.mxu0 0
        %3169 = vmatpush2.bf16.msra.mxu0 0
        %3170 = vmatprep.subr.bf16.mxu0 0
        %3171 = vmatpush2.bf16.msra.mxu0 0
        %3172 = vmatprep.subr.bf16.mxu0 0
        %3173 = vmatpush2.bf16.msra.mxu0 0
        %3174 = vmatprep.subr.bf16.mxu0 0
        %3175 = vmatpush2.bf16.msra.mxu0 0
        %3176 = vmatprep.subr.bf16.mxu0 0
        %3177 = vmatpush2.bf16.msra.mxu0 0
        %3178 = vmatprep.subr.bf16.mxu0 0
        %3179 = vmatpush2.bf16.msra.mxu0 0
        %3180 = vmatprep.mubr.bf16.mxu0 0
        %3181 = vmatmul.mubr.bf16.gmra.mxu0 %v3098
        %v3182 = vpop.f32.mrf.mxu0
        %v3183 = vadd.f32 0.0, %v3182
        %v3184 = vpop.f32.mrf.mxu0
        %v3185 = vpop.f32.mrf.mxu0
        %v3186 = vadd.f32 0.0, %v3185
        %v3187 = vpop.f32.mrf.mxu0
        %3188 = vmatprep.mubr.bf16.mxu0 0
        %3189 = vmatmul.mubr.bf16.gmra.mxu0 %v3101
        %v3190 = vpop.f32.mrf.mxu0
        %v3191 = vadd.f32 0.0, %v3190
        %v3192 = vpop.f32.mrf.mxu0
        %v3193 = vpop.f32.mrf.mxu0
        %v3194 = vadd.f32 0.0, %v3193
        %v3195 = vpop.f32.mrf.mxu0
        %3196 = vmatprep.mubr.bf16.mxu0 0
        %3197 = vmatmul.mubr.bf16.gmra.mxu0 %v3104
        %v3198 = vpop.f32.mrf.mxu0
        %v3199 = vadd.f32 0.0, %v3198
        %v3200 = vpop.f32.mrf.mxu0
        %v3201 = vpop.f32.mrf.mxu0
        %v3202 = vadd.f32 0.0, %v3201
        %v3203 = vpop.f32.mrf.mxu0
        %3204 = vmatprep.mubr.bf16.mxu0 0
        %3205 = vmatmul.mubr.bf16.gmra.mxu0 %v3107
        %v3206 = vpop.f32.mrf.mxu0
        %v3207 = vadd.f32 0.0, %v3206
        %v3208 = vpop.f32.mrf.mxu0
        %v3209 = vpop.f32.mrf.mxu0
        %v3210 = vadd.f32 0.0, %v3209
        %v3211 = vpop.f32.mrf.mxu0
        %3212 = vmatprep.mubr.bf16.mxu0 0
        %3213 = vmatmul.mubr.bf16.gmra.mxu0 %v3110
        %v3214 = vpop.f32.mrf.mxu0
        %v3215 = vadd.f32 0.0, %v3214
        %v3216 = vpop.f32.mrf.mxu0
        %v3217 = vpop.f32.mrf.mxu0
        %v3218 = vadd.f32 0.0, %v3217
        %v3219 = vpop.f32.mrf.mxu0
        %3220 = vmatprep.mubr.bf16.mxu0 0
        %3221 = vmatmul.mubr.bf16.gmra.mxu0 %v3113
        %v3222 = vpop.f32.mrf.mxu0
        %v3223 = vadd.f32 0.0, %v3222
        %v3224 = vpop.f32.mrf.mxu0
        %v3225 = vpop.f32.mrf.mxu0
        %v3226 = vadd.f32 0.0, %v3225
        %v3227 = vpop.f32.mrf.mxu0
        %3228 = vmatprep.mubr.bf16.mxu0 0
        %3229 = vmatmul.mubr.bf16.gmra.mxu0 %v3116
        %v3230 = vpop.f32.mrf.mxu0
        %v3231 = vadd.f32 0.0, %v3230
        %v3232 = vpop.f32.mrf.mxu0
        %v3233 = vpop.f32.mrf.mxu0
        %v3234 = vadd.f32 0.0, %v3233
        %v3235 = vpop.f32.mrf.mxu0
        %3236 = vmatprep.mubr.bf16.mxu0 0
        %3237 = vmatmul.mubr.bf16.gmra.mxu0 %v3119
        %v3238 = vpop.f32.mrf.mxu0
        %v3239 = vadd.f32 0.0, %v3238
        %v3240 = vpop.f32.mrf.mxu0
        %v3241 = vpop.f32.mrf.mxu0
        %v3242 = vadd.f32 0.0, %v3241
        %v3243 = vpop.f32.mrf.mxu0
        %3244 = vmatprep.mubr.bf16.mxu0 0
        %3245 = vmatmul.mubr.bf16.gmra.mxu0 %v3122
        %v3246 = vpop.f32.mrf.mxu0
        %v3247 = vadd.f32 0.0, %v3246
        %v3248 = vpop.f32.mrf.mxu0
        %v3249 = vpop.f32.mrf.mxu0
        %v3250 = vadd.f32 0.0, %v3249
        %v3251 = vpop.f32.mrf.mxu0
        %3252 = vmatprep.mubr.bf16.mxu0 0
        %3253 = vmatmul.mubr.bf16.gmra.mxu0 %v3125
        %v3254 = vpop.f32.mrf.mxu0
        %v3255 = vadd.f32 0.0, %v3254
        %v3256 = vpop.f32.mrf.mxu0
        %v3257 = vpop.f32.mrf.mxu0
        %v3258 = vadd.f32 0.0, %v3257
        %v3259 = vpop.f32.mrf.mxu0
        %3260 = vmatprep.mubr.bf16.mxu0 0
        %3261 = vmatmul.mubr.bf16.gmra.mxu0 %v3128
        %v3262 = vpop.f32.mrf.mxu0
        %v3263 = vadd.f32 0.0, %v3262
        %v3264 = vpop.f32.mrf.mxu0
        %v3265 = vpop.f32.mrf.mxu0
        %v3266 = vadd.f32 0.0, %v3265
        %v3267 = vpop.f32.mrf.mxu0
        %3268 = vmatprep.mubr.bf16.mxu0 0
        %3269 = vmatmul.mubr.bf16.gmra.mxu0 %v3131
        %v3270 = vpop.f32.mrf.mxu0
        %v3271 = vadd.f32 0.0, %v3270
        %v3272 = vpop.f32.mrf.mxu0
        %v3273 = vpop.f32.mrf.mxu0
        %v3274 = vadd.f32 0.0, %v3273
        %v3275 = vpop.f32.mrf.mxu0
        %3276 = vmatprep.mubr.bf16.mxu0 0
        %3277 = vmatmul.mubr.bf16.gmra.mxu0 %v3134
        %v3278 = vpop.f32.mrf.mxu0
        %v3279 = vadd.f32 0.0, %v3278
        %v3280 = vpop.f32.mrf.mxu0
        %v3281 = vpop.f32.mrf.mxu0
        %v3282 = vadd.f32 0.0, %v3281
        %v3283 = vpop.f32.mrf.mxu0
        %3284 = vmatprep.mubr.bf16.mxu0 0
        %3285 = vmatmul.mubr.bf16.gmra.mxu0 %v3137
        %v3286 = vpop.f32.mrf.mxu0
        %v3287 = vadd.f32 0.0, %v3286
        %v3288 = vpop.f32.mrf.mxu0
        %v3289 = vpop.f32.mrf.mxu0
        %v3290 = vadd.f32 0.0, %v3289
        %v3291 = vpop.f32.mrf.mxu0
        %3292 = vmatprep.mubr.bf16.mxu0 0
        %3293 = vmatmul.mubr.bf16.gmra.mxu0 %v3140
        %v3294 = vpop.f32.mrf.mxu0
        %v3295 = vadd.f32 0.0, %v3294
        %v3296 = vpop.f32.mrf.mxu0
        %v3297 = vpop.f32.mrf.mxu0
        %v3298 = vadd.f32 0.0, %v3297
        %v3299 = vpop.f32.mrf.mxu0
        %3300 = vmatprep.mubr.bf16.mxu0 0
        %3301 = vmatmul.mubr.bf16.gmra.mxu0 %v3143
        %v3302 = vpop.f32.mrf.mxu0
        %v3303 = vadd.f32 0.0, %v3302
        %v3304 = vpop.f32.mrf.mxu0
        %v3305 = vpop.f32.mrf.mxu0
        %v3306 = vadd.f32 0.0, %v3305
        %v3307 = vpop.f32.mrf.mxu0
        %3308 = vdwg.mxu0
        %v3309 = vadd.f32 %v2615, %v3183
        %v3310 = vadd.f32 %v2616, %v3186
        %v3311 = vadd.f32 %v2617, %v3191
        %v3312 = vadd.f32 %v2618, %v3194
        %v3313 = vadd.f32 %v2619, %v3199
        %v3314 = vadd.f32 %v2620, %v3202
        %v3315 = vadd.f32 %v2621, %v3207
        %v3316 = vadd.f32 %v2622, %v3210
        %v3317 = vadd.f32 %v2623, %v3215
        %v3318 = vadd.f32 %v2624, %v3218
        %v3319 = vadd.f32 %v2625, %v3223
        %v3320 = vadd.f32 %v2626, %v3226
        %v3321 = vadd.f32 %v2627, %v3231
        %v3322 = vadd.f32 %v2628, %v3234
        %v3323 = vadd.f32 %v2629, %v3239
        %v3324 = vadd.f32 %v2630, %v3242
        %v3325 = vadd.f32 %v2631, %v3247
        %v3326 = vadd.f32 %v2632, %v3250
        %v3327 = vadd.f32 %v2633, %v3255
        %v3328 = vadd.f32 %v2634, %v3258
        %v3329 = vadd.f32 %v2635, %v3263
        %v3330 = vadd.f32 %v2636, %v3266
        %v3331 = vadd.f32 %v2637, %v3271
        %v3332 = vadd.f32 %v2638, %v3274
        %v3333 = vadd.f32 %v2639, %v3279
        %v3334 = vadd.f32 %v2640, %v3282
        %v3335 = vadd.f32 %v2641, %v3287
        %v3336 = vadd.f32 %v2642, %v3290
        %v3337 = vadd.f32 %v2643, %v3295
        %v3338 = vadd.f32 %v2644, %v3298
        %v3339 = vadd.f32 %v2645, %v3303
        %v3340 = vadd.f32 %v2646, %v3306
        %s3341 = scalar_lea.vmem %s4, 8
        %v3342 = vld [vmem:[%s3341] sm:$0x3]
        %v3375 = vunpack.c.l.b16 %v2648
        %v3376 = vunpack.c.l.b16 %v2649
        %v3377 = vunpack.c.l.b16 %v2651
        %v3378 = vunpack.c.l.b16 %v2652
        %v3379 = vunpack.c.l.b16 %v2654
        %v3380 = vunpack.c.l.b16 %v2655
        %v3381 = vunpack.c.l.b16 %v2657
        %v3382 = vunpack.c.l.b16 %v2658
        %v3383 = vunpack.c.l.b16 %v2660
        %v3384 = vunpack.c.l.b16 %v2661
        %v3385 = vunpack.c.l.b16 %v2663
        %v3386 = vunpack.c.l.b16 %v2664
        %v3387 = vunpack.c.l.b16 %v2666
        %v3388 = vunpack.c.l.b16 %v2667
        %v3389 = vunpack.c.l.b16 %v2669
        %v3390 = vunpack.c.l.b16 %v2670
        %v3391 = vunpack.c.l.b16 %v2672
        %v3392 = vunpack.c.l.b16 %v2673
        %v3393 = vunpack.c.l.b16 %v2675
        %v3394 = vunpack.c.l.b16 %v2676
        %v3395 = vunpack.c.l.b16 %v2678
        %v3396 = vunpack.c.l.b16 %v2679
        %v3397 = vunpack.c.l.b16 %v2681
        %v3398 = vunpack.c.l.b16 %v2682
        %v3399 = vunpack.c.l.b16 %v2684
        %v3400 = vunpack.c.l.b16 %v2685
        %v3401 = vunpack.c.l.b16 %v2687
        %v3402 = vunpack.c.l.b16 %v2688
        %v3403 = vunpack.c.l.b16 %v2690
        %v3404 = vunpack.c.l.b16 %v2691
        %v3405 = vunpack.c.l.b16 %v2693
        %v3406 = vunpack.c.l.b16 %v2694
        %v3407 = vpack.c.b16 %v3376, %v3375
        %v3408 = vpack.c.b16 %v3378, %v3377
        %v3409 = vpack.c.b16 %v3380, %v3379
        %v3410 = vpack.c.b16 %v3382, %v3381
        %v3411 = vpack.c.b16 %v3384, %v3383
        %v3412 = vpack.c.b16 %v3386, %v3385
        %v3413 = vpack.c.b16 %v3388, %v3387
        %v3414 = vpack.c.b16 %v3390, %v3389
        %v3415 = vpack.c.b16 %v3392, %v3391
        %v3416 = vpack.c.b16 %v3394, %v3393
        %v3417 = vpack.c.b16 %v3396, %v3395
        %v3418 = vpack.c.b16 %v3398, %v3397
        %v3419 = vpack.c.b16 %v3400, %v3399
        %v3420 = vpack.c.b16 %v3402, %v3401
        %v3421 = vpack.c.b16 %v3404, %v3403
        %v3422 = vpack.c.b16 %v3406, %v3405
        %v3424 = vsel %vm1444, %v3407, 0
        %v3427 = vsel %vm1444, %v3408, 0
        %v3430 = vsel %vm1444, %v3409, 0
        %v3433 = vsel %vm1444, %v3410, 0
        %v3436 = vsel %vm1444, %v3411, 0
        %v3439 = vsel %vm1444, %v3412, 0
        %v3442 = vsel %vm1444, %v3413, 0
        %v3445 = vsel %vm1444, %v3414, 0
        %v3448 = vsel %vm1444, %v3415, 0
        %v3451 = vsel %vm1444, %v3416, 0
        %v3454 = vsel %vm1444, %v3417, 0
        %v3457 = vsel %vm1444, %v3418, 0
        %v3460 = vsel %vm1444, %v3419, 0
        %v3463 = vsel %vm1444, %v3420, 0
        %v3466 = vsel %vm1444, %v3421, 0
        %v3469 = vsel %vm1444, %v3422, 0
        %v3472 = vsel %vm1493, %v3342, 0
        %3474 = vmatprep.subr.bf16.mxu0 0
        %3475 = vmatpush1.bf16.msra.mxu0 0
        %3476 = vmatprep.subr.bf16.mxu0 0
        %3477 = vmatpush1.bf16.msra.mxu0 0
        %3478 = vmatprep.subr.bf16.mxu0 0
        %3479 = vmatpush1.bf16.msra.mxu0 0
        %3480 = vmatprep.subr.bf16.mxu0 0
        %3481 = vmatpush1.bf16.msra.mxu0 0
        %3482 = vmatprep.subr.bf16.mxu0 0
        %3483 = vmatpush1.bf16.msra.mxu0 0
        %3484 = vmatprep.subr.bf16.mxu0 0
        %3485 = vmatpush1.bf16.msra.mxu0 0
        %3486 = vmatprep.subr.bf16.mxu0 0
        %3487 = vmatpush1.bf16.msra.mxu0 0
        %3488 = vmatprep.subr.bf16.mxu0 0
        %3489 = vmatpush1.bf16.msra.mxu0 %v3472
        %3490 = vmatprep.subr.bf16.mxu0 0
        %3491 = vmatpush2.bf16.msra.mxu0 0
        %3492 = vmatprep.subr.bf16.mxu0 0
        %3493 = vmatpush2.bf16.msra.mxu0 0
        %3494 = vmatprep.subr.bf16.mxu0 0
        %3495 = vmatpush2.bf16.msra.mxu0 0
        %3496 = vmatprep.subr.bf16.mxu0 0
        %3497 = vmatpush2.bf16.msra.mxu0 0
        %3498 = vmatprep.subr.bf16.mxu0 0
        %3499 = vmatpush2.bf16.msra.mxu0 0
        %3500 = vmatprep.subr.bf16.mxu0 0
        %3501 = vmatpush2.bf16.msra.mxu0 0
        %3502 = vmatprep.subr.bf16.mxu0 0
        %3503 = vmatpush2.bf16.msra.mxu0 0
        %3504 = vmatprep.subr.bf16.mxu0 0
        %3505 = vmatpush2.bf16.msra.mxu0 0
        %3506 = vmatprep.mubr.bf16.mxu0 0
        %3507 = vmatmul.mubr.bf16.gmra.mxu0 %v3424
        %v3508 = vpop.f32.mrf.mxu0
        %v3509 = vadd.f32 0.0, %v3508
        %v3510 = vpop.f32.mrf.mxu0
        %v3511 = vpop.f32.mrf.mxu0
        %v3512 = vadd.f32 0.0, %v3511
        %v3513 = vpop.f32.mrf.mxu0
        %3514 = vmatprep.mubr.bf16.mxu0 0
        %3515 = vmatmul.mubr.bf16.gmra.mxu0 %v3427
        %v3516 = vpop.f32.mrf.mxu0
        %v3517 = vadd.f32 0.0, %v3516
        %v3518 = vpop.f32.mrf.mxu0
        %v3519 = vpop.f32.mrf.mxu0
        %v3520 = vadd.f32 0.0, %v3519
        %v3521 = vpop.f32.mrf.mxu0
        %3522 = vmatprep.mubr.bf16.mxu0 0
        %3523 = vmatmul.mubr.bf16.gmra.mxu0 %v3430
        %v3524 = vpop.f32.mrf.mxu0
        %v3525 = vadd.f32 0.0, %v3524
        %v3526 = vpop.f32.mrf.mxu0
        %v3527 = vpop.f32.mrf.mxu0
        %v3528 = vadd.f32 0.0, %v3527
        %v3529 = vpop.f32.mrf.mxu0
        %3530 = vmatprep.mubr.bf16.mxu0 0
        %3531 = vmatmul.mubr.bf16.gmra.mxu0 %v3433
        %v3532 = vpop.f32.mrf.mxu0
        %v3533 = vadd.f32 0.0, %v3532
        %v3534 = vpop.f32.mrf.mxu0
        %v3535 = vpop.f32.mrf.mxu0
        %v3536 = vadd.f32 0.0, %v3535
        %v3537 = vpop.f32.mrf.mxu0
        %3538 = vmatprep.mubr.bf16.mxu0 0
        %3539 = vmatmul.mubr.bf16.gmra.mxu0 %v3436
        %v3540 = vpop.f32.mrf.mxu0
        %v3541 = vadd.f32 0.0, %v3540
        %v3542 = vpop.f32.mrf.mxu0
        %v3543 = vpop.f32.mrf.mxu0
        %v3544 = vadd.f32 0.0, %v3543
        %v3545 = vpop.f32.mrf.mxu0
        %3546 = vmatprep.mubr.bf16.mxu0 0
        %3547 = vmatmul.mubr.bf16.gmra.mxu0 %v3439
        %v3548 = vpop.f32.mrf.mxu0
        %v3549 = vadd.f32 0.0, %v3548
        %v3550 = vpop.f32.mrf.mxu0
        %v3551 = vpop.f32.mrf.mxu0
        %v3552 = vadd.f32 0.0, %v3551
        %v3553 = vpop.f32.mrf.mxu0
        %3554 = vmatprep.mubr.bf16.mxu0 0
        %3555 = vmatmul.mubr.bf16.gmra.mxu0 %v3442
        %v3556 = vpop.f32.mrf.mxu0
        %v3557 = vadd.f32 0.0, %v3556
        %v3558 = vpop.f32.mrf.mxu0
        %v3559 = vpop.f32.mrf.mxu0
        %v3560 = vadd.f32 0.0, %v3559
        %v3561 = vpop.f32.mrf.mxu0
        %3562 = vmatprep.mubr.bf16.mxu0 0
        %3563 = vmatmul.mubr.bf16.gmra.mxu0 %v3445
        %v3564 = vpop.f32.mrf.mxu0
        %v3565 = vadd.f32 0.0, %v3564
        %v3566 = vpop.f32.mrf.mxu0
        %v3567 = vpop.f32.mrf.mxu0
        %v3568 = vadd.f32 0.0, %v3567
        %v3569 = vpop.f32.mrf.mxu0
        %3570 = vmatprep.mubr.bf16.mxu0 0
        %3571 = vmatmul.mubr.bf16.gmra.mxu0 %v3448
        %v3572 = vpop.f32.mrf.mxu0
        %v3573 = vadd.f32 0.0, %v3572
        %v3574 = vpop.f32.mrf.mxu0
        %v3575 = vpop.f32.mrf.mxu0
        %v3576 = vadd.f32 0.0, %v3575
        %v3577 = vpop.f32.mrf.mxu0
        %3578 = vmatprep.mubr.bf16.mxu0 0
        %3579 = vmatmul.mubr.bf16.gmra.mxu0 %v3451
        %v3580 = vpop.f32.mrf.mxu0
        %v3581 = vadd.f32 0.0, %v3580
        %v3582 = vpop.f32.mrf.mxu0
        %v3583 = vpop.f32.mrf.mxu0
        %v3584 = vadd.f32 0.0, %v3583
        %v3585 = vpop.f32.mrf.mxu0
        %3586 = vmatprep.mubr.bf16.mxu0 0
        %3587 = vmatmul.mubr.bf16.gmra.mxu0 %v3454
        %v3588 = vpop.f32.mrf.mxu0
        %v3589 = vadd.f32 0.0, %v3588
        %v3590 = vpop.f32.mrf.mxu0
        %v3591 = vpop.f32.mrf.mxu0
        %v3592 = vadd.f32 0.0, %v3591
        %v3593 = vpop.f32.mrf.mxu0
        %3594 = vmatprep.mubr.bf16.mxu0 0
        %3595 = vmatmul.mubr.bf16.gmra.mxu0 %v3457
        %v3596 = vpop.f32.mrf.mxu0
        %v3597 = vadd.f32 0.0, %v3596
        %v3598 = vpop.f32.mrf.mxu0
        %v3599 = vpop.f32.mrf.mxu0
        %v3600 = vadd.f32 0.0, %v3599
        %v3601 = vpop.f32.mrf.mxu0
        %3602 = vmatprep.mubr.bf16.mxu0 0
        %3603 = vmatmul.mubr.bf16.gmra.mxu0 %v3460
        %v3604 = vpop.f32.mrf.mxu0
        %v3605 = vadd.f32 0.0, %v3604
        %v3606 = vpop.f32.mrf.mxu0
        %v3607 = vpop.f32.mrf.mxu0
        %v3608 = vadd.f32 0.0, %v3607
        %v3609 = vpop.f32.mrf.mxu0
        %3610 = vmatprep.mubr.bf16.mxu0 0
        %3611 = vmatmul.mubr.bf16.gmra.mxu0 %v3463
        %v3612 = vpop.f32.mrf.mxu0
        %v3613 = vadd.f32 0.0, %v3612
        %v3614 = vpop.f32.mrf.mxu0
        %v3615 = vpop.f32.mrf.mxu0
        %v3616 = vadd.f32 0.0, %v3615
        %v3617 = vpop.f32.mrf.mxu0
        %3618 = vmatprep.mubr.bf16.mxu0 0
        %3619 = vmatmul.mubr.bf16.gmra.mxu0 %v3466
        %v3620 = vpop.f32.mrf.mxu0
        %v3621 = vadd.f32 0.0, %v3620
        %v3622 = vpop.f32.mrf.mxu0
        %v3623 = vpop.f32.mrf.mxu0
        %v3624 = vadd.f32 0.0, %v3623
        %v3625 = vpop.f32.mrf.mxu0
        %3626 = vmatprep.mubr.bf16.mxu0 0
        %3627 = vmatmul.mubr.bf16.gmra.mxu0 %v3469
        %v3628 = vpop.f32.mrf.mxu0
        %v3629 = vadd.f32 0.0, %v3628
        %v3630 = vpop.f32.mrf.mxu0
        %v3631 = vpop.f32.mrf.mxu0
        %v3632 = vadd.f32 0.0, %v3631
        %v3633 = vpop.f32.mrf.mxu0
        %3634 = vdwg.mxu0
        %v3635 = vadd.f32 %v3309, %v3509
        %v3636 = vadd.f32 %v3310, %v3512
        %v3637 = vadd.f32 %v3311, %v3517
        %v3638 = vadd.f32 %v3312, %v3520
        %v3639 = vadd.f32 %v3313, %v3525
        %v3640 = vadd.f32 %v3314, %v3528
        %v3641 = vadd.f32 %v3315, %v3533
        %v3642 = vadd.f32 %v3316, %v3536
        %v3643 = vadd.f32 %v3317, %v3541
        %v3644 = vadd.f32 %v3318, %v3544
        %v3645 = vadd.f32 %v3319, %v3549
        %v3646 = vadd.f32 %v3320, %v3552
        %v3647 = vadd.f32 %v3321, %v3557
        %v3648 = vadd.f32 %v3322, %v3560
        %v3649 = vadd.f32 %v3323, %v3565
        %v3650 = vadd.f32 %v3324, %v3568
        %v3651 = vadd.f32 %v3325, %v3573
        %v3652 = vadd.f32 %v3326, %v3576
        %v3653 = vadd.f32 %v3327, %v3581
        %v3654 = vadd.f32 %v3328, %v3584
        %v3655 = vadd.f32 %v3329, %v3589
        %v3656 = vadd.f32 %v3330, %v3592
        %v3657 = vadd.f32 %v3331, %v3597
        %v3658 = vadd.f32 %v3332, %v3600
        %v3659 = vadd.f32 %v3333, %v3605
        %v3660 = vadd.f32 %v3334, %v3608
        %v3661 = vadd.f32 %v3335, %v3613
        %v3662 = vadd.f32 %v3336, %v3616
        %v3663 = vadd.f32 %v3337, %v3621
        %v3664 = vadd.f32 %v3338, %v3624
        %v3665 = vadd.f32 %v3339, %v3629
        %v3666 = vadd.f32 %v3340, %v3632
        %v3667 = vld [vmem:[%s925 + $0x4] sm:$0xf]
        %v3668 = vld [vmem:[%s925 + $0x8] sm:$0xf]
        %v3669 = vld [vmem:[%s925 + $0xc] sm:$0x1]
        %v3670 = vld [vmem:[%s925 + $0x14] sm:$0xf]
        %v3671 = vld [vmem:[%s925 + $0x18] sm:$0xf]
        %v3672 = vld [vmem:[%s925 + $0x1c] sm:$0x1]
        %v3673 = vld [vmem:[%s925 + $0x24] sm:$0xf]
        %v3674 = vld [vmem:[%s925 + $0x28] sm:$0xf]
        %v3675 = vld [vmem:[%s925 + $0x2c] sm:$0x1]
        %v3676 = vld [vmem:[%s925 + $0x34] sm:$0xf]
        %v3677 = vld [vmem:[%s925 + $0x38] sm:$0xf]
        %v3678 = vld [vmem:[%s925 + $0x3c] sm:$0x1]
        %v3679 = vld [vmem:[%s925 + $0x44] sm:$0xf]
        %v3680 = vld [vmem:[%s925 + $0x48] sm:$0xf]
        %v3681 = vld [vmem:[%s925 + $0x4c] sm:$0x1]
        %v3682 = vld [vmem:[%s925 + $0x54] sm:$0xf]
        %v3683 = vld [vmem:[%s925 + $0x58] sm:$0xf]
        %v3684 = vld [vmem:[%s925 + $0x5c] sm:$0x1]
        %v3685 = vld [vmem:[%s925 + $0x64] sm:$0xf]
        %v3686 = vld [vmem:[%s925 + $0x68] sm:$0xf]
        %v3687 = vld [vmem:[%s925 + $0x6c] sm:$0x1]
        %v3688 = vld [vmem:[%s925 + $0x74] sm:$0xf]
        %v3689 = vld [vmem:[%s925 + $0x78] sm:$0xf]
        %v3690 = vld [vmem:[%s925 + $0x7c] sm:$0x1]
        %v3691 = vld [vmem:[%s925 + $0x84] sm:$0xf]
        %v3692 = vld [vmem:[%s925 + $0x88] sm:$0xf]
        %v3693 = vld [vmem:[%s925 + $0x8c] sm:$0x1]
        %v3694 = vld [vmem:[%s925 + $0x94] sm:$0xf]
        %v3695 = vld [vmem:[%s925 + $0x98] sm:$0xf]
        %v3696 = vld [vmem:[%s925 + $0x9c] sm:$0x1]
        %v3697 = vld [vmem:[%s925 + $0xa4] sm:$0xf]
        %v3698 = vld [vmem:[%s925 + $0xa8] sm:$0xf]
        %v3699 = vld [vmem:[%s925 + $0xac] sm:$0x1]
        %v3700 = vld [vmem:[%s925 + $0xb4] sm:$0xf]
        %v3701 = vld [vmem:[%s925 + $0xb8] sm:$0xf]
        %v3702 = vld [vmem:[%s925 + $0xbc] sm:$0x1]
        %v3703 = vld [vmem:[%s925 + $0xc4] sm:$0xf]
        %v3704 = vld [vmem:[%s925 + $0xc8] sm:$0xf]
        %v3705 = vld [vmem:[%s925 + $0xcc] sm:$0x1]
        %v3706 = vld [vmem:[%s925 + $0xd4] sm:$0xf]
        %v3707 = vld [vmem:[%s925 + $0xd8] sm:$0xf]
        %v3708 = vld [vmem:[%s925 + $0xdc] sm:$0x1]
        %v3709 = vld [vmem:[%s925 + $0xe4] sm:$0xf]
        %v3710 = vld [vmem:[%s925 + $0xe8] sm:$0xf]
        %v3711 = vld [vmem:[%s925 + $0xec] sm:$0x1]
        %v3712 = vld [vmem:[%s925 + $0xf4] sm:$0xf]
        %v3713 = vld [vmem:[%s925 + $0xf8] sm:$0xf]
        %v3714 = vld [vmem:[%s925 + $0xfc] sm:$0x1]
        %v3716 = vshrl.u32 %v3667, 16
        %v3718 = vrot.slane %v3716, 4
        %v3719 = vshll.u32 %v3667, 16
        %v3721 = vrot.slane %v3719, 5
        %v3722 = vor.u32 %v3718, %v3721
        %v3723 = vrot.slane %v3722, 4
        %v3725 = vshll.u32 %v3668, 16
        %v3727 = vrot.slane %v3725, 5
        %v3728 = vsel %vm1968, %v3723, %v3727
        %v3729 = vshrl.u32 %v3668, 16
        %v3731 = vrot.slane %v3729, 4
        %v3732 = vor.u32 %v3731, %v3727
        %v3733 = vrot.slane %v3732, 4
        %v3735 = vshll.u32 %v3669, 16
        %v3737 = vrot.slane %v3735, 5
        %v3738 = vsel %vm1968, %v3733, %v3737
        %v3740 = vshrl.u32 %v3670, 16
        %v3742 = vrot.slane %v3740, 4
        %v3743 = vshll.u32 %v3670, 16
        %v3745 = vrot.slane %v3743, 5
        %v3746 = vor.u32 %v3742, %v3745
        %v3747 = vrot.slane %v3746, 4
        %v3749 = vshll.u32 %v3671, 16
        %v3751 = vrot.slane %v3749, 5
        %v3752 = vsel %vm1968, %v3747, %v3751
        %v3753 = vshrl.u32 %v3671, 16
        %v3755 = vrot.slane %v3753, 4
        %v3756 = vor.u32 %v3755, %v3751
        %v3757 = vrot.slane %v3756, 4
        %v3759 = vshll.u32 %v3672, 16
        %v3761 = vrot.slane %v3759, 5
        %v3762 = vsel %vm1968, %v3757, %v3761
        %v3764 = vshrl.u32 %v3673, 16
        %v3766 = vrot.slane %v3764, 4
        %v3767 = vshll.u32 %v3673, 16
        %v3769 = vrot.slane %v3767, 5
        %v3770 = vor.u32 %v3766, %v3769
        %v3771 = vrot.slane %v3770, 4
        %v3773 = vshll.u32 %v3674, 16
        %v3775 = vrot.slane %v3773, 5
        %v3776 = vsel %vm1968, %v3771, %v3775
        %v3777 = vshrl.u32 %v3674, 16
        %v3779 = vrot.slane %v3777, 4
        %v3780 = vor.u32 %v3779, %v3775
        %v3781 = vrot.slane %v3780, 4
        %v3783 = vshll.u32 %v3675, 16
        %v3785 = vrot.slane %v3783, 5
        %v3786 = vsel %vm1968, %v3781, %v3785
        %v3788 = vshrl.u32 %v3676, 16
        %v3790 = vrot.slane %v3788, 4
        %v3791 = vshll.u32 %v3676, 16
        %v3793 = vrot.slane %v3791, 5
        %v3794 = vor.u32 %v3790, %v3793
        %v3795 = vrot.slane %v3794, 4
        %v3797 = vshll.u32 %v3677, 16
        %v3799 = vrot.slane %v3797, 5
        %v3800 = vsel %vm1968, %v3795, %v3799
        %v3801 = vshrl.u32 %v3677, 16
        %v3803 = vrot.slane %v3801, 4
        %v3804 = vor.u32 %v3803, %v3799
        %v3805 = vrot.slane %v3804, 4
        %v3807 = vshll.u32 %v3678, 16
        %v3809 = vrot.slane %v3807, 5
        %v3810 = vsel %vm1968, %v3805, %v3809
        %v3812 = vshrl.u32 %v3679, 16
        %v3814 = vrot.slane %v3812, 4
        %v3815 = vshll.u32 %v3679, 16
        %v3817 = vrot.slane %v3815, 5
        %v3818 = vor.u32 %v3814, %v3817
        %v3819 = vrot.slane %v3818, 4
        %v3821 = vshll.u32 %v3680, 16
        %v3823 = vrot.slane %v3821, 5
        %v3824 = vsel %vm1968, %v3819, %v3823
        %v3825 = vshrl.u32 %v3680, 16
        %v3827 = vrot.slane %v3825, 4
        %v3828 = vor.u32 %v3827, %v3823
        %v3829 = vrot.slane %v3828, 4
        %v3831 = vshll.u32 %v3681, 16
        %v3833 = vrot.slane %v3831, 5
        %v3834 = vsel %vm1968, %v3829, %v3833
        %v3836 = vshrl.u32 %v3682, 16
        %v3838 = vrot.slane %v3836, 4
        %v3839 = vshll.u32 %v3682, 16
        %v3841 = vrot.slane %v3839, 5
        %v3842 = vor.u32 %v3838, %v3841
        %v3843 = vrot.slane %v3842, 4
        %v3845 = vshll.u32 %v3683, 16
        %v3847 = vrot.slane %v3845, 5
        %v3848 = vsel %vm1968, %v3843, %v3847
        %v3849 = vshrl.u32 %v3683, 16
        %v3851 = vrot.slane %v3849, 4
        %v3852 = vor.u32 %v3851, %v3847
        %v3853 = vrot.slane %v3852, 4
        %v3855 = vshll.u32 %v3684, 16
        %v3857 = vrot.slane %v3855, 5
        %v3858 = vsel %vm1968, %v3853, %v3857
        %v3860 = vshrl.u32 %v3685, 16
        %v3862 = vrot.slane %v3860, 4
        %v3863 = vshll.u32 %v3685, 16
        %v3865 = vrot.slane %v3863, 5
        %v3866 = vor.u32 %v3862, %v3865
        %v3867 = vrot.slane %v3866, 4
        %v3869 = vshll.u32 %v3686, 16
        %v3871 = vrot.slane %v3869, 5
        %v3872 = vsel %vm1968, %v3867, %v3871
        %v3873 = vshrl.u32 %v3686, 16
        %v3875 = vrot.slane %v3873, 4
        %v3876 = vor.u32 %v3875, %v3871
        %v3877 = vrot.slane %v3876, 4
        %v3879 = vshll.u32 %v3687, 16
        %v3881 = vrot.slane %v3879, 5
        %v3882 = vsel %vm1968, %v3877, %v3881
        %v3884 = vshrl.u32 %v3688, 16
        %v3886 = vrot.slane %v3884, 4
        %v3887 = vshll.u32 %v3688, 16
        %v3889 = vrot.slane %v3887, 5
        %v3890 = vor.u32 %v3886, %v3889
        %v3891 = vrot.slane %v3890, 4
        %v3893 = vshll.u32 %v3689, 16
        %v3895 = vrot.slane %v3893, 5
        %v3896 = vsel %vm1968, %v3891, %v3895
        %v3897 = vshrl.u32 %v3689, 16
        %v3899 = vrot.slane %v3897, 4
        %v3900 = vor.u32 %v3899, %v3895
        %v3901 = vrot.slane %v3900, 4
        %v3903 = vshll.u32 %v3690, 16
        %v3905 = vrot.slane %v3903, 5
        %v3906 = vsel %vm1968, %v3901, %v3905
        %v3908 = vshrl.u32 %v3691, 16
        %v3910 = vrot.slane %v3908, 4
        %v3911 = vshll.u32 %v3691, 16
        %v3913 = vrot.slane %v3911, 5
        %v3914 = vor.u32 %v3910, %v3913
        %v3915 = vrot.slane %v3914, 4
        %v3917 = vshll.u32 %v3692, 16
        %v3919 = vrot.slane %v3917, 5
        %v3920 = vsel %vm1968, %v3915, %v3919
        %v3921 = vshrl.u32 %v3692, 16
        %v3923 = vrot.slane %v3921, 4
        %v3924 = vor.u32 %v3923, %v3919
        %v3925 = vrot.slane %v3924, 4
        %v3927 = vshll.u32 %v3693, 16
        %v3929 = vrot.slane %v3927, 5
        %v3930 = vsel %vm1968, %v3925, %v3929
        %v3932 = vshrl.u32 %v3694, 16
        %v3934 = vrot.slane %v3932, 4
        %v3935 = vshll.u32 %v3694, 16
        %v3937 = vrot.slane %v3935, 5
        %v3938 = vor.u32 %v3934, %v3937
        %v3939 = vrot.slane %v3938, 4
        %v3941 = vshll.u32 %v3695, 16
        %v3943 = vrot.slane %v3941, 5
        %v3944 = vsel %vm1968, %v3939, %v3943
        %v3945 = vshrl.u32 %v3695, 16
        %v3947 = vrot.slane %v3945, 4
        %v3948 = vor.u32 %v3947, %v3943
        %v3949 = vrot.slane %v3948, 4
        %v3951 = vshll.u32 %v3696, 16
        %v3953 = vrot.slane %v3951, 5
        %v3954 = vsel %vm1968, %v3949, %v3953
        %v3956 = vshrl.u32 %v3697, 16
        %v3958 = vrot.slane %v3956, 4
        %v3959 = vshll.u32 %v3697, 16
        %v3961 = vrot.slane %v3959, 5
        %v3962 = vor.u32 %v3958, %v3961
        %v3963 = vrot.slane %v3962, 4
        %v3965 = vshll.u32 %v3698, 16
        %v3967 = vrot.slane %v3965, 5
        %v3968 = vsel %vm1968, %v3963, %v3967
        %v3969 = vshrl.u32 %v3698, 16
        %v3971 = vrot.slane %v3969, 4
        %v3972 = vor.u32 %v3971, %v3967
        %v3973 = vrot.slane %v3972, 4
        %v3975 = vshll.u32 %v3699, 16
        %v3977 = vrot.slane %v3975, 5
        %v3978 = vsel %vm1968, %v3973, %v3977
        %v3980 = vshrl.u32 %v3700, 16
        %v3982 = vrot.slane %v3980, 4
        %v3983 = vshll.u32 %v3700, 16
        %v3985 = vrot.slane %v3983, 5
        %v3986 = vor.u32 %v3982, %v3985
        %v3987 = vrot.slane %v3986, 4
        %v3989 = vshll.u32 %v3701, 16
        %v3991 = vrot.slane %v3989, 5
        %v3992 = vsel %vm1968, %v3987, %v3991
        %v3993 = vshrl.u32 %v3701, 16
        %v3995 = vrot.slane %v3993, 4
        %v3996 = vor.u32 %v3995, %v3991
        %v3997 = vrot.slane %v3996, 4
        %v3999 = vshll.u32 %v3702, 16
        %v4001 = vrot.slane %v3999, 5
        %v4002 = vsel %vm1968, %v3997, %v4001
        %v4004 = vshrl.u32 %v3703, 16
        %v4006 = vrot.slane %v4004, 4
        %v4007 = vshll.u32 %v3703, 16
        %v4009 = vrot.slane %v4007, 5
        %v4010 = vor.u32 %v4006, %v4009
        %v4011 = vrot.slane %v4010, 4
        %v4013 = vshll.u32 %v3704, 16
        %v4015 = vrot.slane %v4013, 5
        %v4016 = vsel %vm1968, %v4011, %v4015
        %v4017 = vshrl.u32 %v3704, 16
        %v4019 = vrot.slane %v4017, 4
        %v4020 = vor.u32 %v4019, %v4015
        %v4021 = vrot.slane %v4020, 4
        %v4023 = vshll.u32 %v3705, 16
        %v4025 = vrot.slane %v4023, 5
        %v4026 = vsel %vm1968, %v4021, %v4025
        %v4028 = vshrl.u32 %v3706, 16
        %v4030 = vrot.slane %v4028, 4
        %v4031 = vshll.u32 %v3706, 16
        %v4033 = vrot.slane %v4031, 5
        %v4034 = vor.u32 %v4030, %v4033
        %v4035 = vrot.slane %v4034, 4
        %v4037 = vshll.u32 %v3707, 16
        %v4039 = vrot.slane %v4037, 5
        %v4040 = vsel %vm1968, %v4035, %v4039
        %v4041 = vshrl.u32 %v3707, 16
        %v4043 = vrot.slane %v4041, 4
        %v4044 = vor.u32 %v4043, %v4039
        %v4045 = vrot.slane %v4044, 4
        %v4047 = vshll.u32 %v3708, 16
        %v4049 = vrot.slane %v4047, 5
        %v4050 = vsel %vm1968, %v4045, %v4049
        %v4052 = vshrl.u32 %v3709, 16
        %v4054 = vrot.slane %v4052, 4
        %v4055 = vshll.u32 %v3709, 16
        %v4057 = vrot.slane %v4055, 5
        %v4058 = vor.u32 %v4054, %v4057
        %v4059 = vrot.slane %v4058, 4
        %v4061 = vshll.u32 %v3710, 16
        %v4063 = vrot.slane %v4061, 5
        %v4064 = vsel %vm1968, %v4059, %v4063
        %v4065 = vshrl.u32 %v3710, 16
        %v4067 = vrot.slane %v4065, 4
        %v4068 = vor.u32 %v4067, %v4063
        %v4069 = vrot.slane %v4068, 4
        %v4071 = vshll.u32 %v3711, 16
        %v4073 = vrot.slane %v4071, 5
        %v4074 = vsel %vm1968, %v4069, %v4073
        %v4076 = vshrl.u32 %v3712, 16
        %v4078 = vrot.slane %v4076, 4
        %v4079 = vshll.u32 %v3712, 16
        %v4081 = vrot.slane %v4079, 5
        %v4082 = vor.u32 %v4078, %v4081
        %v4083 = vrot.slane %v4082, 4
        %v4085 = vshll.u32 %v3713, 16
        %v4087 = vrot.slane %v4085, 5
        %v4088 = vsel %vm1968, %v4083, %v4087
        %v4089 = vshrl.u32 %v3713, 16
        %v4091 = vrot.slane %v4089, 4
        %v4092 = vor.u32 %v4091, %v4087
        %v4093 = vrot.slane %v4092, 4
        %v4095 = vshll.u32 %v3714, 16
        %v4097 = vrot.slane %v4095, 5
        %v4098 = vsel %vm1968, %v4093, %v4097
        %s4099 = scalar_lea.vmem %s4, 10
        %v4100 = vld [vmem:[%s4099] sm:$0x3]
        %v4101 = vunpack.c.l.b16 %v3728
        %v4102 = vunpack.c.l.b16 %v3738
        %v4103 = vunpack.c.l.b16 %v3752
        %v4104 = vunpack.c.l.b16 %v3762
        %v4105 = vunpack.c.l.b16 %v3776
        %v4106 = vunpack.c.l.b16 %v3786
        %v4107 = vunpack.c.l.b16 %v3800
        %v4108 = vunpack.c.l.b16 %v3810
        %v4109 = vunpack.c.l.b16 %v3824
        %v4110 = vunpack.c.l.b16 %v3834
        %v4111 = vunpack.c.l.b16 %v3848
        %v4112 = vunpack.c.l.b16 %v3858
        %v4113 = vunpack.c.l.b16 %v3872
        %v4114 = vunpack.c.l.b16 %v3882
        %v4115 = vunpack.c.l.b16 %v3896
        %v4116 = vunpack.c.l.b16 %v3906
        %v4117 = vunpack.c.l.b16 %v3920
        %v4118 = vunpack.c.l.b16 %v3930
        %v4119 = vunpack.c.l.b16 %v3944
        %v4120 = vunpack.c.l.b16 %v3954
        %v4121 = vunpack.c.l.b16 %v3968
        %v4122 = vunpack.c.l.b16 %v3978
        %v4123 = vunpack.c.l.b16 %v3992
        %v4124 = vunpack.c.l.b16 %v4002
        %v4125 = vunpack.c.l.b16 %v4016
        %v4126 = vunpack.c.l.b16 %v4026
        %v4127 = vunpack.c.l.b16 %v4040
        %v4128 = vunpack.c.l.b16 %v4050
        %v4129 = vunpack.c.l.b16 %v4064
        %v4130 = vunpack.c.l.b16 %v4074
        %v4131 = vunpack.c.l.b16 %v4088
        %v4132 = vunpack.c.l.b16 %v4098
        %v4133 = vpack.c.b16 %v4102, %v4101
        %v4134 = vpack.c.b16 %v4104, %v4103
        %v4135 = vpack.c.b16 %v4106, %v4105
        %v4136 = vpack.c.b16 %v4108, %v4107
        %v4137 = vpack.c.b16 %v4110, %v4109
        %v4138 = vpack.c.b16 %v4112, %v4111
        %v4139 = vpack.c.b16 %v4114, %v4113
        %v4140 = vpack.c.b16 %v4116, %v4115
        %v4141 = vpack.c.b16 %v4118, %v4117
        %v4142 = vpack.c.b16 %v4120, %v4119
        %v4143 = vpack.c.b16 %v4122, %v4121
        %v4144 = vpack.c.b16 %v4124, %v4123
        %v4145 = vpack.c.b16 %v4126, %v4125
        %v4146 = vpack.c.b16 %v4128, %v4127
        %v4147 = vpack.c.b16 %v4130, %v4129
        %v4148 = vpack.c.b16 %v4132, %v4131
        %v4150 = vsel %vm1444, %v4133, 0
        %v4153 = vsel %vm1444, %v4134, 0
        %v4156 = vsel %vm1444, %v4135, 0
        %v4159 = vsel %vm1444, %v4136, 0
        %v4162 = vsel %vm1444, %v4137, 0
        %v4165 = vsel %vm1444, %v4138, 0
        %v4168 = vsel %vm1444, %v4139, 0
        %v4171 = vsel %vm1444, %v4140, 0
        %v4174 = vsel %vm1444, %v4141, 0
        %v4177 = vsel %vm1444, %v4142, 0
        %v4180 = vsel %vm1444, %v4143, 0
        %v4183 = vsel %vm1444, %v4144, 0
        %v4186 = vsel %vm1444, %v4145, 0
        %v4189 = vsel %vm1444, %v4146, 0
        %v4192 = vsel %vm1444, %v4147, 0
        %v4195 = vsel %vm1444, %v4148, 0
        %v4198 = vsel %vm1493, %v4100, 0
        %4200 = vmatprep.subr.bf16.mxu0 0
        %4201 = vmatpush1.bf16.msra.mxu0 0
        %4202 = vmatprep.subr.bf16.mxu0 0
        %4203 = vmatpush1.bf16.msra.mxu0 0
        %4204 = vmatprep.subr.bf16.mxu0 0
        %4205 = vmatpush1.bf16.msra.mxu0 0
        %4206 = vmatprep.subr.bf16.mxu0 0
        %4207 = vmatpush1.bf16.msra.mxu0 0
        %4208 = vmatprep.subr.bf16.mxu0 0
        %4209 = vmatpush1.bf16.msra.mxu0 0
        %4210 = vmatprep.subr.bf16.mxu0 0
        %4211 = vmatpush1.bf16.msra.mxu0 0
        %4212 = vmatprep.subr.bf16.mxu0 0
        %4213 = vmatpush1.bf16.msra.mxu0 0
        %4214 = vmatprep.subr.bf16.mxu0 0
        %4215 = vmatpush1.bf16.msra.mxu0 %v4198
        %4216 = vmatprep.subr.bf16.mxu0 0
        %4217 = vmatpush2.bf16.msra.mxu0 0
        %4218 = vmatprep.subr.bf16.mxu0 0
        %4219 = vmatpush2.bf16.msra.mxu0 0
        %4220 = vmatprep.subr.bf16.mxu0 0
        %4221 = vmatpush2.bf16.msra.mxu0 0
        %4222 = vmatprep.subr.bf16.mxu0 0
        %4223 = vmatpush2.bf16.msra.mxu0 0
        %4224 = vmatprep.subr.bf16.mxu0 0
        %4225 = vmatpush2.bf16.msra.mxu0 0
        %4226 = vmatprep.subr.bf16.mxu0 0
        %4227 = vmatpush2.bf16.msra.mxu0 0
        %4228 = vmatprep.subr.bf16.mxu0 0
        %4229 = vmatpush2.bf16.msra.mxu0 0
        %4230 = vmatprep.subr.bf16.mxu0 0
        %4231 = vmatpush2.bf16.msra.mxu0 0
        %4232 = vmatprep.mubr.bf16.mxu0 0
        %4233 = vmatmul.mubr.bf16.gmra.mxu0 %v4150
        %v4234 = vpop.f32.mrf.mxu0
        %v4235 = vadd.f32 0.0, %v4234
        %v4236 = vpop.f32.mrf.mxu0
        %v4237 = vpop.f32.mrf.mxu0
        %v4238 = vadd.f32 0.0, %v4237
        %v4239 = vpop.f32.mrf.mxu0
        %4240 = vmatprep.mubr.bf16.mxu0 0
        %4241 = vmatmul.mubr.bf16.gmra.mxu0 %v4153
        %v4242 = vpop.f32.mrf.mxu0
        %v4243 = vadd.f32 0.0, %v4242
        %v4244 = vpop.f32.mrf.mxu0
        %v4245 = vpop.f32.mrf.mxu0
        %v4246 = vadd.f32 0.0, %v4245
        %v4247 = vpop.f32.mrf.mxu0
        %4248 = vmatprep.mubr.bf16.mxu0 0
        %4249 = vmatmul.mubr.bf16.gmra.mxu0 %v4156
        %v4250 = vpop.f32.mrf.mxu0
        %v4251 = vadd.f32 0.0, %v4250
        %v4252 = vpop.f32.mrf.mxu0
        %v4253 = vpop.f32.mrf.mxu0
        %v4254 = vadd.f32 0.0, %v4253
        %v4255 = vpop.f32.mrf.mxu0
        %4256 = vmatprep.mubr.bf16.mxu0 0
        %4257 = vmatmul.mubr.bf16.gmra.mxu0 %v4159
        %v4258 = vpop.f32.mrf.mxu0
        %v4259 = vadd.f32 0.0, %v4258
        %v4260 = vpop.f32.mrf.mxu0
        %v4261 = vpop.f32.mrf.mxu0
        %v4262 = vadd.f32 0.0, %v4261
        %v4263 = vpop.f32.mrf.mxu0
        %4264 = vmatprep.mubr.bf16.mxu0 0
        %4265 = vmatmul.mubr.bf16.gmra.mxu0 %v4162
        %v4266 = vpop.f32.mrf.mxu0
        %v4267 = vadd.f32 0.0, %v4266
        %v4268 = vpop.f32.mrf.mxu0
        %v4269 = vpop.f32.mrf.mxu0
        %v4270 = vadd.f32 0.0, %v4269
        %v4271 = vpop.f32.mrf.mxu0
        %4272 = vmatprep.mubr.bf16.mxu0 0
        %4273 = vmatmul.mubr.bf16.gmra.mxu0 %v4165
        %v4274 = vpop.f32.mrf.mxu0
        %v4275 = vadd.f32 0.0, %v4274
        %v4276 = vpop.f32.mrf.mxu0
        %v4277 = vpop.f32.mrf.mxu0
        %v4278 = vadd.f32 0.0, %v4277
        %v4279 = vpop.f32.mrf.mxu0
        %4280 = vmatprep.mubr.bf16.mxu0 0
        %4281 = vmatmul.mubr.bf16.gmra.mxu0 %v4168
        %v4282 = vpop.f32.mrf.mxu0
        %v4283 = vadd.f32 0.0, %v4282
        %v4284 = vpop.f32.mrf.mxu0
        %v4285 = vpop.f32.mrf.mxu0
        %v4286 = vadd.f32 0.0, %v4285
        %v4287 = vpop.f32.mrf.mxu0
        %4288 = vmatprep.mubr.bf16.mxu0 0
        %4289 = vmatmul.mubr.bf16.gmra.mxu0 %v4171
        %v4290 = vpop.f32.mrf.mxu0
        %v4291 = vadd.f32 0.0, %v4290
        %v4292 = vpop.f32.mrf.mxu0
        %v4293 = vpop.f32.mrf.mxu0
        %v4294 = vadd.f32 0.0, %v4293
        %v4295 = vpop.f32.mrf.mxu0
        %4296 = vmatprep.mubr.bf16.mxu0 0
        %4297 = vmatmul.mubr.bf16.gmra.mxu0 %v4174
        %v4298 = vpop.f32.mrf.mxu0
        %v4299 = vadd.f32 0.0, %v4298
        %v4300 = vpop.f32.mrf.mxu0
        %v4301 = vpop.f32.mrf.mxu0
        %v4302 = vadd.f32 0.0, %v4301
        %v4303 = vpop.f32.mrf.mxu0
        %4304 = vmatprep.mubr.bf16.mxu0 0
        %4305 = vmatmul.mubr.bf16.gmra.mxu0 %v4177
        %v4306 = vpop.f32.mrf.mxu0
        %v4307 = vadd.f32 0.0, %v4306
        %v4308 = vpop.f32.mrf.mxu0
        %v4309 = vpop.f32.mrf.mxu0
        %v4310 = vadd.f32 0.0, %v4309
        %v4311 = vpop.f32.mrf.mxu0
        %4312 = vmatprep.mubr.bf16.mxu0 0
        %4313 = vmatmul.mubr.bf16.gmra.mxu0 %v4180
        %v4314 = vpop.f32.mrf.mxu0
        %v4315 = vadd.f32 0.0, %v4314
        %v4316 = vpop.f32.mrf.mxu0
        %v4317 = vpop.f32.mrf.mxu0
        %v4318 = vadd.f32 0.0, %v4317
        %v4319 = vpop.f32.mrf.mxu0
        %4320 = vmatprep.mubr.bf16.mxu0 0
        %4321 = vmatmul.mubr.bf16.gmra.mxu0 %v4183
        %v4322 = vpop.f32.mrf.mxu0
        %v4323 = vadd.f32 0.0, %v4322
        %v4324 = vpop.f32.mrf.mxu0
        %v4325 = vpop.f32.mrf.mxu0
        %v4326 = vadd.f32 0.0, %v4325
        %v4327 = vpop.f32.mrf.mxu0
        %4328 = vmatprep.mubr.bf16.mxu0 0
        %4329 = vmatmul.mubr.bf16.gmra.mxu0 %v4186
        %v4330 = vpop.f32.mrf.mxu0
        %v4331 = vadd.f32 0.0, %v4330
        %v4332 = vpop.f32.mrf.mxu0
        %v4333 = vpop.f32.mrf.mxu0
        %v4334 = vadd.f32 0.0, %v4333
        %v4335 = vpop.f32.mrf.mxu0
        %4336 = vmatprep.mubr.bf16.mxu0 0
        %4337 = vmatmul.mubr.bf16.gmra.mxu0 %v4189
        %v4338 = vpop.f32.mrf.mxu0
        %v4339 = vadd.f32 0.0, %v4338
        %v4340 = vpop.f32.mrf.mxu0
        %v4341 = vpop.f32.mrf.mxu0
        %v4342 = vadd.f32 0.0, %v4341
        %v4343 = vpop.f32.mrf.mxu0
        %4344 = vmatprep.mubr.bf16.mxu0 0
        %4345 = vmatmul.mubr.bf16.gmra.mxu0 %v4192
        %v4346 = vpop.f32.mrf.mxu0
        %v4347 = vadd.f32 0.0, %v4346
        %v4348 = vpop.f32.mrf.mxu0
        %v4349 = vpop.f32.mrf.mxu0
        %v4350 = vadd.f32 0.0, %v4349
        %v4351 = vpop.f32.mrf.mxu0
        %4352 = vmatprep.mubr.bf16.mxu0 0
        %4353 = vmatmul.mubr.bf16.gmra.mxu0 %v4195
        %v4354 = vpop.f32.mrf.mxu0
        %v4355 = vadd.f32 0.0, %v4354
        %v4356 = vpop.f32.mrf.mxu0
        %v4357 = vpop.f32.mrf.mxu0
        %v4358 = vadd.f32 0.0, %v4357
        %v4359 = vpop.f32.mrf.mxu0
        %4360 = vdwg.mxu0
        %v4361 = vadd.f32 %v3635, %v4235
        %v4362 = vadd.f32 %v3636, %v4238
        %v4363 = vadd.f32 %v3637, %v4243
        %v4364 = vadd.f32 %v3638, %v4246
        %v4365 = vadd.f32 %v3639, %v4251
        %v4366 = vadd.f32 %v3640, %v4254
        %v4367 = vadd.f32 %v3641, %v4259
        %v4368 = vadd.f32 %v3642, %v4262
        %v4369 = vadd.f32 %v3643, %v4267
        %v4370 = vadd.f32 %v3644, %v4270
        %v4371 = vadd.f32 %v3645, %v4275
        %v4372 = vadd.f32 %v3646, %v4278
        %v4373 = vadd.f32 %v3647, %v4283
        %v4374 = vadd.f32 %v3648, %v4286
        %v4375 = vadd.f32 %v3649, %v4291
        %v4376 = vadd.f32 %v3650, %v4294
        %v4377 = vadd.f32 %v3651, %v4299
        %v4378 = vadd.f32 %v3652, %v4302
        %v4379 = vadd.f32 %v3653, %v4307
        %v4380 = vadd.f32 %v3654, %v4310
        %v4381 = vadd.f32 %v3655, %v4315
        %v4382 = vadd.f32 %v3656, %v4318
        %v4383 = vadd.f32 %v3657, %v4323
        %v4384 = vadd.f32 %v3658, %v4326
        %v4385 = vadd.f32 %v3659, %v4331
        %v4386 = vadd.f32 %v3660, %v4334
        %v4387 = vadd.f32 %v3661, %v4339
        %v4388 = vadd.f32 %v3662, %v4342
        %v4389 = vadd.f32 %v3663, %v4347
        %v4390 = vadd.f32 %v3664, %v4350
        %v4391 = vadd.f32 %v3665, %v4355
        %v4392 = vadd.f32 %v3666, %v4358
        %s4393 = scalar_lea.vmem [#allocation2], 32
        %v4394 = vld [vmem:[%s4393] sm:$0x8]
        %v4395 = vld [vmem:[%s4393 + $0x4] sm:$0xf]
        %v4396 = vld [vmem:[%s4393 + $0x8] sm:$0xf]
        %v4397 = vld [vmem:[%s4393 + $0x10] sm:$0x8]
        %v4398 = vld [vmem:[%s4393 + $0x14] sm:$0xf]
        %v4399 = vld [vmem:[%s4393 + $0x18] sm:$0xf]
        %v4400 = vld [vmem:[%s4393 + $0x20] sm:$0x8]
        %v4401 = vld [vmem:[%s4393 + $0x24] sm:$0xf]
        %v4402 = vld [vmem:[%s4393 + $0x28] sm:$0xf]
        %v4403 = vld [vmem:[%s4393 + $0x30] sm:$0x8]
        %v4404 = vld [vmem:[%s4393 + $0x34] sm:$0xf]
        %v4405 = vld [vmem:[%s4393 + $0x38] sm:$0xf]
        %v4406 = vld [vmem:[%s4393 + $0x40] sm:$0x8]
        %v4407 = vld [vmem:[%s4393 + $0x44] sm:$0xf]
        %v4408 = vld [vmem:[%s4393 + $0x48] sm:$0xf]
        %v4409 = vld [vmem:[%s4393 + $0x50] sm:$0x8]
        %v4410 = vld [vmem:[%s4393 + $0x54] sm:$0xf]
        %v4411 = vld [vmem:[%s4393 + $0x58] sm:$0xf]
        %v4412 = vld [vmem:[%s4393 + $0x60] sm:$0x8]
        %v4413 = vld [vmem:[%s4393 + $0x64] sm:$0xf]
        %v4414 = vld [vmem:[%s4393 + $0x68] sm:$0xf]
        %v4415 = vld [vmem:[%s4393 + $0x70] sm:$0x8]
        %v4416 = vld [vmem:[%s4393 + $0x74] sm:$0xf]
        %v4417 = vld [vmem:[%s4393 + $0x78] sm:$0xf]
        %v4418 = vld [vmem:[%s4393 + $0x80] sm:$0x8]
        %v4419 = vld [vmem:[%s4393 + $0x84] sm:$0xf]
        %v4420 = vld [vmem:[%s4393 + $0x88] sm:$0xf]
        %v4421 = vld [vmem:[%s4393 + $0x90] sm:$0x8]
        %v4422 = vld [vmem:[%s4393 + $0x94] sm:$0xf]
        %v4423 = vld [vmem:[%s4393 + $0x98] sm:$0xf]
        %v4424 = vld [vmem:[%s4393 + $0xa0] sm:$0x8]
        %v4425 = vld [vmem:[%s4393 + $0xa4] sm:$0xf]
        %v4426 = vld [vmem:[%s4393 + $0xa8] sm:$0xf]
        %v4427 = vld [vmem:[%s4393 + $0xb0] sm:$0x8]
        %v4428 = vld [vmem:[%s4393 + $0xb4] sm:$0xf]
        %v4429 = vld [vmem:[%s4393 + $0xb8] sm:$0xf]
        %v4430 = vld [vmem:[%s4393 + $0xc0] sm:$0x8]
        %v4431 = vld [vmem:[%s4393 + $0xc4] sm:$0xf]
        %v4432 = vld [vmem:[%s4393 + $0xc8] sm:$0xf]
        %v4433 = vld [vmem:[%s4393 + $0xd0] sm:$0x8]
        %v4434 = vld [vmem:[%s4393 + $0xd4] sm:$0xf]
        %v4435 = vld [vmem:[%s4393 + $0xd8] sm:$0xf]
        %v4436 = vld [vmem:[%s4393 + $0xe0] sm:$0x8]
        %v4437 = vld [vmem:[%s4393 + $0xe4] sm:$0xf]
        %v4438 = vld [vmem:[%s4393 + $0xe8] sm:$0xf]
        %v4439 = vld [vmem:[%s4393 + $0xf0] sm:$0x8]
        %v4440 = vld [vmem:[%s4393 + $0xf4] sm:$0xf]
        %v4441 = vld [vmem:[%s4393 + $0xf8] sm:$0xf]
        %v4443 = vshrl.u32 %v4394, 16
        %v4445 = vrot.slane %v4443, 7
        %v4446 = vrot.slane %v4445, 4
        %v4448 = vshrl.u32 %v4395, 16
        %v4450 = vrot.slane %v4448, 7
        %v4451 = vshll.u32 %v4395, 16
        %v4453 = vor.u32 %v4450, %v4451
        %v4454 = vsel %vm1008, %v4446, %v4453
        %v4455 = vrot.slane %v4450, 4
        %v4457 = vshrl.u32 %v4396, 16
        %v4459 = vrot.slane %v4457, 7
        %v4460 = vshll.u32 %v4396, 16
        %v4462 = vor.u32 %v4459, %v4460
        %v4463 = vsel %vm1008, %v4455, %v4462
        %v4465 = vshrl.u32 %v4397, 16
        %v4467 = vrot.slane %v4465, 7
        %v4468 = vrot.slane %v4467, 4
        %v4470 = vshrl.u32 %v4398, 16
        %v4472 = vrot.slane %v4470, 7
        %v4473 = vshll.u32 %v4398, 16
        %v4475 = vor.u32 %v4472, %v4473
        %v4476 = vsel %vm1008, %v4468, %v4475
        %v4477 = vrot.slane %v4472, 4
        %v4479 = vshrl.u32 %v4399, 16
        %v4481 = vrot.slane %v4479, 7
        %v4482 = vshll.u32 %v4399, 16
        %v4484 = vor.u32 %v4481, %v4482
        %v4485 = vsel %vm1008, %v4477, %v4484
        %v4487 = vshrl.u32 %v4400, 16
        %v4489 = vrot.slane %v4487, 7
        %v4490 = vrot.slane %v4489, 4
        %v4492 = vshrl.u32 %v4401, 16
        %v4494 = vrot.slane %v4492, 7
        %v4495 = vshll.u32 %v4401, 16
        %v4497 = vor.u32 %v4494, %v4495
        %v4498 = vsel %vm1008, %v4490, %v4497
        %v4499 = vrot.slane %v4494, 4
        %v4501 = vshrl.u32 %v4402, 16
        %v4503 = vrot.slane %v4501, 7
        %v4504 = vshll.u32 %v4402, 16
        %v4506 = vor.u32 %v4503, %v4504
        %v4507 = vsel %vm1008, %v4499, %v4506
        %v4509 = vshrl.u32 %v4403, 16
        %v4511 = vrot.slane %v4509, 7
        %v4512 = vrot.slane %v4511, 4
        %v4514 = vshrl.u32 %v4404, 16
        %v4516 = vrot.slane %v4514, 7
        %v4517 = vshll.u32 %v4404, 16
        %v4519 = vor.u32 %v4516, %v4517
        %v4520 = vsel %vm1008, %v4512, %v4519
        %v4521 = vrot.slane %v4516, 4
        %v4523 = vshrl.u32 %v4405, 16
        %v4525 = vrot.slane %v4523, 7
        %v4526 = vshll.u32 %v4405, 16
        %v4528 = vor.u32 %v4525, %v4526
        %v4529 = vsel %vm1008, %v4521, %v4528
        %v4531 = vshrl.u32 %v4406, 16
        %v4533 = vrot.slane %v4531, 7
        %v4534 = vrot.slane %v4533, 4
        %v4536 = vshrl.u32 %v4407, 16
        %v4538 = vrot.slane %v4536, 7
        %v4539 = vshll.u32 %v4407, 16
        %v4541 = vor.u32 %v4538, %v4539
        %v4542 = vsel %vm1008, %v4534, %v4541
        %v4543 = vrot.slane %v4538, 4
        %v4545 = vshrl.u32 %v4408, 16
        %v4547 = vrot.slane %v4545, 7
        %v4548 = vshll.u32 %v4408, 16
        %v4550 = vor.u32 %v4547, %v4548
        %v4551 = vsel %vm1008, %v4543, %v4550
        %v4553 = vshrl.u32 %v4409, 16
        %v4555 = vrot.slane %v4553, 7
        %v4556 = vrot.slane %v4555, 4
        %v4558 = vshrl.u32 %v4410, 16
        %v4560 = vrot.slane %v4558, 7
        %v4561 = vshll.u32 %v4410, 16
        %v4563 = vor.u32 %v4560, %v4561
        %v4564 = vsel %vm1008, %v4556, %v4563
        %v4565 = vrot.slane %v4560, 4
        %v4567 = vshrl.u32 %v4411, 16
        %v4569 = vrot.slane %v4567, 7
        %v4570 = vshll.u32 %v4411, 16
        %v4572 = vor.u32 %v4569, %v4570
        %v4573 = vsel %vm1008, %v4565, %v4572
        %v4575 = vshrl.u32 %v4412, 16
        %v4577 = vrot.slane %v4575, 7
        %v4578 = vrot.slane %v4577, 4
        %v4580 = vshrl.u32 %v4413, 16
        %v4582 = vrot.slane %v4580, 7
        %v4583 = vshll.u32 %v4413, 16
        %v4585 = vor.u32 %v4582, %v4583
        %v4586 = vsel %vm1008, %v4578, %v4585
        %v4587 = vrot.slane %v4582, 4
        %v4589 = vshrl.u32 %v4414, 16
        %v4591 = vrot.slane %v4589, 7
        %v4592 = vshll.u32 %v4414, 16
        %v4594 = vor.u32 %v4591, %v4592
        %v4595 = vsel %vm1008, %v4587, %v4594
        %v4597 = vshrl.u32 %v4415, 16
        %v4599 = vrot.slane %v4597, 7
        %v4600 = vrot.slane %v4599, 4
        %v4602 = vshrl.u32 %v4416, 16
        %v4604 = vrot.slane %v4602, 7
        %v4605 = vshll.u32 %v4416, 16
        %v4607 = vor.u32 %v4604, %v4605
        %v4608 = vsel %vm1008, %v4600, %v4607
        %v4609 = vrot.slane %v4604, 4
        %v4611 = vshrl.u32 %v4417, 16
        %v4613 = vrot.slane %v4611, 7
        %v4614 = vshll.u32 %v4417, 16
        %v4616 = vor.u32 %v4613, %v4614
        %v4617 = vsel %vm1008, %v4609, %v4616
        %v4619 = vshrl.u32 %v4418, 16
        %v4621 = vrot.slane %v4619, 7
        %v4622 = vrot.slane %v4621, 4
        %v4624 = vshrl.u32 %v4419, 16
        %v4626 = vrot.slane %v4624, 7
        %v4627 = vshll.u32 %v4419, 16
        %v4629 = vor.u32 %v4626, %v4627
        %v4630 = vsel %vm1008, %v4622, %v4629
        %v4631 = vrot.slane %v4626, 4
        %v4633 = vshrl.u32 %v4420, 16
        %v4635 = vrot.slane %v4633, 7
        %v4636 = vshll.u32 %v4420, 16
        %v4638 = vor.u32 %v4635, %v4636
        %v4639 = vsel %vm1008, %v4631, %v4638
        %v4641 = vshrl.u32 %v4421, 16
        %v4643 = vrot.slane %v4641, 7
        %v4644 = vrot.slane %v4643, 4
        %v4646 = vshrl.u32 %v4422, 16
        %v4648 = vrot.slane %v4646, 7
        %v4649 = vshll.u32 %v4422, 16
        %v4651 = vor.u32 %v4648, %v4649
        %v4652 = vsel %vm1008, %v4644, %v4651
        %v4653 = vrot.slane %v4648, 4
        %v4655 = vshrl.u32 %v4423, 16
        %v4657 = vrot.slane %v4655, 7
        %v4658 = vshll.u32 %v4423, 16
        %v4660 = vor.u32 %v4657, %v4658
        %v4661 = vsel %vm1008, %v4653, %v4660
        %v4663 = vshrl.u32 %v4424, 16
        %v4665 = vrot.slane %v4663, 7
        %v4666 = vrot.slane %v4665, 4
        %v4668 = vshrl.u32 %v4425, 16
        %v4670 = vrot.slane %v4668, 7
        %v4671 = vshll.u32 %v4425, 16
        %v4673 = vor.u32 %v4670, %v4671
        %v4674 = vsel %vm1008, %v4666, %v4673
        %v4675 = vrot.slane %v4670, 4
        %v4677 = vshrl.u32 %v4426, 16
        %v4679 = vrot.slane %v4677, 7
        %v4680 = vshll.u32 %v4426, 16
        %v4682 = vor.u32 %v4679, %v4680
        %v4683 = vsel %vm1008, %v4675, %v4682
        %v4685 = vshrl.u32 %v4427, 16
        %v4687 = vrot.slane %v4685, 7
        %v4688 = vrot.slane %v4687, 4
        %v4690 = vshrl.u32 %v4428, 16
        %v4692 = vrot.slane %v4690, 7
        %v4693 = vshll.u32 %v4428, 16
        %v4695 = vor.u32 %v4692, %v4693
        %v4696 = vsel %vm1008, %v4688, %v4695
        %v4697 = vrot.slane %v4692, 4
        %v4699 = vshrl.u32 %v4429, 16
        %v4701 = vrot.slane %v4699, 7
        %v4702 = vshll.u32 %v4429, 16
        %v4704 = vor.u32 %v4701, %v4702
        %v4705 = vsel %vm1008, %v4697, %v4704
        %v4707 = vshrl.u32 %v4430, 16
        %v4709 = vrot.slane %v4707, 7
        %v4710 = vrot.slane %v4709, 4
        %v4712 = vshrl.u32 %v4431, 16
        %v4714 = vrot.slane %v4712, 7
        %v4715 = vshll.u32 %v4431, 16
        %v4717 = vor.u32 %v4714, %v4715
        %v4718 = vsel %vm1008, %v4710, %v4717
        %v4719 = vrot.slane %v4714, 4
        %v4721 = vshrl.u32 %v4432, 16
        %v4723 = vrot.slane %v4721, 7
        %v4724 = vshll.u32 %v4432, 16
        %v4726 = vor.u32 %v4723, %v4724
        %v4727 = vsel %vm1008, %v4719, %v4726
        %v4729 = vshrl.u32 %v4433, 16
        %v4731 = vrot.slane %v4729, 7
        %v4732 = vrot.slane %v4731, 4
        %v4734 = vshrl.u32 %v4434, 16
        %v4736 = vrot.slane %v4734, 7
        %v4737 = vshll.u32 %v4434, 16
        %v4739 = vor.u32 %v4736, %v4737
        %v4740 = vsel %vm1008, %v4732, %v4739
        %v4741 = vrot.slane %v4736, 4
        %v4743 = vshrl.u32 %v4435, 16
        %v4745 = vrot.slane %v4743, 7
        %v4746 = vshll.u32 %v4435, 16
        %v4748 = vor.u32 %v4745, %v4746
        %v4749 = vsel %vm1008, %v4741, %v4748
        %v4751 = vshrl.u32 %v4436, 16
        %v4753 = vrot.slane %v4751, 7
        %v4754 = vrot.slane %v4753, 4
        %v4756 = vshrl.u32 %v4437, 16
        %v4758 = vrot.slane %v4756, 7
        %v4759 = vshll.u32 %v4437, 16
        %v4761 = vor.u32 %v4758, %v4759
        %v4762 = vsel %vm1008, %v4754, %v4761
        %v4763 = vrot.slane %v4758, 4
        %v4765 = vshrl.u32 %v4438, 16
        %v4767 = vrot.slane %v4765, 7
        %v4768 = vshll.u32 %v4438, 16
        %v4770 = vor.u32 %v4767, %v4768
        %v4771 = vsel %vm1008, %v4763, %v4770
        %v4773 = vshrl.u32 %v4439, 16
        %v4775 = vrot.slane %v4773, 7
        %v4776 = vrot.slane %v4775, 4
        %v4778 = vshrl.u32 %v4440, 16
        %v4780 = vrot.slane %v4778, 7
        %v4781 = vshll.u32 %v4440, 16
        %v4783 = vor.u32 %v4780, %v4781
        %v4784 = vsel %vm1008, %v4776, %v4783
        %v4785 = vrot.slane %v4780, 4
        %v4787 = vshrl.u32 %v4441, 16
        %v4789 = vrot.slane %v4787, 7
        %v4790 = vshll.u32 %v4441, 16
        %v4792 = vor.u32 %v4789, %v4790
        %v4793 = vsel %vm1008, %v4785, %v4792
        %s4794 = scalar_lea.vmem %s4, 12
        %v4795 = vld [vmem:[%s4794] sm:$0x3]
        %v4796 = vunpack.c.l.b16 %v4454
        %v4797 = vunpack.c.l.b16 %v4463
        %v4798 = vunpack.c.l.b16 %v4476
        %v4799 = vunpack.c.l.b16 %v4485
        %v4800 = vunpack.c.l.b16 %v4498
        %v4801 = vunpack.c.l.b16 %v4507
        %v4802 = vunpack.c.l.b16 %v4520
        %v4803 = vunpack.c.l.b16 %v4529
        %v4804 = vunpack.c.l.b16 %v4542
        %v4805 = vunpack.c.l.b16 %v4551
        %v4806 = vunpack.c.l.b16 %v4564
        %v4807 = vunpack.c.l.b16 %v4573
        %v4808 = vunpack.c.l.b16 %v4586
        %v4809 = vunpack.c.l.b16 %v4595
        %v4810 = vunpack.c.l.b16 %v4608
        %v4811 = vunpack.c.l.b16 %v4617
        %v4812 = vunpack.c.l.b16 %v4630
        %v4813 = vunpack.c.l.b16 %v4639
        %v4814 = vunpack.c.l.b16 %v4652
        %v4815 = vunpack.c.l.b16 %v4661
        %v4816 = vunpack.c.l.b16 %v4674
        %v4817 = vunpack.c.l.b16 %v4683
        %v4818 = vunpack.c.l.b16 %v4696
        %v4819 = vunpack.c.l.b16 %v4705
        %v4820 = vunpack.c.l.b16 %v4718
        %v4821 = vunpack.c.l.b16 %v4727
        %v4822 = vunpack.c.l.b16 %v4740
        %v4823 = vunpack.c.l.b16 %v4749
        %v4824 = vunpack.c.l.b16 %v4762
        %v4825 = vunpack.c.l.b16 %v4771
        %v4826 = vunpack.c.l.b16 %v4784
        %v4827 = vunpack.c.l.b16 %v4793
        %v4828 = vpack.c.b16 %v4797, %v4796
        %v4829 = vpack.c.b16 %v4799, %v4798
        %v4830 = vpack.c.b16 %v4801, %v4800
        %v4831 = vpack.c.b16 %v4803, %v4802
        %v4832 = vpack.c.b16 %v4805, %v4804
        %v4833 = vpack.c.b16 %v4807, %v4806
        %v4834 = vpack.c.b16 %v4809, %v4808
        %v4835 = vpack.c.b16 %v4811, %v4810
        %v4836 = vpack.c.b16 %v4813, %v4812
        %v4837 = vpack.c.b16 %v4815, %v4814
        %v4838 = vpack.c.b16 %v4817, %v4816
        %v4839 = vpack.c.b16 %v4819, %v4818
        %v4840 = vpack.c.b16 %v4821, %v4820
        %v4841 = vpack.c.b16 %v4823, %v4822
        %v4842 = vpack.c.b16 %v4825, %v4824
        %v4843 = vpack.c.b16 %v4827, %v4826
        %v4845 = vsel %vm1444, %v4828, 0
        %v4848 = vsel %vm1444, %v4829, 0
        %v4851 = vsel %vm1444, %v4830, 0
        %v4854 = vsel %vm1444, %v4831, 0
        %v4857 = vsel %vm1444, %v4832, 0
        %v4860 = vsel %vm1444, %v4833, 0
        %v4863 = vsel %vm1444, %v4834, 0
        %v4866 = vsel %vm1444, %v4835, 0
        %v4869 = vsel %vm1444, %v4836, 0
        %v4872 = vsel %vm1444, %v4837, 0
        %v4875 = vsel %vm1444, %v4838, 0
        %v4878 = vsel %vm1444, %v4839, 0
        %v4881 = vsel %vm1444, %v4840, 0
        %v4884 = vsel %vm1444, %v4841, 0
        %v4887 = vsel %vm1444, %v4842, 0
        %v4890 = vsel %vm1444, %v4843, 0
        %v4893 = vsel %vm1493, %v4795, 0
        %4895 = vmatprep.subr.bf16.mxu0 0
        %4896 = vmatpush1.bf16.msra.mxu0 0
        %4897 = vmatprep.subr.bf16.mxu0 0
        %4898 = vmatpush1.bf16.msra.mxu0 0
        %4899 = vmatprep.subr.bf16.mxu0 0
        %4900 = vmatpush1.bf16.msra.mxu0 0
        %4901 = vmatprep.subr.bf16.mxu0 0
        %4902 = vmatpush1.bf16.msra.mxu0 0
        %4903 = vmatprep.subr.bf16.mxu0 0
        %4904 = vmatpush1.bf16.msra.mxu0 0
        %4905 = vmatprep.subr.bf16.mxu0 0
        %4906 = vmatpush1.bf16.msra.mxu0 0
        %4907 = vmatprep.subr.bf16.mxu0 0
        %4908 = vmatpush1.bf16.msra.mxu0 0
        %4909 = vmatprep.subr.bf16.mxu0 0
        %4910 = vmatpush1.bf16.msra.mxu0 %v4893
        %4911 = vmatprep.subr.bf16.mxu0 0
        %4912 = vmatpush2.bf16.msra.mxu0 0
        %4913 = vmatprep.subr.bf16.mxu0 0
        %4914 = vmatpush2.bf16.msra.mxu0 0
        %4915 = vmatprep.subr.bf16.mxu0 0
        %4916 = vmatpush2.bf16.msra.mxu0 0
        %4917 = vmatprep.subr.bf16.mxu0 0
        %4918 = vmatpush2.bf16.msra.mxu0 0
        %4919 = vmatprep.subr.bf16.mxu0 0
        %4920 = vmatpush2.bf16.msra.mxu0 0
        %4921 = vmatprep.subr.bf16.mxu0 0
        %4922 = vmatpush2.bf16.msra.mxu0 0
        %4923 = vmatprep.subr.bf16.mxu0 0
        %4924 = vmatpush2.bf16.msra.mxu0 0
        %4925 = vmatprep.subr.bf16.mxu0 0
        %4926 = vmatpush2.bf16.msra.mxu0 0
        %4927 = vmatprep.mubr.bf16.mxu0 0
        %4928 = vmatmul.mubr.bf16.gmra.mxu0 %v4845
        %v4929 = vpop.f32.mrf.mxu0
        %v4930 = vadd.f32 0.0, %v4929
        %v4931 = vpop.f32.mrf.mxu0
        %v4932 = vpop.f32.mrf.mxu0
        %v4933 = vadd.f32 0.0, %v4932
        %v4934 = vpop.f32.mrf.mxu0
        %4935 = vmatprep.mubr.bf16.mxu0 0
        %4936 = vmatmul.mubr.bf16.gmra.mxu0 %v4848
        %v4937 = vpop.f32.mrf.mxu0
        %v4938 = vadd.f32 0.0, %v4937
        %v4939 = vpop.f32.mrf.mxu0
        %v4940 = vpop.f32.mrf.mxu0
        %v4941 = vadd.f32 0.0, %v4940
        %v4942 = vpop.f32.mrf.mxu0
        %4943 = vmatprep.mubr.bf16.mxu0 0
        %4944 = vmatmul.mubr.bf16.gmra.mxu0 %v4851
        %v4945 = vpop.f32.mrf.mxu0
        %v4946 = vadd.f32 0.0, %v4945
        %v4947 = vpop.f32.mrf.mxu0
        %v4948 = vpop.f32.mrf.mxu0
        %v4949 = vadd.f32 0.0, %v4948
        %v4950 = vpop.f32.mrf.mxu0
        %4951 = vmatprep.mubr.bf16.mxu0 0
        %4952 = vmatmul.mubr.bf16.gmra.mxu0 %v4854
        %v4953 = vpop.f32.mrf.mxu0
        %v4954 = vadd.f32 0.0, %v4953
        %v4955 = vpop.f32.mrf.mxu0
        %v4956 = vpop.f32.mrf.mxu0
        %v4957 = vadd.f32 0.0, %v4956
        %v4958 = vpop.f32.mrf.mxu0
        %4959 = vmatprep.mubr.bf16.mxu0 0
        %4960 = vmatmul.mubr.bf16.gmra.mxu0 %v4857
        %v4961 = vpop.f32.mrf.mxu0
        %v4962 = vadd.f32 0.0, %v4961
        %v4963 = vpop.f32.mrf.mxu0
        %v4964 = vpop.f32.mrf.mxu0
        %v4965 = vadd.f32 0.0, %v4964
        %v4966 = vpop.f32.mrf.mxu0
        %4967 = vmatprep.mubr.bf16.mxu0 0
        %4968 = vmatmul.mubr.bf16.gmra.mxu0 %v4860
        %v4969 = vpop.f32.mrf.mxu0
        %v4970 = vadd.f32 0.0, %v4969
        %v4971 = vpop.f32.mrf.mxu0
        %v4972 = vpop.f32.mrf.mxu0
        %v4973 = vadd.f32 0.0, %v4972
        %v4974 = vpop.f32.mrf.mxu0
        %4975 = vmatprep.mubr.bf16.mxu0 0
        %4976 = vmatmul.mubr.bf16.gmra.mxu0 %v4863
        %v4977 = vpop.f32.mrf.mxu0
        %v4978 = vadd.f32 0.0, %v4977
        %v4979 = vpop.f32.mrf.mxu0
        %v4980 = vpop.f32.mrf.mxu0
        %v4981 = vadd.f32 0.0, %v4980
        %v4982 = vpop.f32.mrf.mxu0
        %4983 = vmatprep.mubr.bf16.mxu0 0
        %4984 = vmatmul.mubr.bf16.gmra.mxu0 %v4866
        %v4985 = vpop.f32.mrf.mxu0
        %v4986 = vadd.f32 0.0, %v4985
        %v4987 = vpop.f32.mrf.mxu0
        %v4988 = vpop.f32.mrf.mxu0
        %v4989 = vadd.f32 0.0, %v4988
        %v4990 = vpop.f32.mrf.mxu0
        %4991 = vmatprep.mubr.bf16.mxu0 0
        %4992 = vmatmul.mubr.bf16.gmra.mxu0 %v4869
        %v4993 = vpop.f32.mrf.mxu0
        %v4994 = vadd.f32 0.0, %v4993
        %v4995 = vpop.f32.mrf.mxu0
        %v4996 = vpop.f32.mrf.mxu0
        %v4997 = vadd.f32 0.0, %v4996
        %v4998 = vpop.f32.mrf.mxu0
        %4999 = vmatprep.mubr.bf16.mxu0 0
        %5000 = vmatmul.mubr.bf16.gmra.mxu0 %v4872
        %v5001 = vpop.f32.mrf.mxu0
        %v5002 = vadd.f32 0.0, %v5001
        %v5003 = vpop.f32.mrf.mxu0
        %v5004 = vpop.f32.mrf.mxu0
        %v5005 = vadd.f32 0.0, %v5004
        %v5006 = vpop.f32.mrf.mxu0
        %5007 = vmatprep.mubr.bf16.mxu0 0
        %5008 = vmatmul.mubr.bf16.gmra.mxu0 %v4875
        %v5009 = vpop.f32.mrf.mxu0
        %v5010 = vadd.f32 0.0, %v5009
        %v5011 = vpop.f32.mrf.mxu0
        %v5012 = vpop.f32.mrf.mxu0
        %v5013 = vadd.f32 0.0, %v5012
        %v5014 = vpop.f32.mrf.mxu0
        %5015 = vmatprep.mubr.bf16.mxu0 0
        %5016 = vmatmul.mubr.bf16.gmra.mxu0 %v4878
        %v5017 = vpop.f32.mrf.mxu0
        %v5018 = vadd.f32 0.0, %v5017
        %v5019 = vpop.f32.mrf.mxu0
        %v5020 = vpop.f32.mrf.mxu0
        %v5021 = vadd.f32 0.0, %v5020
        %v5022 = vpop.f32.mrf.mxu0
        %5023 = vmatprep.mubr.bf16.mxu0 0
        %5024 = vmatmul.mubr.bf16.gmra.mxu0 %v4881
        %v5025 = vpop.f32.mrf.mxu0
        %v5026 = vadd.f32 0.0, %v5025
        %v5027 = vpop.f32.mrf.mxu0
        %v5028 = vpop.f32.mrf.mxu0
        %v5029 = vadd.f32 0.0, %v5028
        %v5030 = vpop.f32.mrf.mxu0
        %5031 = vmatprep.mubr.bf16.mxu0 0
        %5032 = vmatmul.mubr.bf16.gmra.mxu0 %v4884
        %v5033 = vpop.f32.mrf.mxu0
        %v5034 = vadd.f32 0.0, %v5033
        %v5035 = vpop.f32.mrf.mxu0
        %v5036 = vpop.f32.mrf.mxu0
        %v5037 = vadd.f32 0.0, %v5036
        %v5038 = vpop.f32.mrf.mxu0
        %5039 = vmatprep.mubr.bf16.mxu0 0
        %5040 = vmatmul.mubr.bf16.gmra.mxu0 %v4887
        %v5041 = vpop.f32.mrf.mxu0
        %v5042 = vadd.f32 0.0, %v5041
        %v5043 = vpop.f32.mrf.mxu0
        %v5044 = vpop.f32.mrf.mxu0
        %v5045 = vadd.f32 0.0, %v5044
        %v5046 = vpop.f32.mrf.mxu0
        %5047 = vmatprep.mubr.bf16.mxu0 0
        %5048 = vmatmul.mubr.bf16.gmra.mxu0 %v4890
        %v5049 = vpop.f32.mrf.mxu0
        %v5050 = vadd.f32 0.0, %v5049
        %v5051 = vpop.f32.mrf.mxu0
        %v5052 = vpop.f32.mrf.mxu0
        %v5053 = vadd.f32 0.0, %v5052
        %v5054 = vpop.f32.mrf.mxu0
        %5055 = vdwg.mxu0
        %v5056 = vadd.f32 %v4361, %v4930
        %v5057 = vadd.f32 %v4362, %v4933
        %v5058 = vadd.f32 %v4363, %v4938
        %v5059 = vadd.f32 %v4364, %v4941
        %v5060 = vadd.f32 %v4365, %v4946
        %v5061 = vadd.f32 %v4366, %v4949
        %v5062 = vadd.f32 %v4367, %v4954
        %v5063 = vadd.f32 %v4368, %v4957
        %v5064 = vadd.f32 %v4369, %v4962
        %v5065 = vadd.f32 %v4370, %v4965
        %v5066 = vadd.f32 %v4371, %v4970
        %v5067 = vadd.f32 %v4372, %v4973
        %v5068 = vadd.f32 %v4373, %v4978
        %v5069 = vadd.f32 %v4374, %v4981
        %v5070 = vadd.f32 %v4375, %v4986
        %v5071 = vadd.f32 %v4376, %v4989
        %v5072 = vadd.f32 %v4377, %v4994
        %v5073 = vadd.f32 %v4378, %v4997
        %v5074 = vadd.f32 %v4379, %v5002
        %v5075 = vadd.f32 %v4380, %v5005
        %v5076 = vadd.f32 %v4381, %v5010
        %v5077 = vadd.f32 %v4382, %v5013
        %v5078 = vadd.f32 %v4383, %v5018
        %v5079 = vadd.f32 %v4384, %v5021
        %v5080 = vadd.f32 %v4385, %v5026
        %v5081 = vadd.f32 %v4386, %v5029
        %v5082 = vadd.f32 %v4387, %v5034
        %v5083 = vadd.f32 %v4388, %v5037
        %v5084 = vadd.f32 %v4389, %v5042
        %v5085 = vadd.f32 %v4390, %v5045
        %v5086 = vadd.f32 %v4391, %v5050
        %v5087 = vadd.f32 %v4392, %v5053
        %s5088 = scalar_lea.vmem %s4, 14
        %v5089 = vld [vmem:[%s5088] sm:$0x3]
        %v5122 = vunpack.c.l.b16 %v4395
        %v5123 = vunpack.c.l.b16 %v4396
        %v5124 = vunpack.c.l.b16 %v4398
        %v5125 = vunpack.c.l.b16 %v4399
        %v5126 = vunpack.c.l.b16 %v4401
        %v5127 = vunpack.c.l.b16 %v4402
        %v5128 = vunpack.c.l.b16 %v4404
        %v5129 = vunpack.c.l.b16 %v4405
        %v5130 = vunpack.c.l.b16 %v4407
        %v5131 = vunpack.c.l.b16 %v4408
        %v5132 = vunpack.c.l.b16 %v4410
        %v5133 = vunpack.c.l.b16 %v4411
        %v5134 = vunpack.c.l.b16 %v4413
        %v5135 = vunpack.c.l.b16 %v4414
        %v5136 = vunpack.c.l.b16 %v4416
        %v5137 = vunpack.c.l.b16 %v4417
        %v5138 = vunpack.c.l.b16 %v4419
        %v5139 = vunpack.c.l.b16 %v4420
        %v5140 = vunpack.c.l.b16 %v4422
        %v5141 = vunpack.c.l.b16 %v4423
        %v5142 = vunpack.c.l.b16 %v4425
        %v5143 = vunpack.c.l.b16 %v4426
        %v5144 = vunpack.c.l.b16 %v4428
        %v5145 = vunpack.c.l.b16 %v4429
        %v5146 = vunpack.c.l.b16 %v4431
        %v5147 = vunpack.c.l.b16 %v4432
        %v5148 = vunpack.c.l.b16 %v4434
        %v5149 = vunpack.c.l.b16 %v4435
        %v5150 = vunpack.c.l.b16 %v4437
        %v5151 = vunpack.c.l.b16 %v4438
        %v5152 = vunpack.c.l.b16 %v4440
        %v5153 = vunpack.c.l.b16 %v4441
        %v5154 = vpack.c.b16 %v5123, %v5122
        %v5155 = vpack.c.b16 %v5125, %v5124
        %v5156 = vpack.c.b16 %v5127, %v5126
        %v5157 = vpack.c.b16 %v5129, %v5128
        %v5158 = vpack.c.b16 %v5131, %v5130
        %v5159 = vpack.c.b16 %v5133, %v5132
        %v5160 = vpack.c.b16 %v5135, %v5134
        %v5161 = vpack.c.b16 %v5137, %v5136
        %v5162 = vpack.c.b16 %v5139, %v5138
        %v5163 = vpack.c.b16 %v5141, %v5140
        %v5164 = vpack.c.b16 %v5143, %v5142
        %v5165 = vpack.c.b16 %v5145, %v5144
        %v5166 = vpack.c.b16 %v5147, %v5146
        %v5167 = vpack.c.b16 %v5149, %v5148
        %v5168 = vpack.c.b16 %v5151, %v5150
        %v5169 = vpack.c.b16 %v5153, %v5152
        %v5171 = vsel %vm1444, %v5154, 0
        %v5174 = vsel %vm1444, %v5155, 0
        %v5177 = vsel %vm1444, %v5156, 0
        %v5180 = vsel %vm1444, %v5157, 0
        %v5183 = vsel %vm1444, %v5158, 0
        %v5186 = vsel %vm1444, %v5159, 0
        %v5189 = vsel %vm1444, %v5160, 0
        %v5192 = vsel %vm1444, %v5161, 0
        %v5195 = vsel %vm1444, %v5162, 0
        %v5198 = vsel %vm1444, %v5163, 0
        %v5201 = vsel %vm1444, %v5164, 0
        %v5204 = vsel %vm1444, %v5165, 0
        %v5207 = vsel %vm1444, %v5166, 0
        %v5210 = vsel %vm1444, %v5167, 0
        %v5213 = vsel %vm1444, %v5168, 0
        %v5216 = vsel %vm1444, %v5169, 0
        %v5219 = vsel %vm1493, %v5089, 0
        %5221 = vmatprep.subr.bf16.mxu0 0
        %5222 = vmatpush1.bf16.msra.mxu0 0
        %5223 = vmatprep.subr.bf16.mxu0 0
        %5224 = vmatpush1.bf16.msra.mxu0 0
        %5225 = vmatprep.subr.bf16.mxu0 0
        %5226 = vmatpush1.bf16.msra.mxu0 0
        %5227 = vmatprep.subr.bf16.mxu0 0
        %5228 = vmatpush1.bf16.msra.mxu0 0
        %5229 = vmatprep.subr.bf16.mxu0 0
        %5230 = vmatpush1.bf16.msra.mxu0 0
        %5231 = vmatprep.subr.bf16.mxu0 0
        %5232 = vmatpush1.bf16.msra.mxu0 0
        %5233 = vmatprep.subr.bf16.mxu0 0
        %5234 = vmatpush1.bf16.msra.mxu0 0
        %5235 = vmatprep.subr.bf16.mxu0 0
        %5236 = vmatpush1.bf16.msra.mxu0 %v5219
        %5237 = vmatprep.subr.bf16.mxu0 0
        %5238 = vmatpush2.bf16.msra.mxu0 0
        %5239 = vmatprep.subr.bf16.mxu0 0
        %5240 = vmatpush2.bf16.msra.mxu0 0
        %5241 = vmatprep.subr.bf16.mxu0 0
        %5242 = vmatpush2.bf16.msra.mxu0 0
        %5243 = vmatprep.subr.bf16.mxu0 0
        %5244 = vmatpush2.bf16.msra.mxu0 0
        %5245 = vmatprep.subr.bf16.mxu0 0
        %5246 = vmatpush2.bf16.msra.mxu0 0
        %5247 = vmatprep.subr.bf16.mxu0 0
        %5248 = vmatpush2.bf16.msra.mxu0 0
        %5249 = vmatprep.subr.bf16.mxu0 0
        %5250 = vmatpush2.bf16.msra.mxu0 0
        %5251 = vmatprep.subr.bf16.mxu0 0
        %5252 = vmatpush2.bf16.msra.mxu0 0
        %5253 = vmatprep.mubr.bf16.mxu0 0
        %5254 = vmatmul.mubr.bf16.gmra.mxu0 %v5171
        %v5255 = vpop.f32.mrf.mxu0
        %v5256 = vadd.f32 0.0, %v5255
        %v5257 = vpop.f32.mrf.mxu0
        %v5258 = vpop.f32.mrf.mxu0
        %v5259 = vadd.f32 0.0, %v5258
        %v5260 = vpop.f32.mrf.mxu0
        %5261 = vmatprep.mubr.bf16.mxu0 0
        %5262 = vmatmul.mubr.bf16.gmra.mxu0 %v5174
        %v5263 = vpop.f32.mrf.mxu0
        %v5264 = vadd.f32 0.0, %v5263
        %v5265 = vpop.f32.mrf.mxu0
        %v5266 = vpop.f32.mrf.mxu0
        %v5267 = vadd.f32 0.0, %v5266
        %v5268 = vpop.f32.mrf.mxu0
        %5269 = vmatprep.mubr.bf16.mxu0 0
        %5270 = vmatmul.mubr.bf16.gmra.mxu0 %v5177
        %v5271 = vpop.f32.mrf.mxu0
        %v5272 = vadd.f32 0.0, %v5271
        %v5273 = vpop.f32.mrf.mxu0
        %v5274 = vpop.f32.mrf.mxu0
        %v5275 = vadd.f32 0.0, %v5274
        %v5276 = vpop.f32.mrf.mxu0
        %5277 = vmatprep.mubr.bf16.mxu0 0
        %5278 = vmatmul.mubr.bf16.gmra.mxu0 %v5180
        %v5279 = vpop.f32.mrf.mxu0
        %v5280 = vadd.f32 0.0, %v5279
        %v5281 = vpop.f32.mrf.mxu0
        %v5282 = vpop.f32.mrf.mxu0
        %v5283 = vadd.f32 0.0, %v5282
        %v5284 = vpop.f32.mrf.mxu0
        %5285 = vmatprep.mubr.bf16.mxu0 0
        %5286 = vmatmul.mubr.bf16.gmra.mxu0 %v5183
        %v5287 = vpop.f32.mrf.mxu0
        %v5288 = vadd.f32 0.0, %v5287
        %v5289 = vpop.f32.mrf.mxu0
        %v5290 = vpop.f32.mrf.mxu0
        %v5291 = vadd.f32 0.0, %v5290
        %v5292 = vpop.f32.mrf.mxu0
        %5293 = vmatprep.mubr.bf16.mxu0 0
        %5294 = vmatmul.mubr.bf16.gmra.mxu0 %v5186
        %v5295 = vpop.f32.mrf.mxu0
        %v5296 = vadd.f32 0.0, %v5295
        %v5297 = vpop.f32.mrf.mxu0
        %v5298 = vpop.f32.mrf.mxu0
        %v5299 = vadd.f32 0.0, %v5298
        %v5300 = vpop.f32.mrf.mxu0
        %5301 = vmatprep.mubr.bf16.mxu0 0
        %5302 = vmatmul.mubr.bf16.gmra.mxu0 %v5189
        %v5303 = vpop.f32.mrf.mxu0
        %v5304 = vadd.f32 0.0, %v5303
        %v5305 = vpop.f32.mrf.mxu0
        %v5306 = vpop.f32.mrf.mxu0
        %v5307 = vadd.f32 0.0, %v5306
        %v5308 = vpop.f32.mrf.mxu0
        %5309 = vmatprep.mubr.bf16.mxu0 0
        %5310 = vmatmul.mubr.bf16.gmra.mxu0 %v5192
        %v5311 = vpop.f32.mrf.mxu0
        %v5312 = vadd.f32 0.0, %v5311
        %v5313 = vpop.f32.mrf.mxu0
        %v5314 = vpop.f32.mrf.mxu0
        %v5315 = vadd.f32 0.0, %v5314
        %v5316 = vpop.f32.mrf.mxu0
        %5317 = vmatprep.mubr.bf16.mxu0 0
        %5318 = vmatmul.mubr.bf16.gmra.mxu0 %v5195
        %v5319 = vpop.f32.mrf.mxu0
        %v5320 = vadd.f32 0.0, %v5319
        %v5321 = vpop.f32.mrf.mxu0
        %v5322 = vpop.f32.mrf.mxu0
        %v5323 = vadd.f32 0.0, %v5322
        %v5324 = vpop.f32.mrf.mxu0
        %5325 = vmatprep.mubr.bf16.mxu0 0
        %5326 = vmatmul.mubr.bf16.gmra.mxu0 %v5198
        %v5327 = vpop.f32.mrf.mxu0
        %v5328 = vadd.f32 0.0, %v5327
        %v5329 = vpop.f32.mrf.mxu0
        %v5330 = vpop.f32.mrf.mxu0
        %v5331 = vadd.f32 0.0, %v5330
        %v5332 = vpop.f32.mrf.mxu0
        %5333 = vmatprep.mubr.bf16.mxu0 0
        %5334 = vmatmul.mubr.bf16.gmra.mxu0 %v5201
        %v5335 = vpop.f32.mrf.mxu0
        %v5336 = vadd.f32 0.0, %v5335
        %v5337 = vpop.f32.mrf.mxu0
        %v5338 = vpop.f32.mrf.mxu0
        %v5339 = vadd.f32 0.0, %v5338
        %v5340 = vpop.f32.mrf.mxu0
        %5341 = vmatprep.mubr.bf16.mxu0 0
        %5342 = vmatmul.mubr.bf16.gmra.mxu0 %v5204
        %v5343 = vpop.f32.mrf.mxu0
        %v5344 = vadd.f32 0.0, %v5343
        %v5345 = vpop.f32.mrf.mxu0
        %v5346 = vpop.f32.mrf.mxu0
        %v5347 = vadd.f32 0.0, %v5346
        %v5348 = vpop.f32.mrf.mxu0
        %5349 = vmatprep.mubr.bf16.mxu0 0
        %5350 = vmatmul.mubr.bf16.gmra.mxu0 %v5207
        %v5351 = vpop.f32.mrf.mxu0
        %v5352 = vadd.f32 0.0, %v5351
        %v5353 = vpop.f32.mrf.mxu0
        %v5354 = vpop.f32.mrf.mxu0
        %v5355 = vadd.f32 0.0, %v5354
        %v5356 = vpop.f32.mrf.mxu0
        %5357 = vmatprep.mubr.bf16.mxu0 0
        %5358 = vmatmul.mubr.bf16.gmra.mxu0 %v5210
        %v5359 = vpop.f32.mrf.mxu0
        %v5360 = vadd.f32 0.0, %v5359
        %v5361 = vpop.f32.mrf.mxu0
        %v5362 = vpop.f32.mrf.mxu0
        %v5363 = vadd.f32 0.0, %v5362
        %v5364 = vpop.f32.mrf.mxu0
        %5365 = vmatprep.mubr.bf16.mxu0 0
        %5366 = vmatmul.mubr.bf16.gmra.mxu0 %v5213
        %v5367 = vpop.f32.mrf.mxu0
        %v5368 = vadd.f32 0.0, %v5367
        %v5369 = vpop.f32.mrf.mxu0
        %v5370 = vpop.f32.mrf.mxu0
        %v5371 = vadd.f32 0.0, %v5370
        %v5372 = vpop.f32.mrf.mxu0
        %5373 = vmatprep.mubr.bf16.mxu0 0
        %5374 = vmatmul.mubr.bf16.gmra.mxu0 %v5216
        %v5375 = vpop.f32.mrf.mxu0
        %v5376 = vadd.f32 0.0, %v5375
        %v5377 = vpop.f32.mrf.mxu0
        %v5378 = vpop.f32.mrf.mxu0
        %v5379 = vadd.f32 0.0, %v5378
        %v5380 = vpop.f32.mrf.mxu0
        %5381 = vdwg.mxu0
        %v5382 = vadd.f32 %v5056, %v5256
        %v5383 = vadd.f32 %v5057, %v5259
        %v5384 = vadd.f32 %v5058, %v5264
        %v5385 = vadd.f32 %v5059, %v5267
        %v5386 = vadd.f32 %v5060, %v5272
        %v5387 = vadd.f32 %v5061, %v5275
        %v5388 = vadd.f32 %v5062, %v5280
        %v5389 = vadd.f32 %v5063, %v5283
        %v5390 = vadd.f32 %v5064, %v5288
        %v5391 = vadd.f32 %v5065, %v5291
        %v5392 = vadd.f32 %v5066, %v5296
        %v5393 = vadd.f32 %v5067, %v5299
        %v5394 = vadd.f32 %v5068, %v5304
        %v5395 = vadd.f32 %v5069, %v5307
        %v5396 = vadd.f32 %v5070, %v5312
        %v5397 = vadd.f32 %v5071, %v5315
        %v5398 = vadd.f32 %v5072, %v5320
        %v5399 = vadd.f32 %v5073, %v5323
        %v5400 = vadd.f32 %v5074, %v5328
        %v5401 = vadd.f32 %v5075, %v5331
        %v5402 = vadd.f32 %v5076, %v5336
        %v5403 = vadd.f32 %v5077, %v5339
        %v5404 = vadd.f32 %v5078, %v5344
        %v5405 = vadd.f32 %v5079, %v5347
        %v5406 = vadd.f32 %v5080, %v5352
        %v5407 = vadd.f32 %v5081, %v5355
        %v5408 = vadd.f32 %v5082, %v5360
        %v5409 = vadd.f32 %v5083, %v5363
        %v5410 = vadd.f32 %v5084, %v5368
        %v5411 = vadd.f32 %v5085, %v5371
        %v5412 = vadd.f32 %v5086, %v5376
        %v5413 = vadd.f32 %v5087, %v5379
        %v5414 = vld [vmem:[%s4393 + $0x4] sm:$0xf]
        %v5415 = vld [vmem:[%s4393 + $0x8] sm:$0xf]
        %v5416 = vld [vmem:[%s4393 + $0xc] sm:$0x1]
        %v5417 = vld [vmem:[%s4393 + $0x14] sm:$0xf]
        %v5418 = vld [vmem:[%s4393 + $0x18] sm:$0xf]
        %v5419 = vld [vmem:[%s4393 + $0x1c] sm:$0x1]
        %v5420 = vld [vmem:[%s4393 + $0x24] sm:$0xf]
        %v5421 = vld [vmem:[%s4393 + $0x28] sm:$0xf]
        %v5422 = vld [vmem:[%s4393 + $0x2c] sm:$0x1]
        %v5423 = vld [vmem:[%s4393 + $0x34] sm:$0xf]
        %v5424 = vld [vmem:[%s4393 + $0x38] sm:$0xf]
        %v5425 = vld [vmem:[%s4393 + $0x3c] sm:$0x1]
        %v5426 = vld [vmem:[%s4393 + $0x44] sm:$0xf]
        %v5427 = vld [vmem:[%s4393 + $0x48] sm:$0xf]
        %v5428 = vld [vmem:[%s4393 + $0x4c] sm:$0x1]
        %v5429 = vld [vmem:[%s4393 + $0x54] sm:$0xf]
        %v5430 = vld [vmem:[%s4393 + $0x58] sm:$0xf]
        %v5431 = vld [vmem:[%s4393 + $0x5c] sm:$0x1]
        %v5432 = vld [vmem:[%s4393 + $0x64] sm:$0xf]
        %v5433 = vld [vmem:[%s4393 + $0x68] sm:$0xf]
        %v5434 = vld [vmem:[%s4393 + $0x6c] sm:$0x1]
        %v5435 = vld [vmem:[%s4393 + $0x74] sm:$0xf]
        %v5436 = vld [vmem:[%s4393 + $0x78] sm:$0xf]
        %v5437 = vld [vmem:[%s4393 + $0x7c] sm:$0x1]
        %v5438 = vld [vmem:[%s4393 + $0x84] sm:$0xf]
        %v5439 = vld [vmem:[%s4393 + $0x88] sm:$0xf]
        %v5440 = vld [vmem:[%s4393 + $0x8c] sm:$0x1]
        %v5441 = vld [vmem:[%s4393 + $0x94] sm:$0xf]
        %v5442 = vld [vmem:[%s4393 + $0x98] sm:$0xf]
        %v5443 = vld [vmem:[%s4393 + $0x9c] sm:$0x1]
        %v5444 = vld [vmem:[%s4393 + $0xa4] sm:$0xf]
        %v5445 = vld [vmem:[%s4393 + $0xa8] sm:$0xf]
        %v5446 = vld [vmem:[%s4393 + $0xac] sm:$0x1]
        %v5447 = vld [vmem:[%s4393 + $0xb4] sm:$0xf]
        %v5448 = vld [vmem:[%s4393 + $0xb8] sm:$0xf]
        %v5449 = vld [vmem:[%s4393 + $0xbc] sm:$0x1]
        %v5450 = vld [vmem:[%s4393 + $0xc4] sm:$0xf]
        %v5451 = vld [vmem:[%s4393 + $0xc8] sm:$0xf]
        %v5452 = vld [vmem:[%s4393 + $0xcc] sm:$0x1]
        %v5453 = vld [vmem:[%s4393 + $0xd4] sm:$0xf]
        %v5454 = vld [vmem:[%s4393 + $0xd8] sm:$0xf]
        %v5455 = vld [vmem:[%s4393 + $0xdc] sm:$0x1]
        %v5456 = vld [vmem:[%s4393 + $0xe4] sm:$0xf]
        %v5457 = vld [vmem:[%s4393 + $0xe8] sm:$0xf]
        %v5458 = vld [vmem:[%s4393 + $0xec] sm:$0x1]
        %v5459 = vld [vmem:[%s4393 + $0xf4] sm:$0xf]
        %v5460 = vld [vmem:[%s4393 + $0xf8] sm:$0xf]
        %v5461 = vld [vmem:[%s4393 + $0xfc] sm:$0x1]
        %v5463 = vshrl.u32 %v5414, 16
        %v5465 = vrot.slane %v5463, 4
        %v5466 = vshll.u32 %v5414, 16
        %v5468 = vrot.slane %v5466, 5
        %v5469 = vor.u32 %v5465, %v5468
        %v5470 = vrot.slane %v5469, 4
        %v5472 = vshll.u32 %v5415, 16
        %v5474 = vrot.slane %v5472, 5
        %v5475 = vsel %vm1968, %v5470, %v5474
        %v5476 = vshrl.u32 %v5415, 16
        %v5478 = vrot.slane %v5476, 4
        %v5479 = vor.u32 %v5478, %v5474
        %v5480 = vrot.slane %v5479, 4
        %v5482 = vshll.u32 %v5416, 16
        %v5484 = vrot.slane %v5482, 5
        %v5485 = vsel %vm1968, %v5480, %v5484
        %v5487 = vshrl.u32 %v5417, 16
        %v5489 = vrot.slane %v5487, 4
        %v5490 = vshll.u32 %v5417, 16
        %v5492 = vrot.slane %v5490, 5
        %v5493 = vor.u32 %v5489, %v5492
        %v5494 = vrot.slane %v5493, 4
        %v5496 = vshll.u32 %v5418, 16
        %v5498 = vrot.slane %v5496, 5
        %v5499 = vsel %vm1968, %v5494, %v5498
        %v5500 = vshrl.u32 %v5418, 16
        %v5502 = vrot.slane %v5500, 4
        %v5503 = vor.u32 %v5502, %v5498
        %v5504 = vrot.slane %v5503, 4
        %v5506 = vshll.u32 %v5419, 16
        %v5508 = vrot.slane %v5506, 5
        %v5509 = vsel %vm1968, %v5504, %v5508
        %v5511 = vshrl.u32 %v5420, 16
        %v5513 = vrot.slane %v5511, 4
        %v5514 = vshll.u32 %v5420, 16
        %v5516 = vrot.slane %v5514, 5
        %v5517 = vor.u32 %v5513, %v5516
        %v5518 = vrot.slane %v5517, 4
        %v5520 = vshll.u32 %v5421, 16
        %v5522 = vrot.slane %v5520, 5
        %v5523 = vsel %vm1968, %v5518, %v5522
        %v5524 = vshrl.u32 %v5421, 16
        %v5526 = vrot.slane %v5524, 4
        %v5527 = vor.u32 %v5526, %v5522
        %v5528 = vrot.slane %v5527, 4
        %v5530 = vshll.u32 %v5422, 16
        %v5532 = vrot.slane %v5530, 5
        %v5533 = vsel %vm1968, %v5528, %v5532
        %v5535 = vshrl.u32 %v5423, 16
        %v5537 = vrot.slane %v5535, 4
        %v5538 = vshll.u32 %v5423, 16
        %v5540 = vrot.slane %v5538, 5
        %v5541 = vor.u32 %v5537, %v5540
        %v5542 = vrot.slane %v5541, 4
        %v5544 = vshll.u32 %v5424, 16
        %v5546 = vrot.slane %v5544, 5
        %v5547 = vsel %vm1968, %v5542, %v5546
        %v5548 = vshrl.u32 %v5424, 16
        %v5550 = vrot.slane %v5548, 4
        %v5551 = vor.u32 %v5550, %v5546
        %v5552 = vrot.slane %v5551, 4
        %v5554 = vshll.u32 %v5425, 16
        %v5556 = vrot.slane %v5554, 5
        %v5557 = vsel %vm1968, %v5552, %v5556
        %v5559 = vshrl.u32 %v5426, 16
        %v5561 = vrot.slane %v5559, 4
        %v5562 = vshll.u32 %v5426, 16
        %v5564 = vrot.slane %v5562, 5
        %v5565 = vor.u32 %v5561, %v5564
        %v5566 = vrot.slane %v5565, 4
        %v5568 = vshll.u32 %v5427, 16
        %v5570 = vrot.slane %v5568, 5
        %v5571 = vsel %vm1968, %v5566, %v5570
        %v5572 = vshrl.u32 %v5427, 16
        %v5574 = vrot.slane %v5572, 4
        %v5575 = vor.u32 %v5574, %v5570
        %v5576 = vrot.slane %v5575, 4
        %v5578 = vshll.u32 %v5428, 16
        %v5580 = vrot.slane %v5578, 5
        %v5581 = vsel %vm1968, %v5576, %v5580
        %v5583 = vshrl.u32 %v5429, 16
        %v5585 = vrot.slane %v5583, 4
        %v5586 = vshll.u32 %v5429, 16
        %v5588 = vrot.slane %v5586, 5
        %v5589 = vor.u32 %v5585, %v5588
        %v5590 = vrot.slane %v5589, 4
        %v5592 = vshll.u32 %v5430, 16
        %v5594 = vrot.slane %v5592, 5
        %v5595 = vsel %vm1968, %v5590, %v5594
        %v5596 = vshrl.u32 %v5430, 16
        %v5598 = vrot.slane %v5596, 4
        %v5599 = vor.u32 %v5598, %v5594
        %v5600 = vrot.slane %v5599, 4
        %v5602 = vshll.u32 %v5431, 16
        %v5604 = vrot.slane %v5602, 5
        %v5605 = vsel %vm1968, %v5600, %v5604
        %v5607 = vshrl.u32 %v5432, 16
        %v5609 = vrot.slane %v5607, 4
        %v5610 = vshll.u32 %v5432, 16
        %v5612 = vrot.slane %v5610, 5
        %v5613 = vor.u32 %v5609, %v5612
        %v5614 = vrot.slane %v5613, 4
        %v5616 = vshll.u32 %v5433, 16
        %v5618 = vrot.slane %v5616, 5
        %v5619 = vsel %vm1968, %v5614, %v5618
        %v5620 = vshrl.u32 %v5433, 16
        %v5622 = vrot.slane %v5620, 4
        %v5623 = vor.u32 %v5622, %v5618
        %v5624 = vrot.slane %v5623, 4
        %v5626 = vshll.u32 %v5434, 16
        %v5628 = vrot.slane %v5626, 5
        %v5629 = vsel %vm1968, %v5624, %v5628
        %v5631 = vshrl.u32 %v5435, 16
        %v5633 = vrot.slane %v5631, 4
        %v5634 = vshll.u32 %v5435, 16
        %v5636 = vrot.slane %v5634, 5
        %v5637 = vor.u32 %v5633, %v5636
        %v5638 = vrot.slane %v5637, 4
        %v5640 = vshll.u32 %v5436, 16
        %v5642 = vrot.slane %v5640, 5
        %v5643 = vsel %vm1968, %v5638, %v5642
        %v5644 = vshrl.u32 %v5436, 16
        %v5646 = vrot.slane %v5644, 4
        %v5647 = vor.u32 %v5646, %v5642
        %v5648 = vrot.slane %v5647, 4
        %v5650 = vshll.u32 %v5437, 16
        %v5652 = vrot.slane %v5650, 5
        %v5653 = vsel %vm1968, %v5648, %v5652
        %v5655 = vshrl.u32 %v5438, 16
        %v5657 = vrot.slane %v5655, 4
        %v5658 = vshll.u32 %v5438, 16
        %v5660 = vrot.slane %v5658, 5
        %v5661 = vor.u32 %v5657, %v5660
        %v5662 = vrot.slane %v5661, 4
        %v5664 = vshll.u32 %v5439, 16
        %v5666 = vrot.slane %v5664, 5
        %v5667 = vsel %vm1968, %v5662, %v5666
        %v5668 = vshrl.u32 %v5439, 16
        %v5670 = vrot.slane %v5668, 4
        %v5671 = vor.u32 %v5670, %v5666
        %v5672 = vrot.slane %v5671, 4
        %v5674 = vshll.u32 %v5440, 16
        %v5676 = vrot.slane %v5674, 5
        %v5677 = vsel %vm1968, %v5672, %v5676
        %v5679 = vshrl.u32 %v5441, 16
        %v5681 = vrot.slane %v5679, 4
        %v5682 = vshll.u32 %v5441, 16
        %v5684 = vrot.slane %v5682, 5
        %v5685 = vor.u32 %v5681, %v5684
        %v5686 = vrot.slane %v5685, 4
        %v5688 = vshll.u32 %v5442, 16
        %v5690 = vrot.slane %v5688, 5
        %v5691 = vsel %vm1968, %v5686, %v5690
        %v5692 = vshrl.u32 %v5442, 16
        %v5694 = vrot.slane %v5692, 4
        %v5695 = vor.u32 %v5694, %v5690
        %v5696 = vrot.slane %v5695, 4
        %v5698 = vshll.u32 %v5443, 16
        %v5700 = vrot.slane %v5698, 5
        %v5701 = vsel %vm1968, %v5696, %v5700
        %v5703 = vshrl.u32 %v5444, 16
        %v5705 = vrot.slane %v5703, 4
        %v5706 = vshll.u32 %v5444, 16
        %v5708 = vrot.slane %v5706, 5
        %v5709 = vor.u32 %v5705, %v5708
        %v5710 = vrot.slane %v5709, 4
        %v5712 = vshll.u32 %v5445, 16
        %v5714 = vrot.slane %v5712, 5
        %v5715 = vsel %vm1968, %v5710, %v5714
        %v5716 = vshrl.u32 %v5445, 16
        %v5718 = vrot.slane %v5716, 4
        %v5719 = vor.u32 %v5718, %v5714
        %v5720 = vrot.slane %v5719, 4
        %v5722 = vshll.u32 %v5446, 16
        %v5724 = vrot.slane %v5722, 5
        %v5725 = vsel %vm1968, %v5720, %v5724
        %v5727 = vshrl.u32 %v5447, 16
        %v5729 = vrot.slane %v5727, 4
        %v5730 = vshll.u32 %v5447, 16
        %v5732 = vrot.slane %v5730, 5
        %v5733 = vor.u32 %v5729, %v5732
        %v5734 = vrot.slane %v5733, 4
        %v5736 = vshll.u32 %v5448, 16
        %v5738 = vrot.slane %v5736, 5
        %v5739 = vsel %vm1968, %v5734, %v5738
        %v5740 = vshrl.u32 %v5448, 16
        %v5742 = vrot.slane %v5740, 4
        %v5743 = vor.u32 %v5742, %v5738
        %v5744 = vrot.slane %v5743, 4
        %v5746 = vshll.u32 %v5449, 16
        %v5748 = vrot.slane %v5746, 5
        %v5749 = vsel %vm1968, %v5744, %v5748
        %v5751 = vshrl.u32 %v5450, 16
        %v5753 = vrot.slane %v5751, 4
        %v5754 = vshll.u32 %v5450, 16
        %v5756 = vrot.slane %v5754, 5
        %v5757 = vor.u32 %v5753, %v5756
        %v5758 = vrot.slane %v5757, 4
        %v5760 = vshll.u32 %v5451, 16
        %v5762 = vrot.slane %v5760, 5
        %v5763 = vsel %vm1968, %v5758, %v5762
        %v5764 = vshrl.u32 %v5451, 16
        %v5766 = vrot.slane %v5764, 4
        %v5767 = vor.u32 %v5766, %v5762
        %v5768 = vrot.slane %v5767, 4
        %v5770 = vshll.u32 %v5452, 16
        %v5772 = vrot.slane %v5770, 5
        %v5773 = vsel %vm1968, %v5768, %v5772
        %v5775 = vshrl.u32 %v5453, 16
        %v5777 = vrot.slane %v5775, 4
        %v5778 = vshll.u32 %v5453, 16
        %v5780 = vrot.slane %v5778, 5
        %v5781 = vor.u32 %v5777, %v5780
        %v5782 = vrot.slane %v5781, 4
        %v5784 = vshll.u32 %v5454, 16
        %v5786 = vrot.slane %v5784, 5
        %v5787 = vsel %vm1968, %v5782, %v5786
        %v5788 = vshrl.u32 %v5454, 16
        %v5790 = vrot.slane %v5788, 4
        %v5791 = vor.u32 %v5790, %v5786
        %v5792 = vrot.slane %v5791, 4
        %v5794 = vshll.u32 %v5455, 16
        %v5796 = vrot.slane %v5794, 5
        %v5797 = vsel %vm1968, %v5792, %v5796
        %v5799 = vshrl.u32 %v5456, 16
        %v5801 = vrot.slane %v5799, 4
        %v5802 = vshll.u32 %v5456, 16
        %v5804 = vrot.slane %v5802, 5
        %v5805 = vor.u32 %v5801, %v5804
        %v5806 = vrot.slane %v5805, 4
        %v5808 = vshll.u32 %v5457, 16
        %v5810 = vrot.slane %v5808, 5
        %v5811 = vsel %vm1968, %v5806, %v5810
        %v5812 = vshrl.u32 %v5457, 16
        %v5814 = vrot.slane %v5812, 4
        %v5815 = vor.u32 %v5814, %v5810
        %v5816 = vrot.slane %v5815, 4
        %v5818 = vshll.u32 %v5458, 16
        %v5820 = vrot.slane %v5818, 5
        %v5821 = vsel %vm1968, %v5816, %v5820
        %v5823 = vshrl.u32 %v5459, 16
        %v5825 = vrot.slane %v5823, 4
        %v5826 = vshll.u32 %v5459, 16
        %v5828 = vrot.slane %v5826, 5
        %v5829 = vor.u32 %v5825, %v5828
        %v5830 = vrot.slane %v5829, 4
        %v5832 = vshll.u32 %v5460, 16
        %v5834 = vrot.slane %v5832, 5
        %v5835 = vsel %vm1968, %v5830, %v5834
        %v5836 = vshrl.u32 %v5460, 16
        %v5838 = vrot.slane %v5836, 4
        %v5839 = vor.u32 %v5838, %v5834
        %v5840 = vrot.slane %v5839, 4
        %v5842 = vshll.u32 %v5461, 16
        %v5844 = vrot.slane %v5842, 5
        %v5845 = vsel %vm1968, %v5840, %v5844
        %s5846 = scalar_lea.vmem %s4, 16
        %v5847 = vld [vmem:[%s5846] sm:$0x3]
        %v5848 = vunpack.c.l.b16 %v5475
        %v5849 = vunpack.c.l.b16 %v5485
        %v5850 = vunpack.c.l.b16 %v5499
        %v5851 = vunpack.c.l.b16 %v5509
        %v5852 = vunpack.c.l.b16 %v5523
        %v5853 = vunpack.c.l.b16 %v5533
        %v5854 = vunpack.c.l.b16 %v5547
        %v5855 = vunpack.c.l.b16 %v5557
        %v5856 = vunpack.c.l.b16 %v5571
        %v5857 = vunpack.c.l.b16 %v5581
        %v5858 = vunpack.c.l.b16 %v5595
        %v5859 = vunpack.c.l.b16 %v5605
        %v5860 = vunpack.c.l.b16 %v5619
        %v5861 = vunpack.c.l.b16 %v5629
        %v5862 = vunpack.c.l.b16 %v5643
        %v5863 = vunpack.c.l.b16 %v5653
        %v5864 = vunpack.c.l.b16 %v5667
        %v5865 = vunpack.c.l.b16 %v5677
        %v5866 = vunpack.c.l.b16 %v5691
        %v5867 = vunpack.c.l.b16 %v5701
        %v5868 = vunpack.c.l.b16 %v5715
        %v5869 = vunpack.c.l.b16 %v5725
        %v5870 = vunpack.c.l.b16 %v5739
        %v5871 = vunpack.c.l.b16 %v5749
        %v5872 = vunpack.c.l.b16 %v5763
        %v5873 = vunpack.c.l.b16 %v5773
        %v5874 = vunpack.c.l.b16 %v5787
        %v5875 = vunpack.c.l.b16 %v5797
        %v5876 = vunpack.c.l.b16 %v5811
        %v5877 = vunpack.c.l.b16 %v5821
        %v5878 = vunpack.c.l.b16 %v5835
        %v5879 = vunpack.c.l.b16 %v5845
        %v5880 = vpack.c.b16 %v5849, %v5848
        %v5881 = vpack.c.b16 %v5851, %v5850
        %v5882 = vpack.c.b16 %v5853, %v5852
        %v5883 = vpack.c.b16 %v5855, %v5854
        %v5884 = vpack.c.b16 %v5857, %v5856
        %v5885 = vpack.c.b16 %v5859, %v5858
        %v5886 = vpack.c.b16 %v5861, %v5860
        %v5887 = vpack.c.b16 %v5863, %v5862
        %v5888 = vpack.c.b16 %v5865, %v5864
        %v5889 = vpack.c.b16 %v5867, %v5866
        %v5890 = vpack.c.b16 %v5869, %v5868
        %v5891 = vpack.c.b16 %v5871, %v5870
        %v5892 = vpack.c.b16 %v5873, %v5872
        %v5893 = vpack.c.b16 %v5875, %v5874
        %v5894 = vpack.c.b16 %v5877, %v5876
        %v5895 = vpack.c.b16 %v5879, %v5878
        %v5897 = vsel %vm1444, %v5880, 0
        %v5900 = vsel %vm1444, %v5881, 0
        %v5903 = vsel %vm1444, %v5882, 0
        %v5906 = vsel %vm1444, %v5883, 0
        %v5909 = vsel %vm1444, %v5884, 0
        %v5912 = vsel %vm1444, %v5885, 0
        %v5915 = vsel %vm1444, %v5886, 0
        %v5918 = vsel %vm1444, %v5887, 0
        %v5921 = vsel %vm1444, %v5888, 0
        %v5924 = vsel %vm1444, %v5889, 0
        %v5927 = vsel %vm1444, %v5890, 0
        %v5930 = vsel %vm1444, %v5891, 0
        %v5933 = vsel %vm1444, %v5892, 0
        %v5936 = vsel %vm1444, %v5893, 0
        %v5939 = vsel %vm1444, %v5894, 0
        %v5942 = vsel %vm1444, %v5895, 0
        %v5945 = vsel %vm1493, %v5847, 0
        %5947 = vmatprep.subr.bf16.mxu0 0
        %5948 = vmatpush1.bf16.msra.mxu0 0
        %5949 = vmatprep.subr.bf16.mxu0 0
        %5950 = vmatpush1.bf16.msra.mxu0 0
        %5951 = vmatprep.subr.bf16.mxu0 0
        %5952 = vmatpush1.bf16.msra.mxu0 0
        %5953 = vmatprep.subr.bf16.mxu0 0
        %5954 = vmatpush1.bf16.msra.mxu0 0
        %5955 = vmatprep.subr.bf16.mxu0 0
        %5956 = vmatpush1.bf16.msra.mxu0 0
        %5957 = vmatprep.subr.bf16.mxu0 0
        %5958 = vmatpush1.bf16.msra.mxu0 0
        %5959 = vmatprep.subr.bf16.mxu0 0
        %5960 = vmatpush1.bf16.msra.mxu0 0
        %5961 = vmatprep.subr.bf16.mxu0 0
        %5962 = vmatpush1.bf16.msra.mxu0 %v5945
        %5963 = vmatprep.subr.bf16.mxu0 0
        %5964 = vmatpush2.bf16.msra.mxu0 0
        %5965 = vmatprep.subr.bf16.mxu0 0
        %5966 = vmatpush2.bf16.msra.mxu0 0
        %5967 = vmatprep.subr.bf16.mxu0 0
        %5968 = vmatpush2.bf16.msra.mxu0 0
        %5969 = vmatprep.subr.bf16.mxu0 0
        %5970 = vmatpush2.bf16.msra.mxu0 0
        %5971 = vmatprep.subr.bf16.mxu0 0
        %5972 = vmatpush2.bf16.msra.mxu0 0
        %5973 = vmatprep.subr.bf16.mxu0 0
        %5974 = vmatpush2.bf16.msra.mxu0 0
        %5975 = vmatprep.subr.bf16.mxu0 0
        %5976 = vmatpush2.bf16.msra.mxu0 0
        %5977 = vmatprep.subr.bf16.mxu0 0
        %5978 = vmatpush2.bf16.msra.mxu0 0
        %5979 = vmatprep.mubr.bf16.mxu0 0
        %5980 = vmatmul.mubr.bf16.gmra.mxu0 %v5897
        %v5981 = vpop.f32.mrf.mxu0
        %v5982 = vadd.f32 0.0, %v5981
        %v5983 = vpop.f32.mrf.mxu0
        %v5984 = vpop.f32.mrf.mxu0
        %v5985 = vadd.f32 0.0, %v5984
        %v5986 = vpop.f32.mrf.mxu0
        %5987 = vmatprep.mubr.bf16.mxu0 0
        %5988 = vmatmul.mubr.bf16.gmra.mxu0 %v5900
        %v5989 = vpop.f32.mrf.mxu0
        %v5990 = vadd.f32 0.0, %v5989
        %v5991 = vpop.f32.mrf.mxu0
        %v5992 = vpop.f32.mrf.mxu0
        %v5993 = vadd.f32 0.0, %v5992
        %v5994 = vpop.f32.mrf.mxu0
        %5995 = vmatprep.mubr.bf16.mxu0 0
        %5996 = vmatmul.mubr.bf16.gmra.mxu0 %v5903
        %v5997 = vpop.f32.mrf.mxu0
        %v5998 = vadd.f32 0.0, %v5997
        %v5999 = vpop.f32.mrf.mxu0
        %v6000 = vpop.f32.mrf.mxu0
        %v6001 = vadd.f32 0.0, %v6000
        %v6002 = vpop.f32.mrf.mxu0
        %6003 = vmatprep.mubr.bf16.mxu0 0
        %6004 = vmatmul.mubr.bf16.gmra.mxu0 %v5906
        %v6005 = vpop.f32.mrf.mxu0
        %v6006 = vadd.f32 0.0, %v6005
        %v6007 = vpop.f32.mrf.mxu0
        %v6008 = vpop.f32.mrf.mxu0
        %v6009 = vadd.f32 0.0, %v6008
        %v6010 = vpop.f32.mrf.mxu0
        %6011 = vmatprep.mubr.bf16.mxu0 0
        %6012 = vmatmul.mubr.bf16.gmra.mxu0 %v5909
        %v6013 = vpop.f32.mrf.mxu0
        %v6014 = vadd.f32 0.0, %v6013
        %v6015 = vpop.f32.mrf.mxu0
        %v6016 = vpop.f32.mrf.mxu0
        %v6017 = vadd.f32 0.0, %v6016
        %v6018 = vpop.f32.mrf.mxu0
        %6019 = vmatprep.mubr.bf16.mxu0 0
        %6020 = vmatmul.mubr.bf16.gmra.mxu0 %v5912
        %v6021 = vpop.f32.mrf.mxu0
        %v6022 = vadd.f32 0.0, %v6021
        %v6023 = vpop.f32.mrf.mxu0
        %v6024 = vpop.f32.mrf.mxu0
        %v6025 = vadd.f32 0.0, %v6024
        %v6026 = vpop.f32.mrf.mxu0
        %6027 = vmatprep.mubr.bf16.mxu0 0
        %6028 = vmatmul.mubr.bf16.gmra.mxu0 %v5915
        %v6029 = vpop.f32.mrf.mxu0
        %v6030 = vadd.f32 0.0, %v6029
        %v6031 = vpop.f32.mrf.mxu0
        %v6032 = vpop.f32.mrf.mxu0
        %v6033 = vadd.f32 0.0, %v6032
        %v6034 = vpop.f32.mrf.mxu0
        %6035 = vmatprep.mubr.bf16.mxu0 0
        %6036 = vmatmul.mubr.bf16.gmra.mxu0 %v5918
        %v6037 = vpop.f32.mrf.mxu0
        %v6038 = vadd.f32 0.0, %v6037
        %v6039 = vpop.f32.mrf.mxu0
        %v6040 = vpop.f32.mrf.mxu0
        %v6041 = vadd.f32 0.0, %v6040
        %v6042 = vpop.f32.mrf.mxu0
        %6043 = vmatprep.mubr.bf16.mxu0 0
        %6044 = vmatmul.mubr.bf16.gmra.mxu0 %v5921
        %v6045 = vpop.f32.mrf.mxu0
        %v6046 = vadd.f32 0.0, %v6045
        %v6047 = vpop.f32.mrf.mxu0
        %v6048 = vpop.f32.mrf.mxu0
        %v6049 = vadd.f32 0.0, %v6048
        %v6050 = vpop.f32.mrf.mxu0
        %6051 = vmatprep.mubr.bf16.mxu0 0
        %6052 = vmatmul.mubr.bf16.gmra.mxu0 %v5924
        %v6053 = vpop.f32.mrf.mxu0
        %v6054 = vadd.f32 0.0, %v6053
        %v6055 = vpop.f32.mrf.mxu0
        %v6056 = vpop.f32.mrf.mxu0
        %v6057 = vadd.f32 0.0, %v6056
        %v6058 = vpop.f32.mrf.mxu0
        %6059 = vmatprep.mubr.bf16.mxu0 0
        %6060 = vmatmul.mubr.bf16.gmra.mxu0 %v5927
        %v6061 = vpop.f32.mrf.mxu0
        %v6062 = vadd.f32 0.0, %v6061
        %v6063 = vpop.f32.mrf.mxu0
        %v6064 = vpop.f32.mrf.mxu0
        %v6065 = vadd.f32 0.0, %v6064
        %v6066 = vpop.f32.mrf.mxu0
        %6067 = vmatprep.mubr.bf16.mxu0 0
        %6068 = vmatmul.mubr.bf16.gmra.mxu0 %v5930
        %v6069 = vpop.f32.mrf.mxu0
        %v6070 = vadd.f32 0.0, %v6069
        %v6071 = vpop.f32.mrf.mxu0
        %v6072 = vpop.f32.mrf.mxu0
        %v6073 = vadd.f32 0.0, %v6072
        %v6074 = vpop.f32.mrf.mxu0
        %6075 = vmatprep.mubr.bf16.mxu0 0
        %6076 = vmatmul.mubr.bf16.gmra.mxu0 %v5933
        %v6077 = vpop.f32.mrf.mxu0
        %v6078 = vadd.f32 0.0, %v6077
        %v6079 = vpop.f32.mrf.mxu0
        %v6080 = vpop.f32.mrf.mxu0
        %v6081 = vadd.f32 0.0, %v6080
        %v6082 = vpop.f32.mrf.mxu0
        %6083 = vmatprep.mubr.bf16.mxu0 0
        %6084 = vmatmul.mubr.bf16.gmra.mxu0 %v5936
        %v6085 = vpop.f32.mrf.mxu0
        %v6086 = vadd.f32 0.0, %v6085
        %v6087 = vpop.f32.mrf.mxu0
        %v6088 = vpop.f32.mrf.mxu0
        %v6089 = vadd.f32 0.0, %v6088
        %v6090 = vpop.f32.mrf.mxu0
        %6091 = vmatprep.mubr.bf16.mxu0 0
        %6092 = vmatmul.mubr.bf16.gmra.mxu0 %v5939
        %v6093 = vpop.f32.mrf.mxu0
        %v6094 = vadd.f32 0.0, %v6093
        %v6095 = vpop.f32.mrf.mxu0
        %v6096 = vpop.f32.mrf.mxu0
        %v6097 = vadd.f32 0.0, %v6096
        %v6098 = vpop.f32.mrf.mxu0
        %6099 = vmatprep.mubr.bf16.mxu0 0
        %6100 = vmatmul.mubr.bf16.gmra.mxu0 %v5942
        %v6101 = vpop.f32.mrf.mxu0
        %v6102 = vadd.f32 0.0, %v6101
        %v6103 = vpop.f32.mrf.mxu0
        %v6104 = vpop.f32.mrf.mxu0
        %v6105 = vadd.f32 0.0, %v6104
        %v6106 = vpop.f32.mrf.mxu0
        %6107 = vdwg.mxu0
        %v6108 = vadd.f32 %v5382, %v5982
        %v6109 = vadd.f32 %v5383, %v5985
        %v6110 = vadd.f32 %v5384, %v5990
        %v6111 = vadd.f32 %v5385, %v5993
        %v6112 = vadd.f32 %v5386, %v5998
        %v6113 = vadd.f32 %v5387, %v6001
        %v6114 = vadd.f32 %v5388, %v6006
        %v6115 = vadd.f32 %v5389, %v6009
        %v6116 = vadd.f32 %v5390, %v6014
        %v6117 = vadd.f32 %v5391, %v6017
        %v6118 = vadd.f32 %v5392, %v6022
        %v6119 = vadd.f32 %v5393, %v6025
        %v6120 = vadd.f32 %v5394, %v6030
        %v6121 = vadd.f32 %v5395, %v6033
        %v6122 = vadd.f32 %v5396, %v6038
        %v6123 = vadd.f32 %v5397, %v6041
        %v6124 = vadd.f32 %v5398, %v6046
        %v6125 = vadd.f32 %v5399, %v6049
        %v6126 = vadd.f32 %v5400, %v6054
        %v6127 = vadd.f32 %v5401, %v6057
        %v6128 = vadd.f32 %v5402, %v6062
        %v6129 = vadd.f32 %v5403, %v6065
        %v6130 = vadd.f32 %v5404, %v6070
        %v6131 = vadd.f32 %v5405, %v6073
        %v6132 = vadd.f32 %v5406, %v6078
        %v6133 = vadd.f32 %v5407, %v6081
        %v6134 = vadd.f32 %v5408, %v6086
        %v6135 = vadd.f32 %v5409, %v6089
        %v6136 = vadd.f32 %v5410, %v6094
        %v6137 = vadd.f32 %v5411, %v6097
        %v6138 = vadd.f32 %v5412, %v6102
        %v6139 = vadd.f32 %v5413, %v6105
        %v6140 = vld [vmem:[%s5] sm:$0x1]
        %v6142 = vlaneseq
        %v6143 = vshrl.u32 %v6142, 7
        %v6144 = vsub.s32 0, %v6143
        %v6145 = vrot.slane %v6140, %v6144
        %v6147 = vmul.f32 %v6108, %v6145
        %v6148 = vmul.f32 %v6109, %v6145
        %v6149 = vmul.f32 %v6110, %v6145
        %v6150 = vmul.f32 %v6111, %v6145
        %v6151 = vmul.f32 %v6112, %v6145
        %v6152 = vmul.f32 %v6113, %v6145
        %v6153 = vmul.f32 %v6114, %v6145
        %v6154 = vmul.f32 %v6115, %v6145
        %v6155 = vmul.f32 %v6116, %v6145
        %v6156 = vmul.f32 %v6117, %v6145
        %v6157 = vmul.f32 %v6118, %v6145
        %v6158 = vmul.f32 %v6119, %v6145
        %v6159 = vmul.f32 %v6120, %v6145
        %v6160 = vmul.f32 %v6121, %v6145
        %v6161 = vmul.f32 %v6122, %v6145
        %v6162 = vmul.f32 %v6123, %v6145
        %v6163 = vmul.f32 %v6124, %v6145
        %v6164 = vmul.f32 %v6125, %v6145
        %v6165 = vmul.f32 %v6126, %v6145
        %v6166 = vmul.f32 %v6127, %v6145
        %v6167 = vmul.f32 %v6128, %v6145
        %v6168 = vmul.f32 %v6129, %v6145
        %v6169 = vmul.f32 %v6130, %v6145
        %v6170 = vmul.f32 %v6131, %v6145
        %v6171 = vmul.f32 %v6132, %v6145
        %v6172 = vmul.f32 %v6133, %v6145
        %v6173 = vmul.f32 %v6134, %v6145
        %v6174 = vmul.f32 %v6135, %v6145
        %v6175 = vmul.f32 %v6136, %v6145
        %v6176 = vmul.f32 %v6137, %v6145
        %v6177 = vmul.f32 %v6138, %v6145
        %v6178 = vmul.f32 %v6139, %v6145
        %v6179 = vld [vmem:[%s6] sm:$0x1]
        %v6181 = vlaneseq
        %v6182 = vshrl.u32 %v6181, 7
        %v6183 = vsub.s32 0, %v6182
        %v6184 = vrot.slane %v6179, %v6183
        %v6186 = vadd.f32 %v6147, %v6184
        %v6187 = vadd.f32 %v6148, %v6184
        %v6188 = vadd.f32 %v6149, %v6184
        %v6189 = vadd.f32 %v6150, %v6184
        %v6190 = vadd.f32 %v6151, %v6184
        %v6191 = vadd.f32 %v6152, %v6184
        %v6192 = vadd.f32 %v6153, %v6184
        %v6193 = vadd.f32 %v6154, %v6184
        %v6194 = vadd.f32 %v6155, %v6184
        %v6195 = vadd.f32 %v6156, %v6184
        %v6196 = vadd.f32 %v6157, %v6184
        %v6197 = vadd.f32 %v6158, %v6184
        %v6198 = vadd.f32 %v6159, %v6184
        %v6199 = vadd.f32 %v6160, %v6184
        %v6200 = vadd.f32 %v6161, %v6184
        %v6201 = vadd.f32 %v6162, %v6184
        %v6202 = vadd.f32 %v6163, %v6184
        %v6203 = vadd.f32 %v6164, %v6184
        %v6204 = vadd.f32 %v6165, %v6184
        %v6205 = vadd.f32 %v6166, %v6184
        %v6206 = vadd.f32 %v6167, %v6184
        %v6207 = vadd.f32 %v6168, %v6184
        %v6208 = vadd.f32 %v6169, %v6184
        %v6209 = vadd.f32 %v6170, %v6184
        %v6210 = vadd.f32 %v6171, %v6184
        %v6211 = vadd.f32 %v6172, %v6184
        %v6212 = vadd.f32 %v6173, %v6184
        %v6213 = vadd.f32 %v6174, %v6184
        %v6214 = vadd.f32 %v6175, %v6184
        %v6215 = vadd.f32 %v6176, %v6184
        %v6216 = vadd.f32 %v6177, %v6184
        %v6217 = vadd.f32 %v6178, %v6184
        %v6218 = vmax.f32 %v6186, 0.0
        %v6219 = vmax.f32 %v6187, 0.0
        %v6220 = vmax.f32 %v6188, 0.0
        %v6221 = vmax.f32 %v6189, 0.0
        %v6222 = vmax.f32 %v6190, 0.0
        %v6223 = vmax.f32 %v6191, 0.0
        %v6224 = vmax.f32 %v6192, 0.0
        %v6225 = vmax.f32 %v6193, 0.0
        %v6226 = vmax.f32 %v6194, 0.0
        %v6227 = vmax.f32 %v6195, 0.0
        %v6228 = vmax.f32 %v6196, 0.0
        %v6229 = vmax.f32 %v6197, 0.0
        %v6230 = vmax.f32 %v6198, 0.0
        %v6231 = vmax.f32 %v6199, 0.0
        %v6232 = vmax.f32 %v6200, 0.0
        %v6233 = vmax.f32 %v6201, 0.0
        %v6234 = vmax.f32 %v6202, 0.0
        %v6235 = vmax.f32 %v6203, 0.0
        %v6236 = vmax.f32 %v6204, 0.0
        %v6237 = vmax.f32 %v6205, 0.0
        %v6238 = vmax.f32 %v6206, 0.0
        %v6239 = vmax.f32 %v6207, 0.0
        %v6240 = vmax.f32 %v6208, 0.0
        %v6241 = vmax.f32 %v6209, 0.0
        %v6242 = vmax.f32 %v6210, 0.0
        %v6243 = vmax.f32 %v6211, 0.0
        %v6244 = vmax.f32 %v6212, 0.0
        %v6245 = vmax.f32 %v6213, 0.0
        %v6246 = vmax.f32 %v6214, 0.0
        %v6247 = vmax.f32 %v6215, 0.0
        %v6248 = vmax.f32 %v6216, 0.0
        %v6249 = vmax.f32 %v6217, 0.0
        %v6250 = vpack.c.bf16 %v6219, %v6218
        %v6251 = vpack.c.bf16 %v6221, %v6220
        %v6252 = vpack.c.bf16 %v6223, %v6222
        %v6253 = vpack.c.bf16 %v6225, %v6224
        %v6254 = vpack.c.bf16 %v6227, %v6226
        %v6255 = vpack.c.bf16 %v6229, %v6228
        %v6256 = vpack.c.bf16 %v6231, %v6230
        %v6257 = vpack.c.bf16 %v6233, %v6232
        %v6258 = vpack.c.bf16 %v6235, %v6234
        %v6259 = vpack.c.bf16 %v6237, %v6236
        %v6260 = vpack.c.bf16 %v6239, %v6238
        %v6261 = vpack.c.bf16 %v6241, %v6240
        %v6262 = vpack.c.bf16 %v6243, %v6242
        %v6263 = vpack.c.bf16 %v6245, %v6244
        %v6264 = vpack.c.bf16 %v6247, %v6246
        %v6265 = vpack.c.bf16 %v6249, %v6248
        %v6266 = vld [vmem:[%s7] sm:$0x3]
        %v6268 = vsel %vm1444, %v6250, 0
        %v6271 = vsel %vm1444, %v6251, 0
        %v6274 = vsel %vm1444, %v6252, 0
        %v6277 = vsel %vm1444, %v6253, 0
        %v6280 = vsel %vm1444, %v6254, 0
        %v6283 = vsel %vm1444, %v6255, 0
        %v6286 = vsel %vm1444, %v6256, 0
        %v6289 = vsel %vm1444, %v6257, 0
        %v6292 = vsel %vm1444, %v6258, 0
        %v6295 = vsel %vm1444, %v6259, 0
        %v6298 = vsel %vm1444, %v6260, 0
        %v6301 = vsel %vm1444, %v6261, 0
        %v6304 = vsel %vm1444, %v6262, 0
        %v6307 = vsel %vm1444, %v6263, 0
        %v6310 = vsel %vm1444, %v6264, 0
        %v6313 = vsel %vm1444, %v6265, 0
        %v6316 = vsel %vm1493, %v6266, 0
        %6318 = vmatprep.subr.bf16.mxu0 0
        %6319 = vmatpush1.bf16.msra.mxu0 0
        %6320 = vmatprep.subr.bf16.mxu0 0
        %6321 = vmatpush1.bf16.msra.mxu0 0
        %6322 = vmatprep.subr.bf16.mxu0 0
        %6323 = vmatpush1.bf16.msra.mxu0 0
        %6324 = vmatprep.subr.bf16.mxu0 0
        %6325 = vmatpush1.bf16.msra.mxu0 0
        %6326 = vmatprep.subr.bf16.mxu0 0
        %6327 = vmatpush1.bf16.msra.mxu0 0
        %6328 = vmatprep.subr.bf16.mxu0 0
        %6329 = vmatpush1.bf16.msra.mxu0 0
        %6330 = vmatprep.subr.bf16.mxu0 0
        %6331 = vmatpush1.bf16.msra.mxu0 0
        %6332 = vmatprep.subr.bf16.mxu0 0
        %6333 = vmatpush1.bf16.msra.mxu0 %v6316
        %6334 = vmatprep.subr.bf16.mxu0 0
        %6335 = vmatpush2.bf16.msra.mxu0 0
        %6336 = vmatprep.subr.bf16.mxu0 0
        %6337 = vmatpush2.bf16.msra.mxu0 0
        %6338 = vmatprep.subr.bf16.mxu0 0
        %6339 = vmatpush2.bf16.msra.mxu0 0
        %6340 = vmatprep.subr.bf16.mxu0 0
        %6341 = vmatpush2.bf16.msra.mxu0 0
        %6342 = vmatprep.subr.bf16.mxu0 0
        %6343 = vmatpush2.bf16.msra.mxu0 0
        %6344 = vmatprep.subr.bf16.mxu0 0
        %6345 = vmatpush2.bf16.msra.mxu0 0
        %6346 = vmatprep.subr.bf16.mxu0 0
        %6347 = vmatpush2.bf16.msra.mxu0 0
        %6348 = vmatprep.subr.bf16.mxu0 0
        %6349 = vmatpush2.bf16.msra.mxu0 0
        %6350 = vmatprep.mubr.bf16.mxu0 0
        %6351 = vmatmul.mubr.bf16.gmra.mxu0 %v6268
        %v6352 = vpop.f32.mrf.mxu0
        %v6353 = vadd.f32 0.0, %v6352
        %v6354 = vpop.f32.mrf.mxu0
        %v6355 = vpop.f32.mrf.mxu0
        %v6356 = vadd.f32 0.0, %v6355
        %v6357 = vpop.f32.mrf.mxu0
        %6358 = vmatprep.mubr.bf16.mxu0 0
        %6359 = vmatmul.mubr.bf16.gmra.mxu0 %v6271
        %v6360 = vpop.f32.mrf.mxu0
        %v6361 = vadd.f32 0.0, %v6360
        %v6362 = vpop.f32.mrf.mxu0
        %v6363 = vpop.f32.mrf.mxu0
        %v6364 = vadd.f32 0.0, %v6363
        %v6365 = vpop.f32.mrf.mxu0
        %6366 = vmatprep.mubr.bf16.mxu0 0
        %6367 = vmatmul.mubr.bf16.gmra.mxu0 %v6274
        %v6368 = vpop.f32.mrf.mxu0
        %v6369 = vadd.f32 0.0, %v6368
        %v6370 = vpop.f32.mrf.mxu0
        %v6371 = vpop.f32.mrf.mxu0
        %v6372 = vadd.f32 0.0, %v6371
        %v6373 = vpop.f32.mrf.mxu0
        %6374 = vmatprep.mubr.bf16.mxu0 0
        %6375 = vmatmul.mubr.bf16.gmra.mxu0 %v6277
        %v6376 = vpop.f32.mrf.mxu0
        %v6377 = vadd.f32 0.0, %v6376
        %v6378 = vpop.f32.mrf.mxu0
        %v6379 = vpop.f32.mrf.mxu0
        %v6380 = vadd.f32 0.0, %v6379
        %v6381 = vpop.f32.mrf.mxu0
        %6382 = vmatprep.mubr.bf16.mxu0 0
        %6383 = vmatmul.mubr.bf16.gmra.mxu0 %v6280
        %v6384 = vpop.f32.mrf.mxu0
        %v6385 = vadd.f32 0.0, %v6384
        %v6386 = vpop.f32.mrf.mxu0
        %v6387 = vpop.f32.mrf.mxu0
        %v6388 = vadd.f32 0.0, %v6387
        %v6389 = vpop.f32.mrf.mxu0
        %6390 = vmatprep.mubr.bf16.mxu0 0
        %6391 = vmatmul.mubr.bf16.gmra.mxu0 %v6283
        %v6392 = vpop.f32.mrf.mxu0
        %v6393 = vadd.f32 0.0, %v6392
        %v6394 = vpop.f32.mrf.mxu0
        %v6395 = vpop.f32.mrf.mxu0
        %v6396 = vadd.f32 0.0, %v6395
        %v6397 = vpop.f32.mrf.mxu0
        %6398 = vmatprep.mubr.bf16.mxu0 0
        %6399 = vmatmul.mubr.bf16.gmra.mxu0 %v6286
        %v6400 = vpop.f32.mrf.mxu0
        %v6401 = vadd.f32 0.0, %v6400
        %v6402 = vpop.f32.mrf.mxu0
        %v6403 = vpop.f32.mrf.mxu0
        %v6404 = vadd.f32 0.0, %v6403
        %v6405 = vpop.f32.mrf.mxu0
        %6406 = vmatprep.mubr.bf16.mxu0 0
        %6407 = vmatmul.mubr.bf16.gmra.mxu0 %v6289
        %v6408 = vpop.f32.mrf.mxu0
        %v6409 = vadd.f32 0.0, %v6408
        %v6410 = vpop.f32.mrf.mxu0
        %v6411 = vpop.f32.mrf.mxu0
        %v6412 = vadd.f32 0.0, %v6411
        %v6413 = vpop.f32.mrf.mxu0
        %6414 = vmatprep.mubr.bf16.mxu0 0
        %6415 = vmatmul.mubr.bf16.gmra.mxu0 %v6292
        %v6416 = vpop.f32.mrf.mxu0
        %v6417 = vadd.f32 0.0, %v6416
        %v6418 = vpop.f32.mrf.mxu0
        %v6419 = vpop.f32.mrf.mxu0
        %v6420 = vadd.f32 0.0, %v6419
        %v6421 = vpop.f32.mrf.mxu0
        %6422 = vmatprep.mubr.bf16.mxu0 0
        %6423 = vmatmul.mubr.bf16.gmra.mxu0 %v6295
        %v6424 = vpop.f32.mrf.mxu0
        %v6425 = vadd.f32 0.0, %v6424
        %v6426 = vpop.f32.mrf.mxu0
        %v6427 = vpop.f32.mrf.mxu0
        %v6428 = vadd.f32 0.0, %v6427
        %v6429 = vpop.f32.mrf.mxu0
        %6430 = vmatprep.mubr.bf16.mxu0 0
        %6431 = vmatmul.mubr.bf16.gmra.mxu0 %v6298
        %v6432 = vpop.f32.mrf.mxu0
        %v6433 = vadd.f32 0.0, %v6432
        %v6434 = vpop.f32.mrf.mxu0
        %v6435 = vpop.f32.mrf.mxu0
        %v6436 = vadd.f32 0.0, %v6435
        %v6437 = vpop.f32.mrf.mxu0
        %6438 = vmatprep.mubr.bf16.mxu0 0
        %6439 = vmatmul.mubr.bf16.gmra.mxu0 %v6301
        %v6440 = vpop.f32.mrf.mxu0
        %v6441 = vadd.f32 0.0, %v6440
        %v6442 = vpop.f32.mrf.mxu0
        %v6443 = vpop.f32.mrf.mxu0
        %v6444 = vadd.f32 0.0, %v6443
        %v6445 = vpop.f32.mrf.mxu0
        %6446 = vmatprep.mubr.bf16.mxu0 0
        %6447 = vmatmul.mubr.bf16.gmra.mxu0 %v6304
        %v6448 = vpop.f32.mrf.mxu0
        %v6449 = vadd.f32 0.0, %v6448
        %v6450 = vpop.f32.mrf.mxu0
        %v6451 = vpop.f32.mrf.mxu0
        %v6452 = vadd.f32 0.0, %v6451
        %v6453 = vpop.f32.mrf.mxu0
        %6454 = vmatprep.mubr.bf16.mxu0 0
        %6455 = vmatmul.mubr.bf16.gmra.mxu0 %v6307
        %v6456 = vpop.f32.mrf.mxu0
        %v6457 = vadd.f32 0.0, %v6456
        %v6458 = vpop.f32.mrf.mxu0
        %v6459 = vpop.f32.mrf.mxu0
        %v6460 = vadd.f32 0.0, %v6459
        %v6461 = vpop.f32.mrf.mxu0
        %6462 = vmatprep.mubr.bf16.mxu0 0
        %6463 = vmatmul.mubr.bf16.gmra.mxu0 %v6310
        %v6464 = vpop.f32.mrf.mxu0
        %v6465 = vadd.f32 0.0, %v6464
        %v6466 = vpop.f32.mrf.mxu0
        %v6467 = vpop.f32.mrf.mxu0
        %v6468 = vadd.f32 0.0, %v6467
        %v6469 = vpop.f32.mrf.mxu0
        %6470 = vmatprep.mubr.bf16.mxu0 0
        %6471 = vmatmul.mubr.bf16.gmra.mxu0 %v6313
        %v6472 = vpop.f32.mrf.mxu0
        %v6473 = vadd.f32 0.0, %v6472
        %v6474 = vpop.f32.mrf.mxu0
        %v6475 = vpop.f32.mrf.mxu0
        %v6476 = vadd.f32 0.0, %v6475
        %v6477 = vpop.f32.mrf.mxu0
        %6478 = vdwg.mxu0
        %v6479 = vld [vmem:[%s8] sm:$0x1]
        %v6481 = vlaneseq
        %v6482 = vshrl.u32 %v6481, 7
        %v6483 = vsub.s32 0, %v6482
        %v6484 = vrot.slane %v6479, %v6483
        %v6486 = vmul.f32 %v6353, %v6484
        %v6487 = vmul.f32 %v6356, %v6484
        %v6488 = vmul.f32 %v6361, %v6484
        %v6489 = vmul.f32 %v6364, %v6484
        %v6490 = vmul.f32 %v6369, %v6484
        %v6491 = vmul.f32 %v6372, %v6484
        %v6492 = vmul.f32 %v6377, %v6484
        %v6493 = vmul.f32 %v6380, %v6484
        %v6494 = vmul.f32 %v6385, %v6484
        %v6495 = vmul.f32 %v6388, %v6484
        %v6496 = vmul.f32 %v6393, %v6484
        %v6497 = vmul.f32 %v6396, %v6484
        %v6498 = vmul.f32 %v6401, %v6484
        %v6499 = vmul.f32 %v6404, %v6484
        %v6500 = vmul.f32 %v6409, %v6484
        %v6501 = vmul.f32 %v6412, %v6484
        %v6502 = vmul.f32 %v6417, %v6484
        %v6503 = vmul.f32 %v6420, %v6484
        %v6504 = vmul.f32 %v6425, %v6484
        %v6505 = vmul.f32 %v6428, %v6484
        %v6506 = vmul.f32 %v6433, %v6484
        %v6507 = vmul.f32 %v6436, %v6484
        %v6508 = vmul.f32 %v6441, %v6484
        %v6509 = vmul.f32 %v6444, %v6484
        %v6510 = vmul.f32 %v6449, %v6484
        %v6511 = vmul.f32 %v6452, %v6484
        %v6512 = vmul.f32 %v6457, %v6484
        %v6513 = vmul.f32 %v6460, %v6484
        %v6514 = vmul.f32 %v6465, %v6484
        %v6515 = vmul.f32 %v6468, %v6484
        %v6516 = vmul.f32 %v6473, %v6484
        %v6517 = vmul.f32 %v6476, %v6484
        %v6518 = vld [vmem:[%s9] sm:$0x1]
        %v6520 = vlaneseq
        %v6521 = vshrl.u32 %v6520, 7
        %v6522 = vsub.s32 0, %v6521
        %v6523 = vrot.slane %v6518, %v6522
        %v6525 = vadd.f32 %v6486, %v6523
        %v6526 = vadd.f32 %v6487, %v6523
        %v6527 = vadd.f32 %v6488, %v6523
        %v6528 = vadd.f32 %v6489, %v6523
        %v6529 = vadd.f32 %v6490, %v6523
        %v6530 = vadd.f32 %v6491, %v6523
        %v6531 = vadd.f32 %v6492, %v6523
        %v6532 = vadd.f32 %v6493, %v6523
        %v6533 = vadd.f32 %v6494, %v6523
        %v6534 = vadd.f32 %v6495, %v6523
        %v6535 = vadd.f32 %v6496, %v6523
        %v6536 = vadd.f32 %v6497, %v6523
        %v6537 = vadd.f32 %v6498, %v6523
        %v6538 = vadd.f32 %v6499, %v6523
        %v6539 = vadd.f32 %v6500, %v6523
        %v6540 = vadd.f32 %v6501, %v6523
        %v6541 = vadd.f32 %v6502, %v6523
        %v6542 = vadd.f32 %v6503, %v6523
        %v6543 = vadd.f32 %v6504, %v6523
        %v6544 = vadd.f32 %v6505, %v6523
        %v6545 = vadd.f32 %v6506, %v6523
        %v6546 = vadd.f32 %v6507, %v6523
        %v6547 = vadd.f32 %v6508, %v6523
        %v6548 = vadd.f32 %v6509, %v6523
        %v6549 = vadd.f32 %v6510, %v6523
        %v6550 = vadd.f32 %v6511, %v6523
        %v6551 = vadd.f32 %v6512, %v6523
        %v6552 = vadd.f32 %v6513, %v6523
        %v6553 = vadd.f32 %v6514, %v6523
        %v6554 = vadd.f32 %v6515, %v6523
        %v6555 = vadd.f32 %v6516, %v6523
        %v6556 = vadd.f32 %v6517, %v6523
        %v6557 = vld [vmem:[%s341] sm:$0xff]
        %v6558 = vld [vmem:[%s341 + $0x8] sm:$0xff]
        %v6559 = vld [vmem:[%s341 + $0x10] sm:$0xff]
        %v6560 = vld [vmem:[%s341 + $0x18] sm:$0xff]
        %v6561 = vld [vmem:[%s341 + $0x20] sm:$0xff]
        %v6562 = vld [vmem:[%s341 + $0x28] sm:$0xff]
        %v6563 = vld [vmem:[%s341 + $0x30] sm:$0xff]
        %v6564 = vld [vmem:[%s341 + $0x38] sm:$0xff]
        %v6565 = vld [vmem:[%s341 + $0x40] sm:$0xff]
        %v6566 = vld [vmem:[%s341 + $0x48] sm:$0xff]
        %v6567 = vld [vmem:[%s341 + $0x50] sm:$0xff]
        %v6568 = vld [vmem:[%s341 + $0x58] sm:$0xff]
        %v6569 = vld [vmem:[%s341 + $0x60] sm:$0xff]
        %v6570 = vld [vmem:[%s341 + $0x68] sm:$0xff]
        %v6571 = vld [vmem:[%s341 + $0x70] sm:$0xff]
        %v6572 = vld [vmem:[%s341 + $0x78] sm:$0xff]
        %v6573 = vld [vmem:[%s341 + $0x80] sm:$0xff]
        %v6574 = vld [vmem:[%s341 + $0x88] sm:$0xff]
        %v6575 = vld [vmem:[%s341 + $0x90] sm:$0xff]
        %v6576 = vld [vmem:[%s341 + $0x98] sm:$0xff]
        %v6577 = vld [vmem:[%s341 + $0xa0] sm:$0xff]
        %v6578 = vld [vmem:[%s341 + $0xa8] sm:$0xff]
        %v6579 = vld [vmem:[%s341 + $0xb0] sm:$0xff]
        %v6580 = vld [vmem:[%s341 + $0xb8] sm:$0xff]
        %v6581 = vld [vmem:[%s341 + $0xc0] sm:$0xff]
        %v6582 = vld [vmem:[%s341 + $0xc8] sm:$0xff]
        %v6583 = vld [vmem:[%s341 + $0xd0] sm:$0xff]
        %v6584 = vld [vmem:[%s341 + $0xd8] sm:$0xff]
        %v6585 = vld [vmem:[%s341 + $0xe0] sm:$0xff]
        %v6586 = vld [vmem:[%s341 + $0xe8] sm:$0xff]
        %v6587 = vld [vmem:[%s341 + $0xf0] sm:$0xff]
        %v6588 = vld [vmem:[%s341 + $0xf8] sm:$0xff]
        %v6589 = vadd.f32 %v6525, %v6557
        %v6590 = vadd.f32 %v6526, %v6558
        %v6591 = vadd.f32 %v6527, %v6559
        %v6592 = vadd.f32 %v6528, %v6560
        %v6593 = vadd.f32 %v6529, %v6561
        %v6594 = vadd.f32 %v6530, %v6562
        %v6595 = vadd.f32 %v6531, %v6563
        %v6596 = vadd.f32 %v6532, %v6564
        %v6597 = vadd.f32 %v6533, %v6565
        %v6598 = vadd.f32 %v6534, %v6566
        %v6599 = vadd.f32 %v6535, %v6567
        %v6600 = vadd.f32 %v6536, %v6568
        %v6601 = vadd.f32 %v6537, %v6569
        %v6602 = vadd.f32 %v6538, %v6570
        %v6603 = vadd.f32 %v6539, %v6571
        %v6604 = vadd.f32 %v6540, %v6572
        %v6605 = vadd.f32 %v6541, %v6573
        %v6606 = vadd.f32 %v6542, %v6574
        %v6607 = vadd.f32 %v6543, %v6575
        %v6608 = vadd.f32 %v6544, %v6576
        %v6609 = vadd.f32 %v6545, %v6577
        %v6610 = vadd.f32 %v6546, %v6578
        %v6611 = vadd.f32 %v6547, %v6579
        %v6612 = vadd.f32 %v6548, %v6580
        %v6613 = vadd.f32 %v6549, %v6581
        %v6614 = vadd.f32 %v6550, %v6582
        %v6615 = vadd.f32 %v6551, %v6583
        %v6616 = vadd.f32 %v6552, %v6584
        %v6617 = vadd.f32 %v6553, %v6585
        %v6618 = vadd.f32 %v6554, %v6586
        %v6619 = vadd.f32 %v6555, %v6587
        %v6620 = vadd.f32 %v6556, %v6588
        %v6621 = vmax.f32 %v6589, 0.0
        %v6622 = vmax.f32 %v6590, 0.0
        %v6623 = vmax.f32 %v6591, 0.0
        %v6624 = vmax.f32 %v6592, 0.0
        %v6625 = vmax.f32 %v6593, 0.0
        %v6626 = vmax.f32 %v6594, 0.0
        %v6627 = vmax.f32 %v6595, 0.0
        %v6628 = vmax.f32 %v6596, 0.0
        %v6629 = vmax.f32 %v6597, 0.0
        %v6630 = vmax.f32 %v6598, 0.0
        %v6631 = vmax.f32 %v6599, 0.0
        %v6632 = vmax.f32 %v6600, 0.0
        %v6633 = vmax.f32 %v6601, 0.0
        %v6634 = vmax.f32 %v6602, 0.0
        %v6635 = vmax.f32 %v6603, 0.0
        %v6636 = vmax.f32 %v6604, 0.0
        %v6637 = vmax.f32 %v6605, 0.0
        %v6638 = vmax.f32 %v6606, 0.0
        %v6639 = vmax.f32 %v6607, 0.0
        %v6640 = vmax.f32 %v6608, 0.0
        %v6641 = vmax.f32 %v6609, 0.0
        %v6642 = vmax.f32 %v6610, 0.0
        %v6643 = vmax.f32 %v6611, 0.0
        %v6644 = vmax.f32 %v6612, 0.0
        %v6645 = vmax.f32 %v6613, 0.0
        %v6646 = vmax.f32 %v6614, 0.0
        %v6647 = vmax.f32 %v6615, 0.0
        %v6648 = vmax.f32 %v6616, 0.0
        %v6649 = vmax.f32 %v6617, 0.0
        %v6650 = vmax.f32 %v6618, 0.0
        %v6651 = vmax.f32 %v6619, 0.0
        %v6652 = vmax.f32 %v6620, 0.0
        %6653 = vst.msk [vmem:[%s377] sm:$0xff] %vm435, %v6621
        %6654 = vst.msk [vmem:[%s377 + $0x8] sm:$0xff] %vm435, %v6622
        %6655 = vst.msk [vmem:[%s377 + $0x10] sm:$0xff] %vm435, %v6623
        %6656 = vst.msk [vmem:[%s377 + $0x18] sm:$0xff] %vm435, %v6624
        %6657 = vst.msk [vmem:[%s377 + $0x20] sm:$0xff] %vm435, %v6625
        %6658 = vst.msk [vmem:[%s377 + $0x28] sm:$0xff] %vm435, %v6626
        %6659 = vst.msk [vmem:[%s377 + $0x30] sm:$0xff] %vm435, %v6627
        %6660 = vst.msk [vmem:[%s377 + $0x38] sm:$0xff] %vm435, %v6628
        %6661 = vst.msk [vmem:[%s377 + $0x40] sm:$0xff] %vm435, %v6629
        %6662 = vst.msk [vmem:[%s377 + $0x48] sm:$0xff] %vm435, %v6630
        %6663 = vst.msk [vmem:[%s377 + $0x50] sm:$0xff] %vm435, %v6631
        %6664 = vst.msk [vmem:[%s377 + $0x58] sm:$0xff] %vm435, %v6632
        %6665 = vst.msk [vmem:[%s377 + $0x60] sm:$0xff] %vm435, %v6633
        %6666 = vst.msk [vmem:[%s377 + $0x68] sm:$0xff] %vm435, %v6634
        %6667 = vst.msk [vmem:[%s377 + $0x70] sm:$0xff] %vm435, %v6635
        %6668 = vst.msk [vmem:[%s377 + $0x78] sm:$0xff] %vm435, %v6636
        %6669 = vst.msk [vmem:[%s377 + $0x80] sm:$0xff] %vm435, %v6637
        %6670 = vst.msk [vmem:[%s377 + $0x88] sm:$0xff] %vm435, %v6638
        %6671 = vst.msk [vmem:[%s377 + $0x90] sm:$0xff] %vm435, %v6639
        %6672 = vst.msk [vmem:[%s377 + $0x98] sm:$0xff] %vm435, %v6640
        %6673 = vst.msk [vmem:[%s377 + $0xa0] sm:$0xff] %vm435, %v6641
        %6674 = vst.msk [vmem:[%s377 + $0xa8] sm:$0xff] %vm435, %v6642
        %6675 = vst.msk [vmem:[%s377 + $0xb0] sm:$0xff] %vm435, %v6643
        %6676 = vst.msk [vmem:[%s377 + $0xb8] sm:$0xff] %vm435, %v6644
        %6677 = vst.msk [vmem:[%s377 + $0xc0] sm:$0xff] %vm435, %v6645
        %6678 = vst.msk [vmem:[%s377 + $0xc8] sm:$0xff] %vm435, %v6646
        %6679 = vst.msk [vmem:[%s377 + $0xd0] sm:$0xff] %vm435, %v6647
        %6680 = vst.msk [vmem:[%s377 + $0xd8] sm:$0xff] %vm435, %v6648
        %6681 = vst.msk [vmem:[%s377 + $0xe0] sm:$0xff] %vm435, %v6649
        %6682 = vst.msk [vmem:[%s377 + $0xe8] sm:$0xff] %vm435, %v6650
        %6683 = vst.msk [vmem:[%s377 + $0xf0] sm:$0xff] %vm435, %v6651
        %6684 = vst.msk [vmem:[%s377 + $0xf8] sm:$0xff] %vm435, %v6652
        %s6685 = sand.u32 %s250, 1
        %s6686 = scalar_lea.sflag [#allocation5], %s6685
        %s6687 = sand.u32 %s250, 1
        %s6688 = smul.addr %s6687, 256
        %s6689 = scalar_lea.vmem [#allocation6], %s6688
        // Predicated region
        $region65: #{tpu_custom_call.1} parent=59 // pred_check
          %p6690 = pneg %p260
        $region66: #{tpu_custom_call.1} parent=59 // pred_check_branch
          %6692 = sbr.rel (%p6690) target = $region68
        $region67: #{tpu_custom_call.1} parent=59 // pred_region
          %s6694 = ssub.s32 4096, 4096
          %6695 = vsyncadd %s6686, %s6694
          %s6696 = smul.addr %s27, 32
          %s6697 = smul.addr %s6696, 128
          %s6698 = scalar_lea.hbm %s10, %s6697
          %s6699 = sshll.u32 %s6689, 4
          %s6700 = int_to_ptr.vmem [resolvable:$true] %s6699
          %6705 = dma.vmem_to_hbm [thread:$0]  %s6700, 4096, %s6698, %s6686, 128, 128, 8
        $region68: #{tpu_custom_call.1} parent=59 // pred_fallthru
          _
      $region60: #{tpu_custom_call.1} parent=5 // pred_fallthru
        _
      %p6706 = scmp.le.s32.totalorder 2, %s22
      // Predicated region
      $region69: #{tpu_custom_call.1} parent=5 // pred_check
        %p6707 = pneg %p6706
      $region70: #{tpu_custom_call.1} parent=5 // pred_check_branch
        %6709 = sbr.rel (%p6707) target = $region72
      $region71: #{tpu_custom_call.1} parent=5 // pred_region
        %s6710 = ssub.s32 %s22, 2
        // Predicated region
        $region73: #{tpu_custom_call.1} parent=71 // pred_check
          %p6711 = pneg %p266
        $region74: #{tpu_custom_call.1} parent=71 // pred_check_branch
          %6713 = sbr.rel (%p6711) target = $region76
        $region75: #{tpu_custom_call.1} parent=71 // pred_region
          %s6714 = sand.u32 %s251, 1
          %s6715 = scalar_lea.sflag [#allocation5], %s6714
          %s6716 = sand.u32 %s251, 1
          %s6717 = smul.addr %s6716, 256
          %s6718 = scalar_lea.vmem [#allocation6], %s6717
          %6719 = dma.done %s6715, 4096
        $region76: #{tpu_custom_call.1} parent=71 // pred_fallthru
          _
      $region72: #{tpu_custom_call.1} parent=5 // pred_fallthru
        _
    $region6: #{tpu_custom_call.1} parent=1 // loop_footer
      %s26 = sadd.s32 1, %s22
    $region7: #{tpu_custom_call.1} parent=1 // loop_footer_branch
      %21 = sbr.rel target = $region3
    $region8: #{tpu_custom_call.1} parent=1 // loop_exit
      _
    %6720 = vsyncpa [#allocation4], 1
    %s6721 = scalar_lea.sflag [#allocation4], 1
    %6722 = vsyncpa %s6721, 1
    %6723 = vsyncpa [#allocation5], 1
    %s6724 = scalar_lea.sflag [#allocation5], 1
    %6725 = vsyncpa %s6724, 1

</llo_original>
